<compile_context>
chip_gen: v7x
topology: tpu7x:2x2x1
jax: 0.10.0
libtpu: 0.0.40
codegen_flags: <defaults>
</compile_context>

<pallas_src>
import functools

import numpy as np
import jax
import jax.numpy as jnp
from jax.experimental import pallas as pl
from jax.experimental.pallas import tpu as pltpu

NUM_LAYERS = 4
LEAKY_SLOPE = 0.01  # torch.nn.LeakyReLU default


def _round_up(x, m):
    return ((x + m - 1) // m) * m


def _num_tensorcores():
    """Best-effort TensorCore count of device 0 (only used to size the grid)."""
    try:
        kind = jax.devices()[0].device_kind.lower()
    except Exception:
        return 1
    if "lite" in kind or "v5e" in kind or "v6e" in kind:
        return 1
    if "v7" in kind or "v4" in kind or "v5p" in kind:
        return 2
    return 1


# ------------------------------------------------------------------ kernel ---
def _cond_realnvp_kernel(slab_ref, w1_ref, w2_ref, wo_ref, vec_ref, out_ref, *,
                         in_dim, logdet_lane):
    """One batch tile of the full 4-layer conditional RealNVP forward.

    slab_ref : [TB, PAD]     f32   lanes [0:D]=x, [D:D+C]=condition, rest 0
    w1_ref   : [L, PAD, 2H]  bf16  fused fc1 (s | t); (1-mask) folded into x rows
    w2_ref   : [L, 2H, 2H]   bf16  block-diagonal fused fc2
    wo_ref   : [L, 2H, PAD]  bf16  fused fcout; mask folded in; s -> lanes [0:D],
                                   t -> lanes [D:2D]
    vec_ref  : [L, 3, VW]    f32   rows: b1 (s|t) | b2 (s|t) | bo (masked, s|t packed)
    out_ref  : [TB, PAD]     f32   lanes [0:D]=z, [D:D+C]=condition (unchanged),
                                   lane `logdet_lane` = logdet_tot
    """
    f32 = jnp.float32
    bf16 = jnp.bfloat16

    num_layers = w1_ref.shape[0]
    pad = slab_ref.shape[1]
    two_h = w2_ref.shape[1]

    def leaky(u):
        # vmul + vmax instead of compare + select (lower VALU pressure)
        return jnp.maximum(u, LEAKY_SLOPE * u)

    # Static lane masks (hoisted out of the layer loop).
    lane = jax.lax.broadcasted_iota(jnp.int32, (1, pad), 1)
    sel = (lane < in_dim).astype(f32)                 # 1 on x lanes [0:D], else 0
    ld_onehot = (lane == logdet_lane).astype(f32)     # spare lane for logdet

    slab = slab_ref[...]                              # [TB, PAD] f32
    s_acc = jnp.zeros(slab.shape, f32)                # logdet is linear in s

    for l in range(num_layers):                       # static unroll (4 layers)
        vec = vec_ref[l]                              # [3, VW] f32
        b1 = vec[0:1, :two_h]                         # [1, 2H]
        b2 = vec[1:2, :two_h]                         # [1, 2H]
        bo = vec[2:3, :pad]                           # [1, PAD] (masks folded in)

        # cat([x*(1-mask), c]) @ W1 == slab @ (diag(fix)*W1): mask folded at pack time.
        h = leaky(jnp.dot(slab.astype(bf16), w1_ref[l],
                          preferred_element_type=f32) + b1)            # [TB, 2H]
        h = leaky(jnp.dot(h.astype(bf16), w2_ref[l],
                          preferred_element_type=f32) + b2)            # [TB, 2H]
        st = jnp.dot(h.astype(bf16), wo_ref[l],
                     preferred_element_type=f32) + bo                  # [TB, PAD]
        # st: lanes [0:D] = mask*s, lanes [D:2D] = mask*t, 0 elsewhere.

        s = st * sel                                   # isolate s (zero off x lanes)
        t = pltpu.roll(st, pad - in_dim, axis=1) * sel  # bring t to [0:D]; re-mask so
        #                                                 pad + logdet lanes stay zero
        slab = slab * jnp.exp(s) + t                   # x lanes updated; c/pad lanes unchanged
        s_acc = s_acc + s

    logdet = jnp.sum(s_acc, axis=-1, keepdims=True)    # single cross-lane reduction
    # Stash logdet in a spare (always-zero) lane so the single output store is lane-dense.
    out_ref[...] = slab + logdet * ld_onehot


# ------------------------------------------------------------------ params ---
def make_params(in_dim, cond_dim, hidden, key, weight_dtype=jnp.bfloat16):
    """Synthetic torch-Linear-style params, packed for the fused kernel.

    Returns (kernel_params, ref_layers):
      kernel_params: dict of packed arrays consumed by the Pallas kernel
                     (checkerboard + output masks folded into the weights/biases).
      ref_layers:    list of per-layer unpacked params for the pure-JAX reference.
    """
    D, C, H = in_dim, cond_dim, hidden
    DC = D + C
    PAD = _round_up(DC + 1, 128)      # +1 spare lane for logdet
    TWO_H = 2 * H
    VW = _round_up(max(TWO_H, PAD), 128)
    assert 2 * D <= PAD, "t-packing requires 2*in_dim <= padded lane width"

    keys = jax.random.split(key, 12 * NUM_LAYERS)
    ki = iter(keys)

    def linear(fan_in, fan_out):
        bound = 1.0 / np.sqrt(fan_in)
        w = jax.random.uniform(next(ki), (fan_in, fan_out), jnp.float32, -bound, bound)
        b = jax.random.uniform(next(ki), (1, fan_out), jnp.float32, -bound, bound)
        # weights rounded to MXU operand dtype (bf16); biases stay f32
        return w.astype(weight_dtype), b

    base = np.array([j % 2 for j in range(D)], dtype=np.float32)      # checkerboard
    reverses = (True, False, True, False)                             # matches the module

    W1 = np.zeros((NUM_LAYERS, PAD, TWO_H), np.float32)
    W2 = np.zeros((NUM_LAYERS, TWO_H, TWO_H), np.float32)
    WO = np.zeros((NUM_LAYERS, TWO_H, PAD), np.float32)
    VEC = np.zeros((NUM_LAYERS, 3, VW), np.float32)
    ref_layers = []

    for l in range(NUM_LAYERS):
        w1s, b1s = linear(DC, H)
        w2s, b2s = linear(H, H)
        wos, bos = linear(H, D)
        w1t, b1t = linear(DC, H)
        w2t, b2t = linear(H, H)
        wot, bot = linear(H, D)

        mask = (1.0 - base) if reverses[l] else base                  # [D], 0/1

        f32np = lambda a: np.asarray(a.astype(jnp.float32))

        # fused fc1 [PAD, 2H]: (1-mask) "fix" folded into x-lane rows (exact, 0/1);
        # condition rows pass through; pad rows stay zero.
        W1[l, :D, :H] = f32np(w1s)[:D] * (1.0 - mask)[:, None]
        W1[l, :D, H:] = f32np(w1t)[:D] * (1.0 - mask)[:, None]
        W1[l, D:DC, :H] = f32np(w1s)[D:]
        W1[l, D:DC, H:] = f32np(w1t)[D:]
        # fused fc2: block-diagonal so s/t branches stay independent
        W2[l, :H, :H] = f32np(w2s)
        W2[l, H:, H:] = f32np(w2t)
        # fused fcout [2H, PAD]: output mask folded in; s -> lanes [0:D], t -> lanes [D:2D]
        WO[l, :H, :D] = f32np(wos) * mask[None, :]
        WO[l, H:, D:2 * D] = f32np(wot) * mask[None, :]

        # packed bias slab (masks folded into bo as well)
        VEC[l, 0, :H] = f32np(b1s)[0]
        VEC[l, 0, H:TWO_H] = f32np(b1t)[0]
        VEC[l, 1, :H] = f32np(b2s)[0]
        VEC[l, 1, H:TWO_H] = f32np(b2t)[0]
        VEC[l, 2, :D] = f32np(bos)[0] * mask
        VEC[l, 2, D:2 * D] = f32np(bot)[0] * mask

        ref_layers.append(dict(
            mask=jnp.asarray(mask.reshape(1, D)),
            w1s=w1s, b1s=b1s, w2s=w2s, b2s=b2s, wos=wos, bos=bos,
            w1t=w1t, b1t=b1t, w2t=w2t, b2t=b2t, wot=wot, bot=bot,
        ))

    kparams = dict(
        w1=jnp.asarray(W1).astype(weight_dtype),
        w2=jnp.asarray(W2).astype(weight_dtype),
        wo=jnp.asarray(WO).astype(weight_dtype),
        vec=jnp.asarray(VEC, dtype=jnp.float32),
    )
    return kparams, ref_layers


# ----------------------------------------------------------------- wrapper ---
@functools.partial(jax.jit, static_argnames=("block_b",))
def conditional_realnvp_forward(y, x_c, kparams, *, block_b=512):
    """ConditionalRealNVP.forward(y, x_c) -> (x, logdet_tot)."""
    B, D = y.shape
    cond = x_c.reshape(B, -1).astype(jnp.float32)
    C = cond.shape[1]
    DC = D + C
    PAD = kparams["w1"].shape[1]
    logdet_lane = DC

    # --- batch tiling ------------------------------------------------------
    # Big tiles amortize the ~0.35 us per-grid-step overhead and the MXU fill/drain
    # of the 12 dependent tiny matmuls; keep the grid length >= #TensorCores so the
    # "parallel" axis actually shards across both cores on v7x. tb is always a
    # multiple of 8 (sublane rule), capped at block_b rows.
    block_b8 = max(8, (block_b // 8) * 8)
    Bp8 = _round_up(B, 8)
    n_split = _num_tensorcores()
    tb = min(block_b8, _round_up(pl.cdiv(Bp8, n_split), 8))
    nb = pl.cdiv(Bp8, tb)
    Bp = nb * tb

    # lane-dense input slab: [x | c | zeros]
    # TODO(synk): for very large B, pass y/cond as separate inputs and assemble the
    # slab in VMEM inside the kernel to avoid the extra [Bp, PAD] HBM round-trip
    # (at these batch sizes it is noise).
    xy = jnp.concatenate([y.astype(jnp.float32), cond], axis=1)       # [B, DC]
    slab = jnp.pad(xy, ((0, Bp - B), (0, PAD - DC)))                  # [Bp, PAD]

    const3 = lambda i: (0, 0, 0)   # params resident in VMEM across all grid steps
    out = pl.pallas_call(
        functools.partial(_cond_realnvp_kernel, in_dim=D, logdet_lane=logdet_lane),
        out_shape=jax.ShapeDtypeStruct((Bp, PAD), jnp.float32),
        grid=(nb,),
        in_specs=[
            pl.BlockSpec((tb, PAD), lambda i: (i, 0)),
            pl.BlockSpec(kparams["w1"].shape, const3),
            pl.BlockSpec(kparams["w2"].shape, const3),
            pl.BlockSpec(kparams["wo"].shape, const3),
            pl.BlockSpec(kparams["vec"].shape, const3),
        ],
        out_specs=pl.BlockSpec((tb, PAD), lambda i: (i, 0)),
        compiler_params=pltpu.CompilerParams(
            dimension_semantics=("parallel",),
            # NOTE: weight stacks are a few 10s of KiB at H=16. If hidden_dim grows
            # ~100x, the (double-buffered) resident bf16 weights approach the scoped
            # VMEM default (v7x: 64 MiB physical) -- then single-buffer them
            # (pipeline_mode=pl.Buffered(1)), set vmem_limit_bytes, and re-derive tb.
        ),
    )(slab, kparams["w1"], kparams["w2"], kparams["wo"], kparams["vec"])

    return out[:B, :D], out[:B, logdet_lane]


# ---------------------------------------------------------- pure-JAX check ---
def conditional_realnvp_ref(y, x_c, ref_layers):
    """Mirrors the PyTorch module math (bf16 matmul operands, f32 accumulate)."""
    def leaky(u):
        return jnp.maximum(u, LEAKY_SLOPE * u)

    def dot(a, w):
        return jnp.dot(a.astype(jnp.bfloat16), w, preferred_element_type=jnp.float32)

    x = y.astype(jnp.float32)
    c = x_c.reshape(x_c.shape[0], -1).astype(jnp.float32)
    logdet_tot = jnp.zeros((x.shape[0],), jnp.float32)
    for p in ref_layers:
        mask = p["mask"]
        x_fixed = x * (1.0 - mask)
        inp = jnp.concatenate([x_fixed, c], axis=1)
        h = leaky(dot(inp, p["w1s"]) + p["b1s"])
        h = leaky(dot(h, p["w2s"]) + p["b2s"])
        s = dot(h, p["wos"]) + p["bos"]
        h = leaky(dot(inp, p["w1t"]) + p["b1t"])
        h = leaky(dot(h, p["w2t"]) + p["b2t"])
        t = dot(h, p["wot"]) + p["bot"]
        s = s * mask
        t = t * mask
        x = x * jnp.exp(s) + t
        logdet_tot = logdet_tot + jnp.sum(s, axis=-1)
    return x, logdet_tot


# -------------------------------------------------------------------- main ---
if __name__ == "__main__":
    IN_DIM = 8        # action / flow dim
    COND_DIM = 16     # flattened condition dim (x_c is [B, 4, 4] below)
    HIDDEN = 16
    BATCH = 256

    key = jax.random.PRNGKey(0)
    kp, ky, kc = jax.random.split(key, 3)
    kparams, ref_layers = make_params(IN_DIM, COND_DIM, HIDDEN, kp)

    y = jax.random.normal(ky, (BATCH, IN_DIM), jnp.float32)
    x_c = jax.random.normal(kc, (BATCH, 4, 4), jnp.float32)   # module reshapes to [B, -1]

    x_out, logdet = conditional_realnvp_forward(y, x_c, kparams)
    jax.block_until_ready((x_out, logdet))

    x_ref, ld_ref = conditional_realnvp_ref(y, x_c, ref_layers)
    np.testing.assert_allclose(np.asarray(x_out), np.asarray(x_ref), rtol=1e-4, atol=1e-4)
    np.testing.assert_allclose(np.asarray(logdet), np.asarray(ld_ref), rtol=1e-4, atol=1e-4)

    print("KERNEL_OK")
</pallas_src>

<mosaic_0001>
module attributes {stable_mosaic.version = 11 : i64} {
  func.func @_cond_realnvp_kernel(%arg0: i32, %arg1: memref<256x128xf32, #tpu.memory_space<vmem>>, %arg2: memref<4x128x32xbf16, #tpu.memory_space<vmem>>, %arg3: memref<4x32x32xbf16, #tpu.memory_space<vmem>>, %arg4: memref<4x32x128xbf16, #tpu.memory_space<vmem>>, %arg5: memref<4x3x128xf32, #tpu.memory_space<vmem>>, %arg6: memref<256x128xf32, #tpu.memory_space<vmem>>) attributes {dimension_semantics = [#tpu.dimension_semantics<parallel>], iteration_bounds = array<i64: 1>, scalar_prefetch = 0 : i64, scratch_operands = 0 : i64, tpu.core_type = #tpu.core_type<tc>, window_params = [{transform_indices = @transform_0, window_bounds = array<i64: 256, 128>}, {pipeline_mode = #tpu.pipeline_mode<synchronous>, transform_indices = @transform_1, window_bounds = array<i64: 4, 128, 32>}, {pipeline_mode = #tpu.pipeline_mode<synchronous>, transform_indices = @transform_2, window_bounds = array<i64: 4, 32, 32>}, {pipeline_mode = #tpu.pipeline_mode<synchronous>, transform_indices = @transform_3, window_bounds = array<i64: 4, 32, 128>}, {pipeline_mode = #tpu.pipeline_mode<synchronous>, transform_indices = @transform_4, window_bounds = array<i64: 4, 3, 128>}, {transform_indices = @transform_5, window_bounds = array<i64: 256, 128>}]} {
    %0 = tpu.iota {dimensions = array<i32: 1>} : vector<1x128xi32>
    %c8_i32 = arith.constant 8 : i32
    %1 = vector.broadcast %c8_i32 : i32 to vector<1x128xi32>
    %2 = arith.cmpi slt, %0, %1 : vector<1x128xi32>
    %3 = arith.extui %2 : vector<1x128xi1> to vector<1x128xi32>
    %4 = arith.sitofp %3 : vector<1x128xi32> to vector<1x128xf32>
    %c24_i32 = arith.constant 24 : i32
    %5 = vector.broadcast %c24_i32 : i32 to vector<1x128xi32>
    %6 = arith.cmpi eq, %0, %5 : vector<1x128xi32>
    %7 = arith.extui %6 : vector<1x128xi1> to vector<1x128xi32>
    %8 = arith.sitofp %7 : vector<1x128xi32> to vector<1x128xf32>
    %c0 = arith.constant 0 : index
    %c0_0 = arith.constant 0 : index
    %9 = vector.load %arg1[%c0, %c0_0] : memref<256x128xf32, #tpu.memory_space<vmem>>, vector<256x128xf32>
    %cst = arith.constant 0.000000e+00 : f32
    %10 = vector.broadcast %cst : f32 to vector<256x128xf32>
    %c0_1 = arith.constant 0 : index
    %c0_2 = arith.constant 0 : index
    %c0_3 = arith.constant 0 : index
    %11 = vector.load %arg5[%c0_1, %c0_2, %c0_3] : memref<4x3x128xf32, #tpu.memory_space<vmem>>, vector<1x3x128xf32>
    %12 = vector.shape_cast %11 : vector<1x3x128xf32> to vector<3x128xf32>
    %13 = vector.extract_strided_slice %12 {offsets = [0, 0], sizes = [1, 32], strides = [1, 1]} : vector<3x128xf32> to vector<1x32xf32>
    %14 = vector.extract_strided_slice %12 {offsets = [1, 0], sizes = [1, 32], strides = [1, 1]} : vector<3x128xf32> to vector<1x32xf32>
    %15 = vector.extract_strided_slice %12 {offsets = [2, 0], sizes = [1, 128], strides = [1, 1]} : vector<3x128xf32> to vector<1x128xf32>
    %16 = arith.truncf %9 : vector<256x128xf32> to vector<256x128xbf16>
    %c0_4 = arith.constant 0 : index
    %c0_5 = arith.constant 0 : index
    %c0_6 = arith.constant 0 : index
    %17 = vector.load %arg2[%c0_4, %c0_5, %c0_6] : memref<4x128x32xbf16, #tpu.memory_space<vmem>>, vector<1x128x32xbf16>
    %18 = vector.shape_cast %17 : vector<1x128x32xbf16> to vector<128x32xbf16>
    %cst_7 = arith.constant dense<0.000000e+00> : vector<256x32xf32>
    %19 = tpu.matmul %16, %18, %cst_7 {dimension_numbers = #tpu.dot_dimension_numbers<[1], [0], [0], [1], [0, 0, 1, 1], [], []>} : vector<256x128xbf16>, vector<128x32xbf16>, vector<256x32xf32> -> vector<256x32xf32>
    %20 = vector.broadcast %13 : vector<1x32xf32> to vector<256x32xf32>
    %21 = arith.addf %19, %20 : vector<256x32xf32>
    %cst_8 = arith.constant 0.00999999977 : f32
    %22 = vector.broadcast %cst_8 : f32 to vector<256x32xf32>
    %23 = arith.mulf %22, %21 : vector<256x32xf32>
    %24 = arith.maximumf %21, %23 : vector<256x32xf32>
    %25 = arith.truncf %24 : vector<256x32xf32> to vector<256x32xbf16>
    %c0_9 = arith.constant 0 : index
    %c0_10 = arith.constant 0 : index
    %c0_11 = arith.constant 0 : index
    %26 = vector.load %arg3[%c0_9, %c0_10, %c0_11] : memref<4x32x32xbf16, #tpu.memory_space<vmem>>, vector<1x32x32xbf16>
    %27 = vector.shape_cast %26 : vector<1x32x32xbf16> to vector<32x32xbf16>
    %cst_12 = arith.constant dense<0.000000e+00> : vector<256x32xf32>
    %28 = tpu.matmul %25, %27, %cst_12 {dimension_numbers = #tpu.dot_dimension_numbers<[1], [0], [0], [1], [0, 0, 1, 1], [], []>} : vector<256x32xbf16>, vector<32x32xbf16>, vector<256x32xf32> -> vector<256x32xf32>
    %29 = vector.broadcast %14 : vector<1x32xf32> to vector<256x32xf32>
    %30 = arith.addf %28, %29 : vector<256x32xf32>
    %cst_13 = arith.constant 0.00999999977 : f32
    %31 = vector.broadcast %cst_13 : f32 to vector<256x32xf32>
    %32 = arith.mulf %31, %30 : vector<256x32xf32>
    %33 = arith.maximumf %30, %32 : vector<256x32xf32>
    %34 = arith.truncf %33 : vector<256x32xf32> to vector<256x32xbf16>
    %c0_14 = arith.constant 0 : index
    %c0_15 = arith.constant 0 : index
    %c0_16 = arith.constant 0 : index
    %35 = vector.load %arg4[%c0_14, %c0_15, %c0_16] : memref<4x32x128xbf16, #tpu.memory_space<vmem>>, vector<1x32x128xbf16>
    %36 = vector.shape_cast %35 : vector<1x32x128xbf16> to vector<32x128xbf16>
    %cst_17 = arith.constant dense<0.000000e+00> : vector<256x128xf32>
    %37 = tpu.matmul %34, %36, %cst_17 {dimension_numbers = #tpu.dot_dimension_numbers<[1], [0], [0], [1], [0, 0, 1, 1], [], []>} : vector<256x32xbf16>, vector<32x128xbf16>, vector<256x128xf32> -> vector<256x128xf32>
    %38 = vector.broadcast %15 : vector<1x128xf32> to vector<256x128xf32>
    %39 = arith.addf %37, %38 : vector<256x128xf32>
    %40 = vector.broadcast %4 : vector<1x128xf32> to vector<256x128xf32>
    %41 = arith.mulf %39, %40 : vector<256x128xf32>
    %c120_i32 = arith.constant 120 : i32
    %42 = tpu.dynamic_rotate %39 by %c120_i32 dim 1 : vector<256x128xf32>, i32 -> vector<256x128xf32>
    %43 = vector.broadcast %4 : vector<1x128xf32> to vector<256x128xf32>
    %44 = arith.mulf %42, %43 : vector<256x128xf32>
    %45 = math.exp %41 : vector<256x128xf32>
    %46 = arith.mulf %9, %45 : vector<256x128xf32>
    %47 = arith.addf %46, %44 : vector<256x128xf32>
    %48 = arith.addf %10, %41 : vector<256x128xf32>
    %c1 = arith.constant 1 : index
    %c0_18 = arith.constant 0 : index
    %c0_19 = arith.constant 0 : index
    %49 = vector.load %arg5[%c1, %c0_18, %c0_19] : memref<4x3x128xf32, #tpu.memory_space<vmem>>, vector<1x3x128xf32>
    %50 = vector.shape_cast %49 : vector<1x3x128xf32> to vector<3x128xf32>
    %51 = vector.extract_strided_slice %50 {offsets = [0, 0], sizes = [1, 32], strides = [1, 1]} : vector<3x128xf32> to vector<1x32xf32>
    %52 = vector.extract_strided_slice %50 {offsets = [1, 0], sizes = [1, 32], strides = [1, 1]} : vector<3x128xf32> to vector<1x32xf32>
    %53 = vector.extract_strided_slice %50 {offsets = [2, 0], sizes = [1, 128], strides = [1, 1]} : vector<3x128xf32> to vector<1x128xf32>
    %54 = arith.truncf %47 : vector<256x128xf32> to vector<256x128xbf16>
    %c1_20 = arith.constant 1 : index
    %c0_21 = arith.constant 0 : index
    %c0_22 = arith.constant 0 : index
    %55 = vector.load %arg2[%c1_20, %c0_21, %c0_22] : memref<4x128x32xbf16, #tpu.memory_space<vmem>>, vector<1x128x32xbf16>
    %56 = vector.shape_cast %55 : vector<1x128x32xbf16> to vector<128x32xbf16>
    %cst_23 = arith.constant dense<0.000000e+00> : vector<256x32xf32>
    %57 = tpu.matmul %54, %56, %cst_23 {dimension_numbers = #tpu.dot_dimension_numbers<[1], [0], [0], [1], [0, 0, 1, 1], [], []>} : vector<256x128xbf16>, vector<128x32xbf16>, vector<256x32xf32> -> vector<256x32xf32>
    %58 = vector.broadcast %51 : vector<1x32xf32> to vector<256x32xf32>
    %59 = arith.addf %57, %58 : vector<256x32xf32>
    %cst_24 = arith.constant 0.00999999977 : f32
    %60 = vector.broadcast %cst_24 : f32 to vector<256x32xf32>
    %61 = arith.mulf %60, %59 : vector<256x32xf32>
    %62 = arith.maximumf %59, %61 : vector<256x32xf32>
    %63 = arith.truncf %62 : vector<256x32xf32> to vector<256x32xbf16>
    %c1_25 = arith.constant 1 : index
    %c0_26 = arith.constant 0 : index
    %c0_27 = arith.constant 0 : index
    %64 = vector.load %arg3[%c1_25, %c0_26, %c0_27] : memref<4x32x32xbf16, #tpu.memory_space<vmem>>, vector<1x32x32xbf16>
    %65 = vector.shape_cast %64 : vector<1x32x32xbf16> to vector<32x32xbf16>
    %cst_28 = arith.constant dense<0.000000e+00> : vector<256x32xf32>
    %66 = tpu.matmul %63, %65, %cst_28 {dimension_numbers = #tpu.dot_dimension_numbers<[1], [0], [0], [1], [0, 0, 1, 1], [], []>} : vector<256x32xbf16>, vector<32x32xbf16>, vector<256x32xf32> -> vector<256x32xf32>
    %67 = vector.broadcast %52 : vector<1x32xf32> to vector<256x32xf32>
    %68 = arith.addf %66, %67 : vector<256x32xf32>
    %cst_29 = arith.constant 0.00999999977 : f32
    %69 = vector.broadcast %cst_29 : f32 to vector<256x32xf32>
    %70 = arith.mulf %69, %68 : vector<256x32xf32>
    %71 = arith.maximumf %68, %70 : vector<256x32xf32>
    %72 = arith.truncf %71 : vector<256x32xf32> to vector<256x32xbf16>
    %c1_30 = arith.constant 1 : index
    %c0_31 = arith.constant 0 : index
    %c0_32 = arith.constant 0 : index
    %73 = vector.load %arg4[%c1_30, %c0_31, %c0_32] : memref<4x32x128xbf16, #tpu.memory_space<vmem>>, vector<1x32x128xbf16>
    %74 = vector.shape_cast %73 : vector<1x32x128xbf16> to vector<32x128xbf16>
    %cst_33 = arith.constant dense<0.000000e+00> : vector<256x128xf32>
    %75 = tpu.matmul %72, %74, %cst_33 {dimension_numbers = #tpu.dot_dimension_numbers<[1], [0], [0], [1], [0, 0, 1, 1], [], []>} : vector<256x32xbf16>, vector<32x128xbf16>, vector<256x128xf32> -> vector<256x128xf32>
    %76 = vector.broadcast %53 : vector<1x128xf32> to vector<256x128xf32>
    %77 = arith.addf %75, %76 : vector<256x128xf32>
    %78 = vector.broadcast %4 : vector<1x128xf32> to vector<256x128xf32>
    %79 = arith.mulf %77, %78 : vector<256x128xf32>
    %c120_i32_34 = arith.constant 120 : i32
    %80 = tpu.dynamic_rotate %77 by %c120_i32_34 dim 1 : vector<256x128xf32>, i32 -> vector<256x128xf32>
    %81 = vector.broadcast %4 : vector<1x128xf32> to vector<256x128xf32>
    %82 = arith.mulf %80, %81 : vector<256x128xf32>
    %83 = math.exp %79 : vector<256x128xf32>
    %84 = arith.mulf %47, %83 : vector<256x128xf32>
    %85 = arith.addf %84, %82 : vector<256x128xf32>
    %86 = arith.addf %48, %79 : vector<256x128xf32>
    %c2 = arith.constant 2 : index
    %c0_35 = arith.constant 0 : index
    %c0_36 = arith.constant 0 : index
    %87 = vector.load %arg5[%c2, %c0_35, %c0_36] : memref<4x3x128xf32, #tpu.memory_space<vmem>>, vector<1x3x128xf32>
    %88 = vector.shape_cast %87 : vector<1x3x128xf32> to vector<3x128xf32>
    %89 = vector.extract_strided_slice %88 {offsets = [0, 0], sizes = [1, 32], strides = [1, 1]} : vector<3x128xf32> to vector<1x32xf32>
    %90 = vector.extract_strided_slice %88 {offsets = [1, 0], sizes = [1, 32], strides = [1, 1]} : vector<3x128xf32> to vector<1x32xf32>
    %91 = vector.extract_strided_slice %88 {offsets = [2, 0], sizes = [1, 128], strides = [1, 1]} : vector<3x128xf32> to vector<1x128xf32>
    %92 = arith.truncf %85 : vector<256x128xf32> to vector<256x128xbf16>
    %c2_37 = arith.constant 2 : index
    %c0_38 = arith.constant 0 : index
    %c0_39 = arith.constant 0 : index
    %93 = vector.load %arg2[%c2_37, %c0_38, %c0_39] : memref<4x128x32xbf16, #tpu.memory_space<vmem>>, vector<1x128x32xbf16>
    %94 = vector.shape_cast %93 : vector<1x128x32xbf16> to vector<128x32xbf16>
    %cst_40 = arith.constant dense<0.000000e+00> : vector<256x32xf32>
    %95 = tpu.matmul %92, %94, %cst_40 {dimension_numbers = #tpu.dot_dimension_numbers<[1], [0], [0], [1], [0, 0, 1, 1], [], []>} : vector<256x128xbf16>, vector<128x32xbf16>, vector<256x32xf32> -> vector<256x32xf32>
    %96 = vector.broadcast %89 : vector<1x32xf32> to vector<256x32xf32>
    %97 = arith.addf %95, %96 : vector<256x32xf32>
    %cst_41 = arith.constant 0.00999999977 : f32
    %98 = vector.broadcast %cst_41 : f32 to vector<256x32xf32>
    %99 = arith.mulf %98, %97 : vector<256x32xf32>
    %100 = arith.maximumf %97, %99 : vector<256x32xf32>
    %101 = arith.truncf %100 : vector<256x32xf32> to vector<256x32xbf16>
    %c2_42 = arith.constant 2 : index
    %c0_43 = arith.constant 0 : index
    %c0_44 = arith.constant 0 : index
    %102 = vector.load %arg3[%c2_42, %c0_43, %c0_44] : memref<4x32x32xbf16, #tpu.memory_space<vmem>>, vector<1x32x32xbf16>
    %103 = vector.shape_cast %102 : vector<1x32x32xbf16> to vector<32x32xbf16>
    %cst_45 = arith.constant dense<0.000000e+00> : vector<256x32xf32>
    %104 = tpu.matmul %101, %103, %cst_45 {dimension_numbers = #tpu.dot_dimension_numbers<[1], [0], [0], [1], [0, 0, 1, 1], [], []>} : vector<256x32xbf16>, vector<32x32xbf16>, vector<256x32xf32> -> vector<256x32xf32>
    %105 = vector.broadcast %90 : vector<1x32xf32> to vector<256x32xf32>
    %106 = arith.addf %104, %105 : vector<256x32xf32>
    %cst_46 = arith.constant 0.00999999977 : f32
    %107 = vector.broadcast %cst_46 : f32 to vector<256x32xf32>
    %108 = arith.mulf %107, %106 : vector<256x32xf32>
    %109 = arith.maximumf %106, %108 : vector<256x32xf32>
    %110 = arith.truncf %109 : vector<256x32xf32> to vector<256x32xbf16>
    %c2_47 = arith.constant 2 : index
    %c0_48 = arith.constant 0 : index
    %c0_49 = arith.constant 0 : index
    %111 = vector.load %arg4[%c2_47, %c0_48, %c0_49] : memref<4x32x128xbf16, #tpu.memory_space<vmem>>, vector<1x32x128xbf16>
    %112 = vector.shape_cast %111 : vector<1x32x128xbf16> to vector<32x128xbf16>
    %cst_50 = arith.constant dense<0.000000e+00> : vector<256x128xf32>
    %113 = tpu.matmul %110, %112, %cst_50 {dimension_numbers = #tpu.dot_dimension_numbers<[1], [0], [0], [1], [0, 0, 1, 1], [], []>} : vector<256x32xbf16>, vector<32x128xbf16>, vector<256x128xf32> -> vector<256x128xf32>
    %114 = vector.broadcast %91 : vector<1x128xf32> to vector<256x128xf32>
    %115 = arith.addf %113, %114 : vector<256x128xf32>
    %116 = vector.broadcast %4 : vector<1x128xf32> to vector<256x128xf32>
    %117 = arith.mulf %115, %116 : vector<256x128xf32>
    %c120_i32_51 = arith.constant 120 : i32
    %118 = tpu.dynamic_rotate %115 by %c120_i32_51 dim 1 : vector<256x128xf32>, i32 -> vector<256x128xf32>
    %119 = vector.broadcast %4 : vector<1x128xf32> to vector<256x128xf32>
    %120 = arith.mulf %118, %119 : vector<256x128xf32>
    %121 = math.exp %117 : vector<256x128xf32>
    %122 = arith.mulf %85, %121 : vector<256x128xf32>
    %123 = arith.addf %122, %120 : vector<256x128xf32>
    %124 = arith.addf %86, %117 : vector<256x128xf32>
    %c3 = arith.constant 3 : index
    %c0_52 = arith.constant 0 : index
    %c0_53 = arith.constant 0 : index
    %125 = vector.load %arg5[%c3, %c0_52, %c0_53] : memref<4x3x128xf32, #tpu.memory_space<vmem>>, vector<1x3x128xf32>
    %126 = vector.shape_cast %125 : vector<1x3x128xf32> to vector<3x128xf32>
    %127 = vector.extract_strided_slice %126 {offsets = [0, 0], sizes = [1, 32], strides = [1, 1]} : vector<3x128xf32> to vector<1x32xf32>
    %128 = vector.extract_strided_slice %126 {offsets = [1, 0], sizes = [1, 32], strides = [1, 1]} : vector<3x128xf32> to vector<1x32xf32>
    %129 = vector.extract_strided_slice %126 {offsets = [2, 0], sizes = [1, 128], strides = [1, 1]} : vector<3x128xf32> to vector<1x128xf32>
    %130 = arith.truncf %123 : vector<256x128xf32> to vector<256x128xbf16>
    %c3_54 = arith.constant 3 : index
    %c0_55 = arith.constant 0 : index
    %c0_56 = arith.constant 0 : index
    %131 = vector.load %arg2[%c3_54, %c0_55, %c0_56] : memref<4x128x32xbf16, #tpu.memory_space<vmem>>, vector<1x128x32xbf16>
    %132 = vector.shape_cast %131 : vector<1x128x32xbf16> to vector<128x32xbf16>
    %cst_57 = arith.constant dense<0.000000e+00> : vector<256x32xf32>
    %133 = tpu.matmul %130, %132, %cst_57 {dimension_numbers = #tpu.dot_dimension_numbers<[1], [0], [0], [1], [0, 0, 1, 1], [], []>} : vector<256x128xbf16>, vector<128x32xbf16>, vector<256x32xf32> -> vector<256x32xf32>
    %134 = vector.broadcast %127 : vector<1x32xf32> to vector<256x32xf32>
    %135 = arith.addf %133, %134 : vector<256x32xf32>
    %cst_58 = arith.constant 0.00999999977 : f32
    %136 = vector.broadcast %cst_58 : f32 to vector<256x32xf32>
    %137 = arith.mulf %136, %135 : vector<256x32xf32>
    %138 = arith.maximumf %135, %137 : vector<256x32xf32>
    %139 = arith.truncf %138 : vector<256x32xf32> to vector<256x32xbf16>
    %c3_59 = arith.constant 3 : index
    %c0_60 = arith.constant 0 : index
    %c0_61 = arith.constant 0 : index
    %140 = vector.load %arg3[%c3_59, %c0_60, %c0_61] : memref<4x32x32xbf16, #tpu.memory_space<vmem>>, vector<1x32x32xbf16>
    %141 = vector.shape_cast %140 : vector<1x32x32xbf16> to vector<32x32xbf16>
    %cst_62 = arith.constant dense<0.000000e+00> : vector<256x32xf32>
    %142 = tpu.matmul %139, %141, %cst_62 {dimension_numbers = #tpu.dot_dimension_numbers<[1], [0], [0], [1], [0, 0, 1, 1], [], []>} : vector<256x32xbf16>, vector<32x32xbf16>, vector<256x32xf32> -> vector<256x32xf32>
    %143 = vector.broadcast %128 : vector<1x32xf32> to vector<256x32xf32>
    %144 = arith.addf %142, %143 : vector<256x32xf32>
    %cst_63 = arith.constant 0.00999999977 : f32
    %145 = vector.broadcast %cst_63 : f32 to vector<256x32xf32>
    %146 = arith.mulf %145, %144 : vector<256x32xf32>
    %147 = arith.maximumf %144, %146 : vector<256x32xf32>
    %148 = arith.truncf %147 : vector<256x32xf32> to vector<256x32xbf16>
    %c3_64 = arith.constant 3 : index
    %c0_65 = arith.constant 0 : index
    %c0_66 = arith.constant 0 : index
    %149 = vector.load %arg4[%c3_64, %c0_65, %c0_66] : memref<4x32x128xbf16, #tpu.memory_space<vmem>>, vector<1x32x128xbf16>
    %150 = vector.shape_cast %149 : vector<1x32x128xbf16> to vector<32x128xbf16>
    %cst_67 = arith.constant dense<0.000000e+00> : vector<256x128xf32>
    %151 = tpu.matmul %148, %150, %cst_67 {dimension_numbers = #tpu.dot_dimension_numbers<[1], [0], [0], [1], [0, 0, 1, 1], [], []>} : vector<256x32xbf16>, vector<32x128xbf16>, vector<256x128xf32> -> vector<256x128xf32>
    %152 = vector.broadcast %129 : vector<1x128xf32> to vector<256x128xf32>
    %153 = arith.addf %151, %152 : vector<256x128xf32>
    %154 = vector.broadcast %4 : vector<1x128xf32> to vector<256x128xf32>
    %155 = arith.mulf %153, %154 : vector<256x128xf32>
    %c120_i32_68 = arith.constant 120 : i32
    %156 = tpu.dynamic_rotate %153 by %c120_i32_68 dim 1 : vector<256x128xf32>, i32 -> vector<256x128xf32>
    %157 = vector.broadcast %4 : vector<1x128xf32> to vector<256x128xf32>
    %158 = arith.mulf %156, %157 : vector<256x128xf32>
    %159 = math.exp %155 : vector<256x128xf32>
    %160 = arith.mulf %123, %159 : vector<256x128xf32>
    %161 = arith.addf %160, %158 : vector<256x128xf32>
    %162 = arith.addf %124, %155 : vector<256x128xf32>
    %cst_69 = arith.constant dense<0.000000e+00> : vector<256xf32>
    %163 = vector.multi_reduction <add>, %162, %cst_69 [1] : vector<256x128xf32> to vector<256xf32>
    %164 = vector.shape_cast %163 : vector<256xf32> to vector<256x1xf32>
    %165 = vector.broadcast %164 : vector<256x1xf32> to vector<256x128xf32>
    %166 = vector.broadcast %8 : vector<1x128xf32> to vector<256x128xf32>
    %167 = arith.mulf %165, %166 : vector<256x128xf32>
    %168 = arith.addf %161, %167 : vector<256x128xf32>
    %c0_70 = arith.constant 0 : index
    %c0_71 = arith.constant 0 : index
    %169 = vector.load %arg6[%c0_70, %c0_71] : memref<256x128xf32, #tpu.memory_space<vmem>>, vector<256x128xf32>
    tpu.vector_store %arg6[%c0_70, %c0_71], %168 {strides = array<i32>} : memref<256x128xf32, #tpu.memory_space<vmem>>, vector<256x128xf32>,
    return
  }
  func.func @transform_0(%arg0: i32) -> (i32, i32) {
    %c0_i32 = arith.constant 0 : i32
    %c0_i32_0 = arith.constant 0 : i32
    return %arg0, %c0_i32 : i32, i32
  }
  func.func @transform_1(%arg0: i32) -> (i32, i32, i32) {
    %c0_i32 = arith.constant 0 : i32
    %c0_i32_0 = arith.constant 0 : i32
    %c0_i32_1 = arith.constant 0 : i32
    %c0_i32_2 = arith.constant 0 : i32
    return %c0_i32, %c0_i32_0, %c0_i32_1 : i32, i32, i32
  }
  func.func @transform_2(%arg0: i32) -> (i32, i32, i32) {
    %c0_i32 = arith.constant 0 : i32
    %c0_i32_0 = arith.constant 0 : i32
    %c0_i32_1 = arith.constant 0 : i32
    %c0_i32_2 = arith.constant 0 : i32
    return %c0_i32, %c0_i32_0, %c0_i32_1 : i32, i32, i32
  }
  func.func @transform_3(%arg0: i32) -> (i32, i32, i32) {
    %c0_i32 = arith.constant 0 : i32
    %c0_i32_0 = arith.constant 0 : i32
    %c0_i32_1 = arith.constant 0 : i32
    %c0_i32_2 = arith.constant 0 : i32
    return %c0_i32, %c0_i32_0, %c0_i32_1 : i32, i32, i32
  }
  func.func @transform_4(%arg0: i32) -> (i32, i32, i32) {
    %c0_i32 = arith.constant 0 : i32
    %c0_i32_0 = arith.constant 0 : i32
    %c0_i32_1 = arith.constant 0 : i32
    %c0_i32_2 = arith.constant 0 : i32
    return %c0_i32, %c0_i32_0, %c0_i32_1 : i32, i32, i32
  }
  func.func @transform_5(%arg0: i32) -> (i32, i32) {
    %c0_i32 = arith.constant 0 : i32
    %c0_i32_0 = arith.constant 0 : i32
    return %arg0, %c0_i32 : i32, i32
  }
}

</mosaic_0001>

<llo_original>
// kernel: conditional_realnvp_forward.1
$region0: #{conditional_realnvp_forward.1}
  #allocation0 [shape = 'u32[]', space=smem, size = 0x4, offset = 0x4, fixed_abs, tag = 'smem constant byte address 0x4 - core index']
  #allocation1 [shape = 'u32[144,128]{1,0:T(1,128)}', space=vmem, size = 0x12000, scoped, tag = 'internal scratch']
  %s0 = inlined_call_operand.vmem [shape: f32[256,128], index: 0, kind: input, shape index: {}]
  %s1 = inlined_call_operand.vmem [shape: bf16[4,128,32], index: 1, kind: input, shape index: {}]
  %s2 = inlined_call_operand.vmem [shape: bf16[4,32,32], index: 2, kind: input, shape index: {}]
  %s3 = inlined_call_operand.vmem [shape: bf16[4,32,128], index: 3, kind: input, shape index: {}]
  %s4 = inlined_call_operand.vmem [shape: f32[4,3,128], index: 4, kind: input, shape index: {}]
  %s5 = inlined_call_operand.vmem [shape: f32[256,128], index: 5, kind: output, shape index: {}]
  %s6 = sld [smem:[#allocation0]]
  $region30: #{conditional_realnvp_forward.1} parent=0
    _
  %s8 = ssub.s32 1, %s6
  %s9 = scalar_select 0, %s8, %s6
  // Predicated region
  $region2: #{conditional_realnvp_forward.1} parent=0 // pred_check
    _
  $region3: #{conditional_realnvp_forward.1} parent=0 // pred_check_branch
    %11 = sbr.rel (0) target = $region5
  $region4: #{conditional_realnvp_forward.1} parent=0 // pred_region
    _
  $region5: #{conditional_realnvp_forward.1} parent=0 // pred_fallthru
    _
  // Predicated region
  $region6: #{conditional_realnvp_forward.1} parent=0 // pred_check
    _
  $region7: #{conditional_realnvp_forward.1} parent=0 // pred_check_branch
    %13 = sbr.rel (0) target = $region9
  $region8: #{conditional_realnvp_forward.1} parent=0 // pred_region
    _
  $region9: #{conditional_realnvp_forward.1} parent=0 // pred_fallthru
    _
  // Predicated region
  $region10: #{conditional_realnvp_forward.1} parent=0 // pred_check
    _
  $region11: #{conditional_realnvp_forward.1} parent=0 // pred_check_branch
    %15 = sbr.rel (0) target = $region13
  $region12: #{conditional_realnvp_forward.1} parent=0 // pred_region
    _
  $region13: #{conditional_realnvp_forward.1} parent=0 // pred_fallthru
    _
  // Predicated region
  $region14: #{conditional_realnvp_forward.1} parent=0 // pred_check
    _
  $region15: #{conditional_realnvp_forward.1} parent=0 // pred_check_branch
    %17 = sbr.rel (0) target = $region17
  $region16: #{conditional_realnvp_forward.1} parent=0 // pred_region
    _
  $region17: #{conditional_realnvp_forward.1} parent=0 // pred_fallthru
    _
  // Predicated region
  $region18: #{conditional_realnvp_forward.1} parent=0 // pred_check
    _
  $region19: #{conditional_realnvp_forward.1} parent=0 // pred_check_branch
    %19 = sbr.rel (0) target = $region21
  $region20: #{conditional_realnvp_forward.1} parent=0 // pred_region
    _
  $region21: #{conditional_realnvp_forward.1} parent=0 // pred_fallthru
    _
  %v21 = vlaneseq
  %v22 = vand.u32 %v21, 127
  %vm23 = vcmp.lt.s32.totalorder %v22, 8
  %v24 = vsel %vm23, 1, 0
  %v25 = vcvt.s32.f32 %v24
  %vm26 = vcmp.eq.s32.totalorder %v22, 24
  %v27 = vsel %vm26, 1, 0
  %v28 = vcvt.s32.f32 %v27
  %v29 = vld [vmem:[%s0] sm:$0xff]
  %v30 = vld [vmem:[%s0 + $0x8] sm:$0xff]
  %v31 = vld [vmem:[%s0 + $0x10] sm:$0xff]
  %v32 = vld [vmem:[%s0 + $0x18] sm:$0xff]
  %v33 = vld [vmem:[%s0 + $0x20] sm:$0xff]
  %v34 = vld [vmem:[%s0 + $0x28] sm:$0xff]
  %v35 = vld [vmem:[%s0 + $0x30] sm:$0xff]
  %v36 = vld [vmem:[%s0 + $0x38] sm:$0xff]
  %v37 = vld [vmem:[%s0 + $0x40] sm:$0xff]
  %v38 = vld [vmem:[%s0 + $0x48] sm:$0xff]
  %v39 = vld [vmem:[%s0 + $0x50] sm:$0xff]
  %v40 = vld [vmem:[%s0 + $0x58] sm:$0xff]
  %v41 = vld [vmem:[%s0 + $0x60] sm:$0xff]
  %v42 = vld [vmem:[%s0 + $0x68] sm:$0xff]
  %v43 = vld [vmem:[%s0 + $0x70] sm:$0xff]
  %v44 = vld [vmem:[%s0 + $0x78] sm:$0xff]
  %v45 = vld [vmem:[%s0 + $0x80] sm:$0xff]
  %v46 = vld [vmem:[%s0 + $0x88] sm:$0xff]
  %v47 = vld [vmem:[%s0 + $0x90] sm:$0xff]
  %v48 = vld [vmem:[%s0 + $0x98] sm:$0xff]
  %v49 = vld [vmem:[%s0 + $0xa0] sm:$0xff]
  %v50 = vld [vmem:[%s0 + $0xa8] sm:$0xff]
  %v51 = vld [vmem:[%s0 + $0xb0] sm:$0xff]
  %v52 = vld [vmem:[%s0 + $0xb8] sm:$0xff]
  %v53 = vld [vmem:[%s0 + $0xc0] sm:$0xff]
  %v54 = vld [vmem:[%s0 + $0xc8] sm:$0xff]
  %v55 = vld [vmem:[%s0 + $0xd0] sm:$0xff]
  %v56 = vld [vmem:[%s0 + $0xd8] sm:$0xff]
  %v57 = vld [vmem:[%s0 + $0xe0] sm:$0xff]
  %v58 = vld [vmem:[%s0 + $0xe8] sm:$0xff]
  %v59 = vld [vmem:[%s0 + $0xf0] sm:$0xff]
  %v60 = vld [vmem:[%s0 + $0xf8] sm:$0xff]
  %v61 = vld [vmem:[%s4] sm:$0x7]
  %v62 = vpack.c.bf16 %v30, %v29
  %v63 = vpack.c.bf16 %v32, %v31
  %v64 = vpack.c.bf16 %v34, %v33
  %v65 = vpack.c.bf16 %v36, %v35
  %v66 = vpack.c.bf16 %v38, %v37
  %v67 = vpack.c.bf16 %v40, %v39
  %v68 = vpack.c.bf16 %v42, %v41
  %v69 = vpack.c.bf16 %v44, %v43
  %v70 = vpack.c.bf16 %v46, %v45
  %v71 = vpack.c.bf16 %v48, %v47
  %v72 = vpack.c.bf16 %v50, %v49
  %v73 = vpack.c.bf16 %v52, %v51
  %v74 = vpack.c.bf16 %v54, %v53
  %v75 = vpack.c.bf16 %v56, %v55
  %v76 = vpack.c.bf16 %v58, %v57
  %v77 = vpack.c.bf16 %v60, %v59
  %v78 = vld [vmem:[%s1] sm:$0xf]
  %v79 = vld [vmem:[%s1 + $0x4] sm:$0xf]
  %v80 = vld [vmem:[%s1 + $0x8] sm:$0xf]
  %v81 = vld [vmem:[%s1 + $0xc] sm:$0xf]
  %v82 = vld [vmem:[%s1 + $0x10] sm:$0xf]
  %v83 = vld [vmem:[%s1 + $0x14] sm:$0xf]
  %v84 = vld [vmem:[%s1 + $0x18] sm:$0xf]
  %v85 = vld [vmem:[%s1 + $0x1c] sm:$0xf]
  %v86 = vld [vmem:[%s1 + $0x20] sm:$0xf]
  %v87 = vld [vmem:[%s1 + $0x24] sm:$0xf]
  %v88 = vld [vmem:[%s1 + $0x28] sm:$0xf]
  %v89 = vld [vmem:[%s1 + $0x2c] sm:$0xf]
  %v90 = vld [vmem:[%s1 + $0x30] sm:$0xf]
  %v91 = vld [vmem:[%s1 + $0x34] sm:$0xf]
  %v92 = vld [vmem:[%s1 + $0x38] sm:$0xf]
  %v93 = vld [vmem:[%s1 + $0x3c] sm:$0xf]
  %v94 = vlaneseq
  %v95 = vshrl.u32 %v94, 7
  %v96 = vsub.s32 0, %v95
  %v97 = vrot.slane %v61, %v96
  %v114 = vunpack.c.l.b16 %v78
  %v115 = vunpack.c.l.b16 %v79
  %v116 = vunpack.c.l.b16 %v80
  %v117 = vunpack.c.l.b16 %v81
  %v118 = vunpack.c.l.b16 %v82
  %v119 = vunpack.c.l.b16 %v83
  %v120 = vunpack.c.l.b16 %v84
  %v121 = vunpack.c.l.b16 %v85
  %v122 = vunpack.c.l.b16 %v86
  %v123 = vunpack.c.l.b16 %v87
  %v124 = vunpack.c.l.b16 %v88
  %v125 = vunpack.c.l.b16 %v89
  %v126 = vunpack.c.l.b16 %v90
  %v127 = vunpack.c.l.b16 %v91
  %v128 = vunpack.c.l.b16 %v92
  %v129 = vunpack.c.l.b16 %v93
  %v130 = vpack.c.b16 %v115, %v114
  %v131 = vpack.c.b16 %v117, %v116
  %v132 = vpack.c.b16 %v119, %v118
  %v133 = vpack.c.b16 %v121, %v120
  %v134 = vpack.c.b16 %v123, %v122
  %v135 = vpack.c.b16 %v125, %v124
  %v136 = vpack.c.b16 %v127, %v126
  %v137 = vpack.c.b16 %v129, %v128
  %146 = vmatprep.subr.bf16.mxu0 0
  %147 = vmatpush1.bf16.msra.mxu0 %v130
  %148 = vmatprep.subr.bf16.mxu0 0
  %149 = vmatpush1.bf16.msra.mxu0 %v131
  %150 = vmatprep.subr.bf16.mxu0 0
  %151 = vmatpush1.bf16.msra.mxu0 %v132
  %152 = vmatprep.subr.bf16.mxu0 0
  %153 = vmatpush1.bf16.msra.mxu0 %v133
  %154 = vmatprep.subr.bf16.mxu0 0
  %155 = vmatpush1.bf16.msra.mxu0 %v134
  %156 = vmatprep.subr.bf16.mxu0 0
  %157 = vmatpush1.bf16.msra.mxu0 %v135
  %158 = vmatprep.subr.bf16.mxu0 0
  %159 = vmatpush1.bf16.msra.mxu0 %v136
  %160 = vmatprep.subr.bf16.mxu0 0
  %161 = vmatpush1.bf16.msra.mxu0 %v137
  %162 = vmatprep.subr.bf16.mxu0 0
  %163 = vmatpush1.bf16.msra.mxu0 0
  %164 = vmatprep.subr.bf16.mxu0 0
  %165 = vmatpush1.bf16.msra.mxu0 0
  %166 = vmatprep.subr.bf16.mxu0 0
  %167 = vmatpush1.bf16.msra.mxu0 0
  %168 = vmatprep.subr.bf16.mxu0 0
  %169 = vmatpush1.bf16.msra.mxu0 0
  %170 = vmatprep.subr.bf16.mxu0 0
  %171 = vmatpush1.bf16.msra.mxu0 0
  %172 = vmatprep.subr.bf16.mxu0 0
  %173 = vmatpush1.bf16.msra.mxu0 0
  %174 = vmatprep.subr.bf16.mxu0 0
  %175 = vmatpush1.bf16.msra.mxu0 0
  %176 = vmatprep.subr.bf16.mxu0 0
  %177 = vmatpush1.bf16.msra.mxu0 0
  %178 = vmatprep.mubr.bf16.mxu0 0
  %179 = vmatmul.mubr.bf16.gmra.mrb[0].mxu0 %v62
  %v180 = vpop.f32.mrb[0].mxu0
  %v181 = vadd.f32 %v97, %v180
  %v182 = vpop.f32.mrb[0].mxu0
  %v183 = vpop.f32.mrb[0].mxu0
  %v184 = vadd.f32 %v97, %v183
  %v185 = vpop.f32.mrb[0].mxu0
  %186 = vmatprep.mubr.bf16.mxu0 0
  %187 = vmatmul.mubr.bf16.gmra.mrb[0].mxu0 %v63
  %v188 = vpop.f32.mrb[0].mxu0
  %v189 = vadd.f32 %v97, %v188
  %v190 = vpop.f32.mrb[0].mxu0
  %v191 = vpop.f32.mrb[0].mxu0
  %v192 = vadd.f32 %v97, %v191
  %v193 = vpop.f32.mrb[0].mxu0
  %194 = vmatprep.mubr.bf16.mxu0 0
  %195 = vmatmul.mubr.bf16.gmra.mrb[0].mxu0 %v64
  %v196 = vpop.f32.mrb[0].mxu0
  %v197 = vadd.f32 %v97, %v196
  %v198 = vpop.f32.mrb[0].mxu0
  %v199 = vpop.f32.mrb[0].mxu0
  %v200 = vadd.f32 %v97, %v199
  %v201 = vpop.f32.mrb[0].mxu0
  %202 = vmatprep.mubr.bf16.mxu0 0
  %203 = vmatmul.mubr.bf16.gmra.mrb[0].mxu0 %v65
  %v204 = vpop.f32.mrb[0].mxu0
  %v205 = vadd.f32 %v97, %v204
  %v206 = vpop.f32.mrb[0].mxu0
  %v207 = vpop.f32.mrb[0].mxu0
  %v208 = vadd.f32 %v97, %v207
  %v209 = vpop.f32.mrb[0].mxu0
  %210 = vmatprep.mubr.bf16.mxu0 0
  %211 = vmatmul.mubr.bf16.gmra.mrb[0].mxu0 %v66
  %v212 = vpop.f32.mrb[0].mxu0
  %v213 = vadd.f32 %v97, %v212
  %v214 = vpop.f32.mrb[0].mxu0
  %v215 = vpop.f32.mrb[0].mxu0
  %v216 = vadd.f32 %v97, %v215
  %v217 = vpop.f32.mrb[0].mxu0
  %218 = vmatprep.mubr.bf16.mxu0 0
  %219 = vmatmul.mubr.bf16.gmra.mrb[0].mxu0 %v67
  %v220 = vpop.f32.mrb[0].mxu0
  %v221 = vadd.f32 %v97, %v220
  %v222 = vpop.f32.mrb[0].mxu0
  %v223 = vpop.f32.mrb[0].mxu0
  %v224 = vadd.f32 %v97, %v223
  %v225 = vpop.f32.mrb[0].mxu0
  %226 = vmatprep.mubr.bf16.mxu0 0
  %227 = vmatmul.mubr.bf16.gmra.mrb[0].mxu0 %v68
  %v228 = vpop.f32.mrb[0].mxu0
  %v229 = vadd.f32 %v97, %v228
  %v230 = vpop.f32.mrb[0].mxu0
  %v231 = vpop.f32.mrb[0].mxu0
  %v232 = vadd.f32 %v97, %v231
  %v233 = vpop.f32.mrb[0].mxu0
  %234 = vmatprep.mubr.bf16.mxu0 0
  %235 = vmatmul.mubr.bf16.gmra.mrb[0].mxu0 %v69
  %v236 = vpop.f32.mrb[0].mxu0
  %v237 = vadd.f32 %v97, %v236
  %v238 = vpop.f32.mrb[0].mxu0
  %v239 = vpop.f32.mrb[0].mxu0
  %v240 = vadd.f32 %v97, %v239
  %v241 = vpop.f32.mrb[0].mxu0
  %242 = vmatprep.mubr.bf16.mxu0 0
  %243 = vmatmul.mubr.bf16.gmra.mrb[0].mxu0 %v70
  %v244 = vpop.f32.mrb[0].mxu0
  %v245 = vadd.f32 %v97, %v244
  %v246 = vpop.f32.mrb[0].mxu0
  %v247 = vpop.f32.mrb[0].mxu0
  %v248 = vadd.f32 %v97, %v247
  %v249 = vpop.f32.mrb[0].mxu0
  %250 = vmatprep.mubr.bf16.mxu0 0
  %251 = vmatmul.mubr.bf16.gmra.mrb[0].mxu0 %v71
  %v252 = vpop.f32.mrb[0].mxu0
  %v253 = vadd.f32 %v97, %v252
  %v254 = vpop.f32.mrb[0].mxu0
  %v255 = vpop.f32.mrb[0].mxu0
  %v256 = vadd.f32 %v97, %v255
  %v257 = vpop.f32.mrb[0].mxu0
  %258 = vmatprep.mubr.bf16.mxu0 0
  %259 = vmatmul.mubr.bf16.gmra.mrb[0].mxu0 %v72
  %v260 = vpop.f32.mrb[0].mxu0
  %v261 = vadd.f32 %v97, %v260
  %v262 = vpop.f32.mrb[0].mxu0
  %v263 = vpop.f32.mrb[0].mxu0
  %v264 = vadd.f32 %v97, %v263
  %v265 = vpop.f32.mrb[0].mxu0
  %266 = vmatprep.mubr.bf16.mxu0 0
  %267 = vmatmul.mubr.bf16.gmra.mrb[0].mxu0 %v73
  %v268 = vpop.f32.mrb[0].mxu0
  %v269 = vadd.f32 %v97, %v268
  %v270 = vpop.f32.mrb[0].mxu0
  %v271 = vpop.f32.mrb[0].mxu0
  %v272 = vadd.f32 %v97, %v271
  %v273 = vpop.f32.mrb[0].mxu0
  %274 = vmatprep.mubr.bf16.mxu0 0
  %275 = vmatmul.mubr.bf16.gmra.mrb[0].mxu0 %v74
  %v276 = vpop.f32.mrb[0].mxu0
  %v277 = vadd.f32 %v97, %v276
  %v278 = vpop.f32.mrb[0].mxu0
  %v279 = vpop.f32.mrb[0].mxu0
  %v280 = vadd.f32 %v97, %v279
  %v281 = vpop.f32.mrb[0].mxu0
  %282 = vmatprep.mubr.bf16.mxu0 0
  %283 = vmatmul.mubr.bf16.gmra.mrb[0].mxu0 %v75
  %v284 = vpop.f32.mrb[0].mxu0
  %v285 = vadd.f32 %v97, %v284
  %v286 = vpop.f32.mrb[0].mxu0
  %v287 = vpop.f32.mrb[0].mxu0
  %v288 = vadd.f32 %v97, %v287
  %v289 = vpop.f32.mrb[0].mxu0
  %290 = vmatprep.mubr.bf16.mxu0 0
  %291 = vmatmul.mubr.bf16.gmra.mrb[0].mxu0 %v76
  %v292 = vpop.f32.mrb[0].mxu0
  %v293 = vadd.f32 %v97, %v292
  %v294 = vpop.f32.mrb[0].mxu0
  %v295 = vpop.f32.mrb[0].mxu0
  %v296 = vadd.f32 %v97, %v295
  %v297 = vpop.f32.mrb[0].mxu0
  %298 = vmatprep.mubr.bf16.mxu0 0
  %299 = vmatmul.mubr.bf16.gmra.mrb[0].mxu0 %v77
  %v300 = vpop.f32.mrb[0].mxu0
  %v301 = vadd.f32 %v97, %v300
  %v302 = vpop.f32.mrb[0].mxu0
  %v303 = vpop.f32.mrb[0].mxu0
  %v304 = vadd.f32 %v97, %v303
  %v305 = vpop.f32.mrb[0].mxu0
  %306 = vdwg.mxu0
  %v307 = vmul.f32 %v181, 0.01
  %v308 = vmul.f32 %v184, 0.01
  %v309 = vmul.f32 %v189, 0.01
  %v310 = vmul.f32 %v192, 0.01
  %v311 = vmul.f32 %v197, 0.01
  %v312 = vmul.f32 %v200, 0.01
  %v313 = vmul.f32 %v205, 0.01
  %v314 = vmul.f32 %v208, 0.01
  %v315 = vmul.f32 %v213, 0.01
  %v316 = vmul.f32 %v216, 0.01
  %v317 = vmul.f32 %v221, 0.01
  %v318 = vmul.f32 %v224, 0.01
  %v319 = vmul.f32 %v229, 0.01
  %v320 = vmul.f32 %v232, 0.01
  %v321 = vmul.f32 %v237, 0.01
  %v322 = vmul.f32 %v240, 0.01
  %v323 = vmul.f32 %v245, 0.01
  %v324 = vmul.f32 %v248, 0.01
  %v325 = vmul.f32 %v253, 0.01
  %v326 = vmul.f32 %v256, 0.01
  %v327 = vmul.f32 %v261, 0.01
  %v328 = vmul.f32 %v264, 0.01
  %v329 = vmul.f32 %v269, 0.01
  %v330 = vmul.f32 %v272, 0.01
  %v331 = vmul.f32 %v277, 0.01
  %v332 = vmul.f32 %v280, 0.01
  %v333 = vmul.f32 %v285, 0.01
  %v334 = vmul.f32 %v288, 0.01
  %v335 = vmul.f32 %v293, 0.01
  %v336 = vmul.f32 %v296, 0.01
  %v337 = vmul.f32 %v301, 0.01
  %v338 = vmul.f32 %v304, 0.01
  %v339 = vmax.f32 %v181, %v307
  %v340 = vmax.f32 %v184, %v308
  %v341 = vmax.f32 %v189, %v309
  %v342 = vmax.f32 %v192, %v310
  %v343 = vmax.f32 %v197, %v311
  %v344 = vmax.f32 %v200, %v312
  %v345 = vmax.f32 %v205, %v313
  %v346 = vmax.f32 %v208, %v314
  %v347 = vmax.f32 %v213, %v315
  %v348 = vmax.f32 %v216, %v316
  %v349 = vmax.f32 %v221, %v317
  %v350 = vmax.f32 %v224, %v318
  %v351 = vmax.f32 %v229, %v319
  %v352 = vmax.f32 %v232, %v320
  %v353 = vmax.f32 %v237, %v321
  %v354 = vmax.f32 %v240, %v322
  %v355 = vmax.f32 %v245, %v323
  %v356 = vmax.f32 %v248, %v324
  %v357 = vmax.f32 %v253, %v325
  %v358 = vmax.f32 %v256, %v326
  %v359 = vmax.f32 %v261, %v327
  %v360 = vmax.f32 %v264, %v328
  %v361 = vmax.f32 %v269, %v329
  %v362 = vmax.f32 %v272, %v330
  %v363 = vmax.f32 %v277, %v331
  %v364 = vmax.f32 %v280, %v332
  %v365 = vmax.f32 %v285, %v333
  %v366 = vmax.f32 %v288, %v334
  %v367 = vmax.f32 %v293, %v335
  %v368 = vmax.f32 %v296, %v336
  %v369 = vmax.f32 %v301, %v337
  %v370 = vmax.f32 %v304, %v338
  %v371 = vpack.c.bf16 %v340, %v339
  %v372 = vpack.c.bf16 %v342, %v341
  %v373 = vpack.c.bf16 %v344, %v343
  %v374 = vpack.c.bf16 %v346, %v345
  %v375 = vpack.c.bf16 %v348, %v347
  %v376 = vpack.c.bf16 %v350, %v349
  %v377 = vpack.c.bf16 %v352, %v351
  %v378 = vpack.c.bf16 %v354, %v353
  %v379 = vpack.c.bf16 %v356, %v355
  %v380 = vpack.c.bf16 %v358, %v357
  %v381 = vpack.c.bf16 %v360, %v359
  %v382 = vpack.c.bf16 %v362, %v361
  %v383 = vpack.c.bf16 %v364, %v363
  %v384 = vpack.c.bf16 %v366, %v365
  %v385 = vpack.c.bf16 %v368, %v367
  %v386 = vpack.c.bf16 %v370, %v369
  %v387 = vld [vmem:[%s2] sm:$0xf]
  %v388 = vld [vmem:[%s2 + $0x4] sm:$0xf]
  %v389 = vld [vmem:[%s2 + $0x8] sm:$0xf]
  %v390 = vld [vmem:[%s2 + $0xc] sm:$0xf]
  %v391 = vlaneseq
  %v392 = vshrl.u32 %v391, 7
  %v393 = vsub.s32 1, %v392
  %v394 = vrot.slane %v61, %v393
  %v399 = vunpack.c.l.b16 %v387
  %v400 = vunpack.c.l.b16 %v388
  %v401 = vunpack.c.l.b16 %v389
  %v402 = vunpack.c.l.b16 %v390
  %v403 = vpack.c.b16 %v400, %v399
  %v404 = vpack.c.b16 %v402, %v401
  %vm407 = vcmask 261120
  %v409 = vsel %vm407, %v371, 0
  %v412 = vsel %vm407, %v372, 0
  %v415 = vsel %vm407, %v373, 0
  %v418 = vsel %vm407, %v374, 0
  %v421 = vsel %vm407, %v375, 0
  %v424 = vsel %vm407, %v376, 0
  %v427 = vsel %vm407, %v377, 0
  %v430 = vsel %vm407, %v378, 0
  %v433 = vsel %vm407, %v379, 0
  %v436 = vsel %vm407, %v380, 0
  %v439 = vsel %vm407, %v381, 0
  %v442 = vsel %vm407, %v382, 0
  %v445 = vsel %vm407, %v383, 0
  %v448 = vsel %vm407, %v384, 0
  %v451 = vsel %vm407, %v385, 0
  %v454 = vsel %vm407, %v386, 0
  %456 = vmatprep.subr.bf16.mxu0 0
  %457 = vmatpush1.bf16.msra.mxu0 %v403
  %458 = vmatprep.subr.bf16.mxu0 0
  %459 = vmatpush1.bf16.msra.mxu0 %v404
  %460 = vmatprep.subr.bf16.mxu0 0
  %461 = vmatpush1.bf16.msra.mxu0 0
  %462 = vmatprep.subr.bf16.mxu0 0
  %463 = vmatpush1.bf16.msra.mxu0 0
  %464 = vmatprep.subr.bf16.mxu0 0
  %465 = vmatpush1.bf16.msra.mxu0 0
  %466 = vmatprep.subr.bf16.mxu0 0
  %467 = vmatpush1.bf16.msra.mxu0 0
  %468 = vmatprep.subr.bf16.mxu0 0
  %469 = vmatpush1.bf16.msra.mxu0 0
  %470 = vmatprep.subr.bf16.mxu0 0
  %471 = vmatpush1.bf16.msra.mxu0 0
  %472 = vmatprep.subr.bf16.mxu0 0
  %473 = vmatpush1.bf16.msra.mxu0 0
  %474 = vmatprep.subr.bf16.mxu0 0
  %475 = vmatpush1.bf16.msra.mxu0 0
  %476 = vmatprep.subr.bf16.mxu0 0
  %477 = vmatpush1.bf16.msra.mxu0 0
  %478 = vmatprep.subr.bf16.mxu0 0
  %479 = vmatpush1.bf16.msra.mxu0 0
  %480 = vmatprep.subr.bf16.mxu0 0
  %481 = vmatpush1.bf16.msra.mxu0 0
  %482 = vmatprep.subr.bf16.mxu0 0
  %483 = vmatpush1.bf16.msra.mxu0 0
  %484 = vmatprep.subr.bf16.mxu0 0
  %485 = vmatpush1.bf16.msra.mxu0 0
  %486 = vmatprep.subr.bf16.mxu0 0
  %487 = vmatpush1.bf16.msra.mxu0 0
  %488 = vmatprep.mubr.bf16.mxu0 0
  %489 = vmatmul.mubr.bf16.gmra.mrb[0].mxu0 %v409
  %v490 = vpop.f32.mrb[0].mxu0
  %v491 = vadd.f32 %v394, %v490
  %v492 = vpop.f32.mrb[0].mxu0
  %v493 = vpop.f32.mrb[0].mxu0
  %v494 = vadd.f32 %v394, %v493
  %v495 = vpop.f32.mrb[0].mxu0
  %496 = vmatprep.mubr.bf16.mxu0 0
  %497 = vmatmul.mubr.bf16.gmra.mrb[0].mxu0 %v412
  %v498 = vpop.f32.mrb[0].mxu0
  %v499 = vadd.f32 %v394, %v498
  %v500 = vpop.f32.mrb[0].mxu0
  %v501 = vpop.f32.mrb[0].mxu0
  %v502 = vadd.f32 %v394, %v501
  %v503 = vpop.f32.mrb[0].mxu0
  %504 = vmatprep.mubr.bf16.mxu0 0
  %505 = vmatmul.mubr.bf16.gmra.mrb[0].mxu0 %v415
  %v506 = vpop.f32.mrb[0].mxu0
  %v507 = vadd.f32 %v394, %v506
  %v508 = vpop.f32.mrb[0].mxu0
  %v509 = vpop.f32.mrb[0].mxu0
  %v510 = vadd.f32 %v394, %v509
  %v511 = vpop.f32.mrb[0].mxu0
  %512 = vmatprep.mubr.bf16.mxu0 0
  %513 = vmatmul.mubr.bf16.gmra.mrb[0].mxu0 %v418
  %v514 = vpop.f32.mrb[0].mxu0
  %v515 = vadd.f32 %v394, %v514
  %v516 = vpop.f32.mrb[0].mxu0
  %v517 = vpop.f32.mrb[0].mxu0
  %v518 = vadd.f32 %v394, %v517
  %v519 = vpop.f32.mrb[0].mxu0
  %520 = vmatprep.mubr.bf16.mxu0 0
  %521 = vmatmul.mubr.bf16.gmra.mrb[0].mxu0 %v421
  %v522 = vpop.f32.mrb[0].mxu0
  %v523 = vadd.f32 %v394, %v522
  %v524 = vpop.f32.mrb[0].mxu0
  %v525 = vpop.f32.mrb[0].mxu0
  %v526 = vadd.f32 %v394, %v525
  %v527 = vpop.f32.mrb[0].mxu0
  %528 = vmatprep.mubr.bf16.mxu0 0
  %529 = vmatmul.mubr.bf16.gmra.mrb[0].mxu0 %v424
  %v530 = vpop.f32.mrb[0].mxu0
  %v531 = vadd.f32 %v394, %v530
  %v532 = vpop.f32.mrb[0].mxu0
  %v533 = vpop.f32.mrb[0].mxu0
  %v534 = vadd.f32 %v394, %v533
  %v535 = vpop.f32.mrb[0].mxu0
  %536 = vmatprep.mubr.bf16.mxu0 0
  %537 = vmatmul.mubr.bf16.gmra.mrb[0].mxu0 %v427
  %v538 = vpop.f32.mrb[0].mxu0
  %v539 = vadd.f32 %v394, %v538
  %v540 = vpop.f32.mrb[0].mxu0
  %v541 = vpop.f32.mrb[0].mxu0
  %v542 = vadd.f32 %v394, %v541
  %v543 = vpop.f32.mrb[0].mxu0
  %544 = vmatprep.mubr.bf16.mxu0 0
  %545 = vmatmul.mubr.bf16.gmra.mrb[0].mxu0 %v430
  %v546 = vpop.f32.mrb[0].mxu0
  %v547 = vadd.f32 %v394, %v546
  %v548 = vpop.f32.mrb[0].mxu0
  %v549 = vpop.f32.mrb[0].mxu0
  %v550 = vadd.f32 %v394, %v549
  %v551 = vpop.f32.mrb[0].mxu0
  %552 = vmatprep.mubr.bf16.mxu0 0
  %553 = vmatmul.mubr.bf16.gmra.mrb[0].mxu0 %v433
  %v554 = vpop.f32.mrb[0].mxu0
  %v555 = vadd.f32 %v394, %v554
  %v556 = vpop.f32.mrb[0].mxu0
  %v557 = vpop.f32.mrb[0].mxu0
  %v558 = vadd.f32 %v394, %v557
  %v559 = vpop.f32.mrb[0].mxu0
  %560 = vmatprep.mubr.bf16.mxu0 0
  %561 = vmatmul.mubr.bf16.gmra.mrb[0].mxu0 %v436
  %v562 = vpop.f32.mrb[0].mxu0
  %v563 = vadd.f32 %v394, %v562
  %v564 = vpop.f32.mrb[0].mxu0
  %v565 = vpop.f32.mrb[0].mxu0
  %v566 = vadd.f32 %v394, %v565
  %v567 = vpop.f32.mrb[0].mxu0
  %568 = vmatprep.mubr.bf16.mxu0 0
  %569 = vmatmul.mubr.bf16.gmra.mrb[0].mxu0 %v439
  %v570 = vpop.f32.mrb[0].mxu0
  %v571 = vadd.f32 %v394, %v570
  %v572 = vpop.f32.mrb[0].mxu0
  %v573 = vpop.f32.mrb[0].mxu0
  %v574 = vadd.f32 %v394, %v573
  %v575 = vpop.f32.mrb[0].mxu0
  %576 = vmatprep.mubr.bf16.mxu0 0
  %577 = vmatmul.mubr.bf16.gmra.mrb[0].mxu0 %v442
  %v578 = vpop.f32.mrb[0].mxu0
  %v579 = vadd.f32 %v394, %v578
  %v580 = vpop.f32.mrb[0].mxu0
  %v581 = vpop.f32.mrb[0].mxu0
  %v582 = vadd.f32 %v394, %v581
  %v583 = vpop.f32.mrb[0].mxu0
  %584 = vmatprep.mubr.bf16.mxu0 0
  %585 = vmatmul.mubr.bf16.gmra.mrb[0].mxu0 %v445
  %v586 = vpop.f32.mrb[0].mxu0
  %v587 = vadd.f32 %v394, %v586
  %v588 = vpop.f32.mrb[0].mxu0
  %v589 = vpop.f32.mrb[0].mxu0
  %v590 = vadd.f32 %v394, %v589
  %v591 = vpop.f32.mrb[0].mxu0
  %592 = vmatprep.mubr.bf16.mxu0 0
  %593 = vmatmul.mubr.bf16.gmra.mrb[0].mxu0 %v448
  %v594 = vpop.f32.mrb[0].mxu0
  %v595 = vadd.f32 %v394, %v594
  %v596 = vpop.f32.mrb[0].mxu0
  %v597 = vpop.f32.mrb[0].mxu0
  %v598 = vadd.f32 %v394, %v597
  %v599 = vpop.f32.mrb[0].mxu0
  %600 = vmatprep.mubr.bf16.mxu0 0
  %601 = vmatmul.mubr.bf16.gmra.mrb[0].mxu0 %v451
  %v602 = vpop.f32.mrb[0].mxu0
  %v603 = vadd.f32 %v394, %v602
  %v604 = vpop.f32.mrb[0].mxu0
  %v605 = vpop.f32.mrb[0].mxu0
  %v606 = vadd.f32 %v394, %v605
  %v607 = vpop.f32.mrb[0].mxu0
  %608 = vmatprep.mubr.bf16.mxu0 0
  %609 = vmatmul.mubr.bf16.gmra.mrb[0].mxu0 %v454
  %v610 = vpop.f32.mrb[0].mxu0
  %v611 = vadd.f32 %v394, %v610
  %v612 = vpop.f32.mrb[0].mxu0
  %v613 = vpop.f32.mrb[0].mxu0
  %v614 = vadd.f32 %v394, %v613
  %v615 = vpop.f32.mrb[0].mxu0
  %616 = vdwg.mxu0
  %v617 = vmul.f32 %v491, 0.01
  %v618 = vmul.f32 %v494, 0.01
  %v619 = vmul.f32 %v499, 0.01
  %v620 = vmul.f32 %v502, 0.01
  %v621 = vmul.f32 %v507, 0.01
  %v622 = vmul.f32 %v510, 0.01
  %v623 = vmul.f32 %v515, 0.01
  %v624 = vmul.f32 %v518, 0.01
  %v625 = vmul.f32 %v523, 0.01
  %v626 = vmul.f32 %v526, 0.01
  %v627 = vmul.f32 %v531, 0.01
  %v628 = vmul.f32 %v534, 0.01
  %v629 = vmul.f32 %v539, 0.01
  %v630 = vmul.f32 %v542, 0.01
  %v631 = vmul.f32 %v547, 0.01
  %v632 = vmul.f32 %v550, 0.01
  %v633 = vmul.f32 %v555, 0.01
  %v634 = vmul.f32 %v558, 0.01
  %v635 = vmul.f32 %v563, 0.01
  %v636 = vmul.f32 %v566, 0.01
  %v637 = vmul.f32 %v571, 0.01
  %v638 = vmul.f32 %v574, 0.01
  %v639 = vmul.f32 %v579, 0.01
  %v640 = vmul.f32 %v582, 0.01
  %v641 = vmul.f32 %v587, 0.01
  %v642 = vmul.f32 %v590, 0.01
  %v643 = vmul.f32 %v595, 0.01
  %v644 = vmul.f32 %v598, 0.01
  %v645 = vmul.f32 %v603, 0.01
  %v646 = vmul.f32 %v606, 0.01
  %v647 = vmul.f32 %v611, 0.01
  %v648 = vmul.f32 %v614, 0.01
  %v649 = vmax.f32 %v491, %v617
  %v650 = vmax.f32 %v494, %v618
  %v651 = vmax.f32 %v499, %v619
  %v652 = vmax.f32 %v502, %v620
  %v653 = vmax.f32 %v507, %v621
  %v654 = vmax.f32 %v510, %v622
  %v655 = vmax.f32 %v515, %v623
  %v656 = vmax.f32 %v518, %v624
  %v657 = vmax.f32 %v523, %v625
  %v658 = vmax.f32 %v526, %v626
  %v659 = vmax.f32 %v531, %v627
  %v660 = vmax.f32 %v534, %v628
  %v661 = vmax.f32 %v539, %v629
  %v662 = vmax.f32 %v542, %v630
  %v663 = vmax.f32 %v547, %v631
  %v664 = vmax.f32 %v550, %v632
  %v665 = vmax.f32 %v555, %v633
  %v666 = vmax.f32 %v558, %v634
  %v667 = vmax.f32 %v563, %v635
  %v668 = vmax.f32 %v566, %v636
  %v669 = vmax.f32 %v571, %v637
  %v670 = vmax.f32 %v574, %v638
  %v671 = vmax.f32 %v579, %v639
  %v672 = vmax.f32 %v582, %v640
  %v673 = vmax.f32 %v587, %v641
  %v674 = vmax.f32 %v590, %v642
  %v675 = vmax.f32 %v595, %v643
  %v676 = vmax.f32 %v598, %v644
  %v677 = vmax.f32 %v603, %v645
  %v678 = vmax.f32 %v606, %v646
  %v679 = vmax.f32 %v611, %v647
  %v680 = vmax.f32 %v614, %v648
  %v681 = vpack.c.bf16 %v650, %v649
  %v682 = vpack.c.bf16 %v652, %v651
  %v683 = vpack.c.bf16 %v654, %v653
  %v684 = vpack.c.bf16 %v656, %v655
  %v685 = vpack.c.bf16 %v658, %v657
  %v686 = vpack.c.bf16 %v660, %v659
  %v687 = vpack.c.bf16 %v662, %v661
  %v688 = vpack.c.bf16 %v664, %v663
  %v689 = vpack.c.bf16 %v666, %v665
  %v690 = vpack.c.bf16 %v668, %v667
  %v691 = vpack.c.bf16 %v670, %v669
  %v692 = vpack.c.bf16 %v672, %v671
  %v693 = vpack.c.bf16 %v674, %v673
  %v694 = vpack.c.bf16 %v676, %v675
  %v695 = vpack.c.bf16 %v678, %v677
  %v696 = vpack.c.bf16 %v680, %v679
  %v697 = vld [vmem:[%s3] sm:$0xf]
  %v698 = vld [vmem:[%s3 + $0x4] sm:$0xf]
  %v699 = vld [vmem:[%s3 + $0x8] sm:$0xf]
  %v700 = vld [vmem:[%s3 + $0xc] sm:$0xf]
  %v701 = vlaneseq
  %v702 = vshrl.u32 %v701, 7
  %v703 = vsub.s32 2, %v702
  %v704 = vrot.slane %v61, %v703
  %v709 = vunpack.c.l.b16 %v697
  %v710 = vunpack.c.l.b16 %v698
  %v711 = vunpack.c.l.b16 %v699
  %v712 = vunpack.c.l.b16 %v700
  %v713 = vpack.c.b16 %v710, %v709
  %v714 = vpack.c.b16 %v712, %v711
  %v718 = vsel %vm407, %v681, 0
  %v721 = vsel %vm407, %v682, 0
  %v724 = vsel %vm407, %v683, 0
  %v727 = vsel %vm407, %v684, 0
  %v730 = vsel %vm407, %v685, 0
  %v733 = vsel %vm407, %v686, 0
  %v736 = vsel %vm407, %v687, 0
  %v739 = vsel %vm407, %v688, 0
  %v742 = vsel %vm407, %v689, 0
  %v745 = vsel %vm407, %v690, 0
  %v748 = vsel %vm407, %v691, 0
  %v751 = vsel %vm407, %v692, 0
  %v754 = vsel %vm407, %v693, 0
  %v757 = vsel %vm407, %v694, 0
  %v760 = vsel %vm407, %v695, 0
  %v763 = vsel %vm407, %v696, 0
  %765 = vmatprep.subr.bf16.mxu0 0
  %766 = vmatpush1.bf16.msra.mxu0 %v713
  %767 = vmatprep.subr.bf16.mxu0 0
  %768 = vmatpush1.bf16.msra.mxu0 %v714
  %769 = vmatprep.subr.bf16.mxu0 0
  %770 = vmatpush1.bf16.msra.mxu0 0
  %771 = vmatprep.subr.bf16.mxu0 0
  %772 = vmatpush1.bf16.msra.mxu0 0
  %773 = vmatprep.subr.bf16.mxu0 0
  %774 = vmatpush1.bf16.msra.mxu0 0
  %775 = vmatprep.subr.bf16.mxu0 0
  %776 = vmatpush1.bf16.msra.mxu0 0
  %777 = vmatprep.subr.bf16.mxu0 0
  %778 = vmatpush1.bf16.msra.mxu0 0
  %779 = vmatprep.subr.bf16.mxu0 0
  %780 = vmatpush1.bf16.msra.mxu0 0
  %781 = vmatprep.subr.bf16.mxu0 0
  %782 = vmatpush1.bf16.msra.mxu0 0
  %783 = vmatprep.subr.bf16.mxu0 0
  %784 = vmatpush1.bf16.msra.mxu0 0
  %785 = vmatprep.subr.bf16.mxu0 0
  %786 = vmatpush1.bf16.msra.mxu0 0
  %787 = vmatprep.subr.bf16.mxu0 0
  %788 = vmatpush1.bf16.msra.mxu0 0
  %789 = vmatprep.subr.bf16.mxu0 0
  %790 = vmatpush1.bf16.msra.mxu0 0
  %791 = vmatprep.subr.bf16.mxu0 0
  %792 = vmatpush1.bf16.msra.mxu0 0
  %793 = vmatprep.subr.bf16.mxu0 0
  %794 = vmatpush1.bf16.msra.mxu0 0
  %795 = vmatprep.subr.bf16.mxu0 0
  %796 = vmatpush1.bf16.msra.mxu0 0
  %797 = vmatprep.mubr.bf16.mxu0 0
  %798 = vmatmul.mubr.bf16.gmra.mrb[0].mxu0 %v718
  %v799 = vpop.f32.mrb[0].mxu0
  %v800 = vadd.f32 %v704, %v799
  %v801 = vpop.f32.mrb[0].mxu0
  %v802 = vpop.f32.mrb[0].mxu0
  %v803 = vadd.f32 %v704, %v802
  %v804 = vpop.f32.mrb[0].mxu0
  %805 = vmatprep.mubr.bf16.mxu0 0
  %806 = vmatmul.mubr.bf16.gmra.mrb[0].mxu0 %v721
  %v807 = vpop.f32.mrb[0].mxu0
  %v808 = vadd.f32 %v704, %v807
  %v809 = vpop.f32.mrb[0].mxu0
  %v810 = vpop.f32.mrb[0].mxu0
  %v811 = vadd.f32 %v704, %v810
  %v812 = vpop.f32.mrb[0].mxu0
  %813 = vmatprep.mubr.bf16.mxu0 0
  %814 = vmatmul.mubr.bf16.gmra.mrb[0].mxu0 %v724
  %v815 = vpop.f32.mrb[0].mxu0
  %v816 = vadd.f32 %v704, %v815
  %v817 = vpop.f32.mrb[0].mxu0
  %v818 = vpop.f32.mrb[0].mxu0
  %v819 = vadd.f32 %v704, %v818
  %v820 = vpop.f32.mrb[0].mxu0
  %821 = vmatprep.mubr.bf16.mxu0 0
  %822 = vmatmul.mubr.bf16.gmra.mrb[0].mxu0 %v727
  %v823 = vpop.f32.mrb[0].mxu0
  %v824 = vadd.f32 %v704, %v823
  %v825 = vpop.f32.mrb[0].mxu0
  %v826 = vpop.f32.mrb[0].mxu0
  %v827 = vadd.f32 %v704, %v826
  %v828 = vpop.f32.mrb[0].mxu0
  %829 = vmatprep.mubr.bf16.mxu0 0
  %830 = vmatmul.mubr.bf16.gmra.mrb[0].mxu0 %v730
  %v831 = vpop.f32.mrb[0].mxu0
  %v832 = vadd.f32 %v704, %v831
  %v833 = vpop.f32.mrb[0].mxu0
  %v834 = vpop.f32.mrb[0].mxu0
  %v835 = vadd.f32 %v704, %v834
  %v836 = vpop.f32.mrb[0].mxu0
  %837 = vmatprep.mubr.bf16.mxu0 0
  %838 = vmatmul.mubr.bf16.gmra.mrb[0].mxu0 %v733
  %v839 = vpop.f32.mrb[0].mxu0
  %v840 = vadd.f32 %v704, %v839
  %v841 = vpop.f32.mrb[0].mxu0
  %v842 = vpop.f32.mrb[0].mxu0
  %v843 = vadd.f32 %v704, %v842
  %v844 = vpop.f32.mrb[0].mxu0
  %845 = vmatprep.mubr.bf16.mxu0 0
  %846 = vmatmul.mubr.bf16.gmra.mrb[0].mxu0 %v736
  %v847 = vpop.f32.mrb[0].mxu0
  %v848 = vadd.f32 %v704, %v847
  %v849 = vpop.f32.mrb[0].mxu0
  %v850 = vpop.f32.mrb[0].mxu0
  %v851 = vadd.f32 %v704, %v850
  %v852 = vpop.f32.mrb[0].mxu0
  %853 = vmatprep.mubr.bf16.mxu0 0
  %854 = vmatmul.mubr.bf16.gmra.mrb[0].mxu0 %v739
  %v855 = vpop.f32.mrb[0].mxu0
  %v856 = vadd.f32 %v704, %v855
  %v857 = vpop.f32.mrb[0].mxu0
  %v858 = vpop.f32.mrb[0].mxu0
  %v859 = vadd.f32 %v704, %v858
  %v860 = vpop.f32.mrb[0].mxu0
  %861 = vmatprep.mubr.bf16.mxu0 0
  %862 = vmatmul.mubr.bf16.gmra.mrb[0].mxu0 %v742
  %v863 = vpop.f32.mrb[0].mxu0
  %v864 = vadd.f32 %v704, %v863
  %v865 = vpop.f32.mrb[0].mxu0
  %v866 = vpop.f32.mrb[0].mxu0
  %v867 = vadd.f32 %v704, %v866
  %v868 = vpop.f32.mrb[0].mxu0
  %869 = vmatprep.mubr.bf16.mxu0 0
  %870 = vmatmul.mubr.bf16.gmra.mrb[0].mxu0 %v745
  %v871 = vpop.f32.mrb[0].mxu0
  %v872 = vadd.f32 %v704, %v871
  %v873 = vpop.f32.mrb[0].mxu0
  %v874 = vpop.f32.mrb[0].mxu0
  %v875 = vadd.f32 %v704, %v874
  %v876 = vpop.f32.mrb[0].mxu0
  %877 = vmatprep.mubr.bf16.mxu0 0
  %878 = vmatmul.mubr.bf16.gmra.mrb[0].mxu0 %v748
  %v879 = vpop.f32.mrb[0].mxu0
  %v880 = vadd.f32 %v704, %v879
  %v881 = vpop.f32.mrb[0].mxu0
  %v882 = vpop.f32.mrb[0].mxu0
  %v883 = vadd.f32 %v704, %v882
  %v884 = vpop.f32.mrb[0].mxu0
  %885 = vmatprep.mubr.bf16.mxu0 0
  %886 = vmatmul.mubr.bf16.gmra.mrb[0].mxu0 %v751
  %v887 = vpop.f32.mrb[0].mxu0
  %v888 = vadd.f32 %v704, %v887
  %v889 = vpop.f32.mrb[0].mxu0
  %v890 = vpop.f32.mrb[0].mxu0
  %v891 = vadd.f32 %v704, %v890
  %v892 = vpop.f32.mrb[0].mxu0
  %893 = vmatprep.mubr.bf16.mxu0 0
  %894 = vmatmul.mubr.bf16.gmra.mrb[0].mxu0 %v754
  %v895 = vpop.f32.mrb[0].mxu0
  %v896 = vadd.f32 %v704, %v895
  %v897 = vpop.f32.mrb[0].mxu0
  %v898 = vpop.f32.mrb[0].mxu0
  %v899 = vadd.f32 %v704, %v898
  %v900 = vpop.f32.mrb[0].mxu0
  %901 = vmatprep.mubr.bf16.mxu0 0
  %902 = vmatmul.mubr.bf16.gmra.mrb[0].mxu0 %v757
  %v903 = vpop.f32.mrb[0].mxu0
  %v904 = vadd.f32 %v704, %v903
  %v905 = vpop.f32.mrb[0].mxu0
  %v906 = vpop.f32.mrb[0].mxu0
  %v907 = vadd.f32 %v704, %v906
  %v908 = vpop.f32.mrb[0].mxu0
  %909 = vmatprep.mubr.bf16.mxu0 0
  %910 = vmatmul.mubr.bf16.gmra.mrb[0].mxu0 %v760
  %v911 = vpop.f32.mrb[0].mxu0
  %v912 = vadd.f32 %v704, %v911
  %v913 = vpop.f32.mrb[0].mxu0
  %v914 = vpop.f32.mrb[0].mxu0
  %v915 = vadd.f32 %v704, %v914
  %v916 = vpop.f32.mrb[0].mxu0
  %917 = vmatprep.mubr.bf16.mxu0 0
  %918 = vmatmul.mubr.bf16.gmra.mrb[0].mxu0 %v763
  %v919 = vpop.f32.mrb[0].mxu0
  %v920 = vadd.f32 %v704, %v919
  %v921 = vpop.f32.mrb[0].mxu0
  %v922 = vpop.f32.mrb[0].mxu0
  %v923 = vadd.f32 %v704, %v922
  %v924 = vpop.f32.mrb[0].mxu0
  %925 = vdwg.mxu0
  %v926 = vmul.f32 %v800, %v25
  %v927 = vmul.f32 %v803, %v25
  %v928 = vmul.f32 %v808, %v25
  %v929 = vmul.f32 %v811, %v25
  %v930 = vmul.f32 %v816, %v25
  %v931 = vmul.f32 %v819, %v25
  %v932 = vmul.f32 %v824, %v25
  %v933 = vmul.f32 %v827, %v25
  %v934 = vmul.f32 %v832, %v25
  %v935 = vmul.f32 %v835, %v25
  %v936 = vmul.f32 %v840, %v25
  %v937 = vmul.f32 %v843, %v25
  %v938 = vmul.f32 %v848, %v25
  %v939 = vmul.f32 %v851, %v25
  %v940 = vmul.f32 %v856, %v25
  %v941 = vmul.f32 %v859, %v25
  %v942 = vmul.f32 %v864, %v25
  %v943 = vmul.f32 %v867, %v25
  %v944 = vmul.f32 %v872, %v25
  %v945 = vmul.f32 %v875, %v25
  %v946 = vmul.f32 %v880, %v25
  %v947 = vmul.f32 %v883, %v25
  %v948 = vmul.f32 %v888, %v25
  %v949 = vmul.f32 %v891, %v25
  %v950 = vmul.f32 %v896, %v25
  %v951 = vmul.f32 %v899, %v25
  %v952 = vmul.f32 %v904, %v25
  %v953 = vmul.f32 %v907, %v25
  %v954 = vmul.f32 %v912, %v25
  %v955 = vmul.f32 %v915, %v25
  %v956 = vmul.f32 %v920, %v25
  %v957 = vmul.f32 %v923, %v25
  %958 = vrot.lane.b32.xlu0 %v800, 120
  %v959 = vpop.permute.xlu0 %958
  %960 = vrot.lane.b32.xlu0 %v803, 120
  %v961 = vpop.permute.xlu0 %960
  %962 = vrot.lane.b32.xlu0 %v808, 120
  %v963 = vpop.permute.xlu0 %962
  %964 = vrot.lane.b32.xlu0 %v811, 120
  %v965 = vpop.permute.xlu0 %964
  %966 = vrot.lane.b32.xlu0 %v816, 120
  %v967 = vpop.permute.xlu0 %966
  %968 = vrot.lane.b32.xlu0 %v819, 120
  %v969 = vpop.permute.xlu0 %968
  %970 = vrot.lane.b32.xlu0 %v824, 120
  %v971 = vpop.permute.xlu0 %970
  %972 = vrot.lane.b32.xlu0 %v827, 120
  %v973 = vpop.permute.xlu0 %972
  %974 = vrot.lane.b32.xlu0 %v832, 120
  %v975 = vpop.permute.xlu0 %974
  %976 = vrot.lane.b32.xlu0 %v835, 120
  %v977 = vpop.permute.xlu0 %976
  %978 = vrot.lane.b32.xlu0 %v840, 120
  %v979 = vpop.permute.xlu0 %978
  %980 = vrot.lane.b32.xlu0 %v843, 120
  %v981 = vpop.permute.xlu0 %980
  %982 = vrot.lane.b32.xlu0 %v848, 120
  %v983 = vpop.permute.xlu0 %982
  %984 = vrot.lane.b32.xlu0 %v851, 120
  %v985 = vpop.permute.xlu0 %984
  %986 = vrot.lane.b32.xlu0 %v856, 120
  %v987 = vpop.permute.xlu0 %986
  %988 = vrot.lane.b32.xlu0 %v859, 120
  %v989 = vpop.permute.xlu0 %988
  %990 = vrot.lane.b32.xlu0 %v864, 120
  %v991 = vpop.permute.xlu0 %990
  %992 = vrot.lane.b32.xlu0 %v867, 120
  %v993 = vpop.permute.xlu0 %992
  %994 = vrot.lane.b32.xlu0 %v872, 120
  %v995 = vpop.permute.xlu0 %994
  %996 = vrot.lane.b32.xlu0 %v875, 120
  %v997 = vpop.permute.xlu0 %996
  %998 = vrot.lane.b32.xlu0 %v880, 120
  %v999 = vpop.permute.xlu0 %998
  %1000 = vrot.lane.b32.xlu0 %v883, 120
  %v1001 = vpop.permute.xlu0 %1000
  %1002 = vrot.lane.b32.xlu0 %v888, 120
  %v1003 = vpop.permute.xlu0 %1002
  %1004 = vrot.lane.b32.xlu0 %v891, 120
  %v1005 = vpop.permute.xlu0 %1004
  %1006 = vrot.lane.b32.xlu0 %v896, 120
  %v1007 = vpop.permute.xlu0 %1006
  %1008 = vrot.lane.b32.xlu0 %v899, 120
  %v1009 = vpop.permute.xlu0 %1008
  %1010 = vrot.lane.b32.xlu0 %v904, 120
  %v1011 = vpop.permute.xlu0 %1010
  %1012 = vrot.lane.b32.xlu0 %v907, 120
  %v1013 = vpop.permute.xlu0 %1012
  %1014 = vrot.lane.b32.xlu0 %v912, 120
  %v1015 = vpop.permute.xlu0 %1014
  %1016 = vrot.lane.b32.xlu0 %v915, 120
  %v1017 = vpop.permute.xlu0 %1016
  %1018 = vrot.lane.b32.xlu0 %v920, 120
  %v1019 = vpop.permute.xlu0 %1018
  %1020 = vrot.lane.b32.xlu0 %v923, 120
  %v1021 = vpop.permute.xlu0 %1020
  %v1022 = vmul.f32 %v959, %v25
  %v1023 = vmul.f32 %v961, %v25
  %v1024 = vmul.f32 %v963, %v25
  %v1025 = vmul.f32 %v965, %v25
  %v1026 = vmul.f32 %v967, %v25
  %v1027 = vmul.f32 %v969, %v25
  %v1028 = vmul.f32 %v971, %v25
  %v1029 = vmul.f32 %v973, %v25
  %v1030 = vmul.f32 %v975, %v25
  %v1031 = vmul.f32 %v977, %v25
  %v1032 = vmul.f32 %v979, %v25
  %v1033 = vmul.f32 %v981, %v25
  %v1034 = vmul.f32 %v983, %v25
  %v1035 = vmul.f32 %v985, %v25
  %v1036 = vmul.f32 %v987, %v25
  %v1037 = vmul.f32 %v989, %v25
  %v1038 = vmul.f32 %v991, %v25
  %v1039 = vmul.f32 %v993, %v25
  %v1040 = vmul.f32 %v995, %v25
  %v1041 = vmul.f32 %v997, %v25
  %v1042 = vmul.f32 %v999, %v25
  %v1043 = vmul.f32 %v1001, %v25
  %v1044 = vmul.f32 %v1003, %v25
  %v1045 = vmul.f32 %v1005, %v25
  %v1046 = vmul.f32 %v1007, %v25
  %v1047 = vmul.f32 %v1009, %v25
  %v1048 = vmul.f32 %v1011, %v25
  %v1049 = vmul.f32 %v1013, %v25
  %v1050 = vmul.f32 %v1015, %v25
  %v1051 = vmul.f32 %v1017, %v25
  %v1052 = vmul.f32 %v1019, %v25
  %v1053 = vmul.f32 %v1021, %v25
  %v1054 = vmul.f32 %v926, 1.442695
  %v1055 = vpow.pop %v1054
  %v1056 = vmul.f32 %v927, 1.442695
  %v1057 = vpow.pop %v1056
  %v1058 = vmul.f32 %v928, 1.442695
  %v1059 = vpow.pop %v1058
  %v1060 = vmul.f32 %v929, 1.442695
  %v1061 = vpow.pop %v1060
  %v1062 = vmul.f32 %v930, 1.442695
  %v1063 = vpow.pop %v1062
  %v1064 = vmul.f32 %v931, 1.442695
  %v1065 = vpow.pop %v1064
  %v1066 = vmul.f32 %v932, 1.442695
  %v1067 = vpow.pop %v1066
  %v1068 = vmul.f32 %v933, 1.442695
  %v1069 = vpow.pop %v1068
  %v1070 = vmul.f32 %v934, 1.442695
  %v1071 = vpow.pop %v1070
  %v1072 = vmul.f32 %v935, 1.442695
  %v1073 = vpow.pop %v1072
  %v1074 = vmul.f32 %v936, 1.442695
  %v1075 = vpow.pop %v1074
  %v1076 = vmul.f32 %v937, 1.442695
  %v1077 = vpow.pop %v1076
  %v1078 = vmul.f32 %v938, 1.442695
  %v1079 = vpow.pop %v1078
  %v1080 = vmul.f32 %v939, 1.442695
  %v1081 = vpow.pop %v1080
  %v1082 = vmul.f32 %v940, 1.442695
  %v1083 = vpow.pop %v1082
  %v1084 = vmul.f32 %v941, 1.442695
  %v1085 = vpow.pop %v1084
  %v1086 = vmul.f32 %v942, 1.442695
  %v1087 = vpow.pop %v1086
  %v1088 = vmul.f32 %v943, 1.442695
  %v1089 = vpow.pop %v1088
  %v1090 = vmul.f32 %v944, 1.442695
  %v1091 = vpow.pop %v1090
  %v1092 = vmul.f32 %v945, 1.442695
  %v1093 = vpow.pop %v1092
  %v1094 = vmul.f32 %v946, 1.442695
  %v1095 = vpow.pop %v1094
  %v1096 = vmul.f32 %v947, 1.442695
  %v1097 = vpow.pop %v1096
  %v1098 = vmul.f32 %v948, 1.442695
  %v1099 = vpow.pop %v1098
  %v1100 = vmul.f32 %v949, 1.442695
  %v1101 = vpow.pop %v1100
  %v1102 = vmul.f32 %v950, 1.442695
  %v1103 = vpow.pop %v1102
  %v1104 = vmul.f32 %v951, 1.442695
  %v1105 = vpow.pop %v1104
  %v1106 = vmul.f32 %v952, 1.442695
  %v1107 = vpow.pop %v1106
  %v1108 = vmul.f32 %v953, 1.442695
  %v1109 = vpow.pop %v1108
  %v1110 = vmul.f32 %v954, 1.442695
  %v1111 = vpow.pop %v1110
  %v1112 = vmul.f32 %v955, 1.442695
  %v1113 = vpow.pop %v1112
  %v1114 = vmul.f32 %v956, 1.442695
  %v1115 = vpow.pop %v1114
  %v1116 = vmul.f32 %v957, 1.442695
  %v1117 = vpow.pop %v1116
  %v1118 = vmul.f32 %v29, %v1055
  %v1119 = vmul.f32 %v30, %v1057
  %v1120 = vmul.f32 %v31, %v1059
  %v1121 = vmul.f32 %v32, %v1061
  %v1122 = vmul.f32 %v33, %v1063
  %v1123 = vmul.f32 %v34, %v1065
  %v1124 = vmul.f32 %v35, %v1067
  %v1125 = vmul.f32 %v36, %v1069
  %v1126 = vmul.f32 %v37, %v1071
  %v1127 = vmul.f32 %v38, %v1073
  %v1128 = vmul.f32 %v39, %v1075
  %v1129 = vmul.f32 %v40, %v1077
  %v1130 = vmul.f32 %v41, %v1079
  %v1131 = vmul.f32 %v42, %v1081
  %v1132 = vmul.f32 %v43, %v1083
  %v1133 = vmul.f32 %v44, %v1085
  %v1134 = vmul.f32 %v45, %v1087
  %v1135 = vmul.f32 %v46, %v1089
  %v1136 = vmul.f32 %v47, %v1091
  %v1137 = vmul.f32 %v48, %v1093
  %v1138 = vmul.f32 %v49, %v1095
  %v1139 = vmul.f32 %v50, %v1097
  %v1140 = vmul.f32 %v51, %v1099
  %v1141 = vmul.f32 %v52, %v1101
  %v1142 = vmul.f32 %v53, %v1103
  %v1143 = vmul.f32 %v54, %v1105
  %v1144 = vmul.f32 %v55, %v1107
  %v1145 = vmul.f32 %v56, %v1109
  %v1146 = vmul.f32 %v57, %v1111
  %v1147 = vmul.f32 %v58, %v1113
  %v1148 = vmul.f32 %v59, %v1115
  %v1149 = vmul.f32 %v60, %v1117
  %v1150 = vadd.f32 %v1118, %v1022
  %v1151 = vadd.f32 %v1119, %v1023
  %v1152 = vadd.f32 %v1120, %v1024
  %v1153 = vadd.f32 %v1121, %v1025
  %v1154 = vadd.f32 %v1122, %v1026
  %v1155 = vadd.f32 %v1123, %v1027
  %v1156 = vadd.f32 %v1124, %v1028
  %v1157 = vadd.f32 %v1125, %v1029
  %v1158 = vadd.f32 %v1126, %v1030
  %v1159 = vadd.f32 %v1127, %v1031
  %v1160 = vadd.f32 %v1128, %v1032
  %v1161 = vadd.f32 %v1129, %v1033
  %v1162 = vadd.f32 %v1130, %v1034
  %v1163 = vadd.f32 %v1131, %v1035
  %v1164 = vadd.f32 %v1132, %v1036
  %v1165 = vadd.f32 %v1133, %v1037
  %v1166 = vadd.f32 %v1134, %v1038
  %v1167 = vadd.f32 %v1135, %v1039
  %v1168 = vadd.f32 %v1136, %v1040
  %v1169 = vadd.f32 %v1137, %v1041
  %v1170 = vadd.f32 %v1138, %v1042
  %v1171 = vadd.f32 %v1139, %v1043
  %v1172 = vadd.f32 %v1140, %v1044
  %v1173 = vadd.f32 %v1141, %v1045
  %v1174 = vadd.f32 %v1142, %v1046
  %v1175 = vadd.f32 %v1143, %v1047
  %v1176 = vadd.f32 %v1144, %v1048
  %v1177 = vadd.f32 %v1145, %v1049
  %v1178 = vadd.f32 %v1146, %v1050
  %v1179 = vadd.f32 %v1147, %v1051
  %v1180 = vadd.f32 %v1148, %v1052
  %v1181 = vadd.f32 %v1149, %v1053
  %v1182 = vadd.f32 %v926, 0.0
  %v1183 = vadd.f32 %v927, 0.0
  %v1184 = vadd.f32 %v928, 0.0
  %v1185 = vadd.f32 %v929, 0.0
  %v1186 = vadd.f32 %v930, 0.0
  %v1187 = vadd.f32 %v931, 0.0
  %v1188 = vadd.f32 %v932, 0.0
  %v1189 = vadd.f32 %v933, 0.0
  %v1190 = vadd.f32 %v934, 0.0
  %v1191 = vadd.f32 %v935, 0.0
  %v1192 = vadd.f32 %v936, 0.0
  %v1193 = vadd.f32 %v937, 0.0
  %v1194 = vadd.f32 %v938, 0.0
  %v1195 = vadd.f32 %v939, 0.0
  %v1196 = vadd.f32 %v940, 0.0
  %v1197 = vadd.f32 %v941, 0.0
  %v1198 = vadd.f32 %v942, 0.0
  %v1199 = vadd.f32 %v943, 0.0
  %v1200 = vadd.f32 %v944, 0.0
  %v1201 = vadd.f32 %v945, 0.0
  %v1202 = vadd.f32 %v946, 0.0
  %v1203 = vadd.f32 %v947, 0.0
  %v1204 = vadd.f32 %v948, 0.0
  %v1205 = vadd.f32 %v949, 0.0
  %v1206 = vadd.f32 %v950, 0.0
  %v1207 = vadd.f32 %v951, 0.0
  %v1208 = vadd.f32 %v952, 0.0
  %v1209 = vadd.f32 %v953, 0.0
  %v1210 = vadd.f32 %v954, 0.0
  %v1211 = vadd.f32 %v955, 0.0
  %v1212 = vadd.f32 %v956, 0.0
  %v1213 = vadd.f32 %v957, 0.0
  %s1214 = scalar_lea.vmem %s4, 4
  %v1215 = vld [vmem:[%s1214] sm:$0x7]
  %v1216 = vpack.c.bf16 %v1151, %v1150
  %v1217 = vpack.c.bf16 %v1153, %v1152
  %v1218 = vpack.c.bf16 %v1155, %v1154
  %v1219 = vpack.c.bf16 %v1157, %v1156
  %v1220 = vpack.c.bf16 %v1159, %v1158
  %v1221 = vpack.c.bf16 %v1161, %v1160
  %v1222 = vpack.c.bf16 %v1163, %v1162
  %v1223 = vpack.c.bf16 %v1165, %v1164
  %v1224 = vpack.c.bf16 %v1167, %v1166
  %v1225 = vpack.c.bf16 %v1169, %v1168
  %v1226 = vpack.c.bf16 %v1171, %v1170
  %v1227 = vpack.c.bf16 %v1173, %v1172
  %v1228 = vpack.c.bf16 %v1175, %v1174
  %v1229 = vpack.c.bf16 %v1177, %v1176
  %v1230 = vpack.c.bf16 %v1179, %v1178
  %v1231 = vpack.c.bf16 %v1181, %v1180
  %s1232 = scalar_lea.vmem %s1, 64
  %v1233 = vld [vmem:[%s1232] sm:$0xf]
  %v1234 = vld [vmem:[%s1232 + $0x4] sm:$0xf]
  %v1235 = vld [vmem:[%s1232 + $0x8] sm:$0xf]
  %v1236 = vld [vmem:[%s1232 + $0xc] sm:$0xf]
  %v1237 = vld [vmem:[%s1232 + $0x10] sm:$0xf]
  %v1238 = vld [vmem:[%s1232 + $0x14] sm:$0xf]
  %v1239 = vld [vmem:[%s1232 + $0x18] sm:$0xf]
  %v1240 = vld [vmem:[%s1232 + $0x1c] sm:$0xf]
  %v1241 = vld [vmem:[%s1232 + $0x20] sm:$0xf]
  %v1242 = vld [vmem:[%s1232 + $0x24] sm:$0xf]
  %v1243 = vld [vmem:[%s1232 + $0x28] sm:$0xf]
  %v1244 = vld [vmem:[%s1232 + $0x2c] sm:$0xf]
  %v1245 = vld [vmem:[%s1232 + $0x30] sm:$0xf]
  %v1246 = vld [vmem:[%s1232 + $0x34] sm:$0xf]
  %v1247 = vld [vmem:[%s1232 + $0x38] sm:$0xf]
  %v1248 = vld [vmem:[%s1232 + $0x3c] sm:$0xf]
  %v1249 = vlaneseq
  %v1250 = vshrl.u32 %v1249, 7
  %v1251 = vsub.s32 0, %v1250
  %v1252 = vrot.slane %v1215, %v1251
  %v1269 = vunpack.c.l.b16 %v1233
  %v1270 = vunpack.c.l.b16 %v1234
  %v1271 = vunpack.c.l.b16 %v1235
  %v1272 = vunpack.c.l.b16 %v1236
  %v1273 = vunpack.c.l.b16 %v1237
  %v1274 = vunpack.c.l.b16 %v1238
  %v1275 = vunpack.c.l.b16 %v1239
  %v1276 = vunpack.c.l.b16 %v1240
  %v1277 = vunpack.c.l.b16 %v1241
  %v1278 = vunpack.c.l.b16 %v1242
  %v1279 = vunpack.c.l.b16 %v1243
  %v1280 = vunpack.c.l.b16 %v1244
  %v1281 = vunpack.c.l.b16 %v1245
  %v1282 = vunpack.c.l.b16 %v1246
  %v1283 = vunpack.c.l.b16 %v1247
  %v1284 = vunpack.c.l.b16 %v1248
  %v1285 = vpack.c.b16 %v1270, %v1269
  %v1286 = vpack.c.b16 %v1272, %v1271
  %v1287 = vpack.c.b16 %v1274, %v1273
  %v1288 = vpack.c.b16 %v1276, %v1275
  %v1289 = vpack.c.b16 %v1278, %v1277
  %v1290 = vpack.c.b16 %v1280, %v1279
  %v1291 = vpack.c.b16 %v1282, %v1281
  %v1292 = vpack.c.b16 %v1284, %v1283
  %1301 = vmatprep.subr.bf16.mxu0 0
  %1302 = vmatpush1.bf16.msra.mxu0 %v1285
  %1303 = vmatprep.subr.bf16.mxu0 0
  %1304 = vmatpush1.bf16.msra.mxu0 %v1286
  %1305 = vmatprep.subr.bf16.mxu0 0
  %1306 = vmatpush1.bf16.msra.mxu0 %v1287
  %1307 = vmatprep.subr.bf16.mxu0 0
  %1308 = vmatpush1.bf16.msra.mxu0 %v1288
  %1309 = vmatprep.subr.bf16.mxu0 0
  %1310 = vmatpush1.bf16.msra.mxu0 %v1289
  %1311 = vmatprep.subr.bf16.mxu0 0
  %1312 = vmatpush1.bf16.msra.mxu0 %v1290
  %1313 = vmatprep.subr.bf16.mxu0 0
  %1314 = vmatpush1.bf16.msra.mxu0 %v1291
  %1315 = vmatprep.subr.bf16.mxu0 0
  %1316 = vmatpush1.bf16.msra.mxu0 %v1292
  %1317 = vmatprep.subr.bf16.mxu0 0
  %1318 = vmatpush1.bf16.msra.mxu0 0
  %1319 = vmatprep.subr.bf16.mxu0 0
  %1320 = vmatpush1.bf16.msra.mxu0 0
  %1321 = vmatprep.subr.bf16.mxu0 0
  %1322 = vmatpush1.bf16.msra.mxu0 0
  %1323 = vmatprep.subr.bf16.mxu0 0
  %1324 = vmatpush1.bf16.msra.mxu0 0
  %1325 = vmatprep.subr.bf16.mxu0 0
  %1326 = vmatpush1.bf16.msra.mxu0 0
  %1327 = vmatprep.subr.bf16.mxu0 0
  %1328 = vmatpush1.bf16.msra.mxu0 0
  %1329 = vmatprep.subr.bf16.mxu0 0
  %1330 = vmatpush1.bf16.msra.mxu0 0
  %1331 = vmatprep.subr.bf16.mxu0 0
  %1332 = vmatpush1.bf16.msra.mxu0 0
  %1333 = vmatprep.mubr.bf16.mxu0 0
  %1334 = vmatmul.mubr.bf16.gmra.mrb[0].mxu0 %v1216
  %v1335 = vpop.f32.mrb[0].mxu0
  %v1336 = vadd.f32 %v1252, %v1335
  %v1337 = vpop.f32.mrb[0].mxu0
  %v1338 = vpop.f32.mrb[0].mxu0
  %v1339 = vadd.f32 %v1252, %v1338
  %v1340 = vpop.f32.mrb[0].mxu0
  %1341 = vmatprep.mubr.bf16.mxu0 0
  %1342 = vmatmul.mubr.bf16.gmra.mrb[0].mxu0 %v1217
  %v1343 = vpop.f32.mrb[0].mxu0
  %v1344 = vadd.f32 %v1252, %v1343
  %v1345 = vpop.f32.mrb[0].mxu0
  %v1346 = vpop.f32.mrb[0].mxu0
  %v1347 = vadd.f32 %v1252, %v1346
  %v1348 = vpop.f32.mrb[0].mxu0
  %1349 = vmatprep.mubr.bf16.mxu0 0
  %1350 = vmatmul.mubr.bf16.gmra.mrb[0].mxu0 %v1218
  %v1351 = vpop.f32.mrb[0].mxu0
  %v1352 = vadd.f32 %v1252, %v1351
  %v1353 = vpop.f32.mrb[0].mxu0
  %v1354 = vpop.f32.mrb[0].mxu0
  %v1355 = vadd.f32 %v1252, %v1354
  %v1356 = vpop.f32.mrb[0].mxu0
  %1357 = vmatprep.mubr.bf16.mxu0 0
  %1358 = vmatmul.mubr.bf16.gmra.mrb[0].mxu0 %v1219
  %v1359 = vpop.f32.mrb[0].mxu0
  %v1360 = vadd.f32 %v1252, %v1359
  %v1361 = vpop.f32.mrb[0].mxu0
  %v1362 = vpop.f32.mrb[0].mxu0
  %v1363 = vadd.f32 %v1252, %v1362
  %v1364 = vpop.f32.mrb[0].mxu0
  %1365 = vmatprep.mubr.bf16.mxu0 0
  %1366 = vmatmul.mubr.bf16.gmra.mrb[0].mxu0 %v1220
  %v1367 = vpop.f32.mrb[0].mxu0
  %v1368 = vadd.f32 %v1252, %v1367
  %v1369 = vpop.f32.mrb[0].mxu0
  %v1370 = vpop.f32.mrb[0].mxu0
  %v1371 = vadd.f32 %v1252, %v1370
  %v1372 = vpop.f32.mrb[0].mxu0
  %1373 = vmatprep.mubr.bf16.mxu0 0
  %1374 = vmatmul.mubr.bf16.gmra.mrb[0].mxu0 %v1221
  %v1375 = vpop.f32.mrb[0].mxu0
  %v1376 = vadd.f32 %v1252, %v1375
  %v1377 = vpop.f32.mrb[0].mxu0
  %v1378 = vpop.f32.mrb[0].mxu0
  %v1379 = vadd.f32 %v1252, %v1378
  %v1380 = vpop.f32.mrb[0].mxu0
  %1381 = vmatprep.mubr.bf16.mxu0 0
  %1382 = vmatmul.mubr.bf16.gmra.mrb[0].mxu0 %v1222
  %v1383 = vpop.f32.mrb[0].mxu0
  %v1384 = vadd.f32 %v1252, %v1383
  %v1385 = vpop.f32.mrb[0].mxu0
  %v1386 = vpop.f32.mrb[0].mxu0
  %v1387 = vadd.f32 %v1252, %v1386
  %v1388 = vpop.f32.mrb[0].mxu0
  %1389 = vmatprep.mubr.bf16.mxu0 0
  %1390 = vmatmul.mubr.bf16.gmra.mrb[0].mxu0 %v1223
  %v1391 = vpop.f32.mrb[0].mxu0
  %v1392 = vadd.f32 %v1252, %v1391
  %v1393 = vpop.f32.mrb[0].mxu0
  %v1394 = vpop.f32.mrb[0].mxu0
  %v1395 = vadd.f32 %v1252, %v1394
  %v1396 = vpop.f32.mrb[0].mxu0
  %1397 = vmatprep.mubr.bf16.mxu0 0
  %1398 = vmatmul.mubr.bf16.gmra.mrb[0].mxu0 %v1224
  %v1399 = vpop.f32.mrb[0].mxu0
  %v1400 = vadd.f32 %v1252, %v1399
  %v1401 = vpop.f32.mrb[0].mxu0
  %v1402 = vpop.f32.mrb[0].mxu0
  %v1403 = vadd.f32 %v1252, %v1402
  %v1404 = vpop.f32.mrb[0].mxu0
  %1405 = vmatprep.mubr.bf16.mxu0 0
  %1406 = vmatmul.mubr.bf16.gmra.mrb[0].mxu0 %v1225
  %v1407 = vpop.f32.mrb[0].mxu0
  %v1408 = vadd.f32 %v1252, %v1407
  %v1409 = vpop.f32.mrb[0].mxu0
  %v1410 = vpop.f32.mrb[0].mxu0
  %v1411 = vadd.f32 %v1252, %v1410
  %v1412 = vpop.f32.mrb[0].mxu0
  %1413 = vmatprep.mubr.bf16.mxu0 0
  %1414 = vmatmul.mubr.bf16.gmra.mrb[0].mxu0 %v1226
  %v1415 = vpop.f32.mrb[0].mxu0
  %v1416 = vadd.f32 %v1252, %v1415
  %v1417 = vpop.f32.mrb[0].mxu0
  %v1418 = vpop.f32.mrb[0].mxu0
  %v1419 = vadd.f32 %v1252, %v1418
  %v1420 = vpop.f32.mrb[0].mxu0
  %1421 = vmatprep.mubr.bf16.mxu0 0
  %1422 = vmatmul.mubr.bf16.gmra.mrb[0].mxu0 %v1227
  %v1423 = vpop.f32.mrb[0].mxu0
  %v1424 = vadd.f32 %v1252, %v1423
  %v1425 = vpop.f32.mrb[0].mxu0
  %v1426 = vpop.f32.mrb[0].mxu0
  %v1427 = vadd.f32 %v1252, %v1426
  %v1428 = vpop.f32.mrb[0].mxu0
  %1429 = vmatprep.mubr.bf16.mxu0 0
  %1430 = vmatmul.mubr.bf16.gmra.mrb[0].mxu0 %v1228
  %v1431 = vpop.f32.mrb[0].mxu0
  %v1432 = vadd.f32 %v1252, %v1431
  %v1433 = vpop.f32.mrb[0].mxu0
  %v1434 = vpop.f32.mrb[0].mxu0
  %v1435 = vadd.f32 %v1252, %v1434
  %v1436 = vpop.f32.mrb[0].mxu0
  %1437 = vmatprep.mubr.bf16.mxu0 0
  %1438 = vmatmul.mubr.bf16.gmra.mrb[0].mxu0 %v1229
  %v1439 = vpop.f32.mrb[0].mxu0
  %v1440 = vadd.f32 %v1252, %v1439
  %v1441 = vpop.f32.mrb[0].mxu0
  %v1442 = vpop.f32.mrb[0].mxu0
  %v1443 = vadd.f32 %v1252, %v1442
  %v1444 = vpop.f32.mrb[0].mxu0
  %1445 = vmatprep.mubr.bf16.mxu0 0
  %1446 = vmatmul.mubr.bf16.gmra.mrb[0].mxu0 %v1230
  %v1447 = vpop.f32.mrb[0].mxu0
  %v1448 = vadd.f32 %v1252, %v1447
  %v1449 = vpop.f32.mrb[0].mxu0
  %v1450 = vpop.f32.mrb[0].mxu0
  %v1451 = vadd.f32 %v1252, %v1450
  %v1452 = vpop.f32.mrb[0].mxu0
  %1453 = vmatprep.mubr.bf16.mxu0 0
  %1454 = vmatmul.mubr.bf16.gmra.mrb[0].mxu0 %v1231
  %v1455 = vpop.f32.mrb[0].mxu0
  %v1456 = vadd.f32 %v1252, %v1455
  %v1457 = vpop.f32.mrb[0].mxu0
  %v1458 = vpop.f32.mrb[0].mxu0
  %v1459 = vadd.f32 %v1252, %v1458
  %v1460 = vpop.f32.mrb[0].mxu0
  %1461 = vdwg.mxu0
  %v1462 = vmul.f32 %v1336, 0.01
  %v1463 = vmul.f32 %v1339, 0.01
  %v1464 = vmul.f32 %v1344, 0.01
  %v1465 = vmul.f32 %v1347, 0.01
  %v1466 = vmul.f32 %v1352, 0.01
  %v1467 = vmul.f32 %v1355, 0.01
  %v1468 = vmul.f32 %v1360, 0.01
  %v1469 = vmul.f32 %v1363, 0.01
  %v1470 = vmul.f32 %v1368, 0.01
  %v1471 = vmul.f32 %v1371, 0.01
  %v1472 = vmul.f32 %v1376, 0.01
  %v1473 = vmul.f32 %v1379, 0.01
  %v1474 = vmul.f32 %v1384, 0.01
  %v1475 = vmul.f32 %v1387, 0.01
  %v1476 = vmul.f32 %v1392, 0.01
  %v1477 = vmul.f32 %v1395, 0.01
  %v1478 = vmul.f32 %v1400, 0.01
  %v1479 = vmul.f32 %v1403, 0.01
  %v1480 = vmul.f32 %v1408, 0.01
  %v1481 = vmul.f32 %v1411, 0.01
  %v1482 = vmul.f32 %v1416, 0.01
  %v1483 = vmul.f32 %v1419, 0.01
  %v1484 = vmul.f32 %v1424, 0.01
  %v1485 = vmul.f32 %v1427, 0.01
  %v1486 = vmul.f32 %v1432, 0.01
  %v1487 = vmul.f32 %v1435, 0.01
  %v1488 = vmul.f32 %v1440, 0.01
  %v1489 = vmul.f32 %v1443, 0.01
  %v1490 = vmul.f32 %v1448, 0.01
  %v1491 = vmul.f32 %v1451, 0.01
  %v1492 = vmul.f32 %v1456, 0.01
  %v1493 = vmul.f32 %v1459, 0.01
  %v1494 = vmax.f32 %v1336, %v1462
  %v1495 = vmax.f32 %v1339, %v1463
  %v1496 = vmax.f32 %v1344, %v1464
  %v1497 = vmax.f32 %v1347, %v1465
  %v1498 = vmax.f32 %v1352, %v1466
  %v1499 = vmax.f32 %v1355, %v1467
  %v1500 = vmax.f32 %v1360, %v1468
  %v1501 = vmax.f32 %v1363, %v1469
  %v1502 = vmax.f32 %v1368, %v1470
  %v1503 = vmax.f32 %v1371, %v1471
  %v1504 = vmax.f32 %v1376, %v1472
  %v1505 = vmax.f32 %v1379, %v1473
  %v1506 = vmax.f32 %v1384, %v1474
  %v1507 = vmax.f32 %v1387, %v1475
  %v1508 = vmax.f32 %v1392, %v1476
  %v1509 = vmax.f32 %v1395, %v1477
  %v1510 = vmax.f32 %v1400, %v1478
  %v1511 = vmax.f32 %v1403, %v1479
  %v1512 = vmax.f32 %v1408, %v1480
  %v1513 = vmax.f32 %v1411, %v1481
  %v1514 = vmax.f32 %v1416, %v1482
  %v1515 = vmax.f32 %v1419, %v1483
  %v1516 = vmax.f32 %v1424, %v1484
  %v1517 = vmax.f32 %v1427, %v1485
  %v1518 = vmax.f32 %v1432, %v1486
  %v1519 = vmax.f32 %v1435, %v1487
  %v1520 = vmax.f32 %v1440, %v1488
  %v1521 = vmax.f32 %v1443, %v1489
  %v1522 = vmax.f32 %v1448, %v1490
  %v1523 = vmax.f32 %v1451, %v1491
  %v1524 = vmax.f32 %v1456, %v1492
  %v1525 = vmax.f32 %v1459, %v1493
  %v1526 = vpack.c.bf16 %v1495, %v1494
  %v1527 = vpack.c.bf16 %v1497, %v1496
  %v1528 = vpack.c.bf16 %v1499, %v1498
  %v1529 = vpack.c.bf16 %v1501, %v1500
  %v1530 = vpack.c.bf16 %v1503, %v1502
  %v1531 = vpack.c.bf16 %v1505, %v1504
  %v1532 = vpack.c.bf16 %v1507, %v1506
  %v1533 = vpack.c.bf16 %v1509, %v1508
  %v1534 = vpack.c.bf16 %v1511, %v1510
  %v1535 = vpack.c.bf16 %v1513, %v1512
  %v1536 = vpack.c.bf16 %v1515, %v1514
  %v1537 = vpack.c.bf16 %v1517, %v1516
  %v1538 = vpack.c.bf16 %v1519, %v1518
  %v1539 = vpack.c.bf16 %v1521, %v1520
  %v1540 = vpack.c.bf16 %v1523, %v1522
  %v1541 = vpack.c.bf16 %v1525, %v1524
  %s1542 = scalar_lea.vmem %s2, 16
  %v1543 = vld [vmem:[%s1542] sm:$0xf]
  %v1544 = vld [vmem:[%s1542 + $0x4] sm:$0xf]
  %v1545 = vld [vmem:[%s1542 + $0x8] sm:$0xf]
  %v1546 = vld [vmem:[%s1542 + $0xc] sm:$0xf]
  %v1547 = vlaneseq
  %v1548 = vshrl.u32 %v1547, 7
  %v1549 = vsub.s32 1, %v1548
  %v1550 = vrot.slane %v1215, %v1549
  %v1555 = vunpack.c.l.b16 %v1543
  %v1556 = vunpack.c.l.b16 %v1544
  %v1557 = vunpack.c.l.b16 %v1545
  %v1558 = vunpack.c.l.b16 %v1546
  %v1559 = vpack.c.b16 %v1556, %v1555
  %v1560 = vpack.c.b16 %v1558, %v1557
  %v1564 = vsel %vm407, %v1526, 0
  %v1567 = vsel %vm407, %v1527, 0
  %v1570 = vsel %vm407, %v1528, 0
  %v1573 = vsel %vm407, %v1529, 0
  %v1576 = vsel %vm407, %v1530, 0
  %v1579 = vsel %vm407, %v1531, 0
  %v1582 = vsel %vm407, %v1532, 0
  %v1585 = vsel %vm407, %v1533, 0
  %v1588 = vsel %vm407, %v1534, 0
  %v1591 = vsel %vm407, %v1535, 0
  %v1594 = vsel %vm407, %v1536, 0
  %v1597 = vsel %vm407, %v1537, 0
  %v1600 = vsel %vm407, %v1538, 0
  %v1603 = vsel %vm407, %v1539, 0
  %v1606 = vsel %vm407, %v1540, 0
  %v1609 = vsel %vm407, %v1541, 0
  %1611 = vmatprep.subr.bf16.mxu0 0
  %1612 = vmatpush1.bf16.msra.mxu0 %v1559
  %1613 = vmatprep.subr.bf16.mxu0 0
  %1614 = vmatpush1.bf16.msra.mxu0 %v1560
  %1615 = vmatprep.subr.bf16.mxu0 0
  %1616 = vmatpush1.bf16.msra.mxu0 0
  %1617 = vmatprep.subr.bf16.mxu0 0
  %1618 = vmatpush1.bf16.msra.mxu0 0
  %1619 = vmatprep.subr.bf16.mxu0 0
  %1620 = vmatpush1.bf16.msra.mxu0 0
  %1621 = vmatprep.subr.bf16.mxu0 0
  %1622 = vmatpush1.bf16.msra.mxu0 0
  %1623 = vmatprep.subr.bf16.mxu0 0
  %1624 = vmatpush1.bf16.msra.mxu0 0
  %1625 = vmatprep.subr.bf16.mxu0 0
  %1626 = vmatpush1.bf16.msra.mxu0 0
  %1627 = vmatprep.subr.bf16.mxu0 0
  %1628 = vmatpush1.bf16.msra.mxu0 0
  %1629 = vmatprep.subr.bf16.mxu0 0
  %1630 = vmatpush1.bf16.msra.mxu0 0
  %1631 = vmatprep.subr.bf16.mxu0 0
  %1632 = vmatpush1.bf16.msra.mxu0 0
  %1633 = vmatprep.subr.bf16.mxu0 0
  %1634 = vmatpush1.bf16.msra.mxu0 0
  %1635 = vmatprep.subr.bf16.mxu0 0
  %1636 = vmatpush1.bf16.msra.mxu0 0
  %1637 = vmatprep.subr.bf16.mxu0 0
  %1638 = vmatpush1.bf16.msra.mxu0 0
  %1639 = vmatprep.subr.bf16.mxu0 0
  %1640 = vmatpush1.bf16.msra.mxu0 0
  %1641 = vmatprep.subr.bf16.mxu0 0
  %1642 = vmatpush1.bf16.msra.mxu0 0
  %1643 = vmatprep.mubr.bf16.mxu0 0
  %1644 = vmatmul.mubr.bf16.gmra.mrb[0].mxu0 %v1564
  %v1645 = vpop.f32.mrb[0].mxu0
  %v1646 = vadd.f32 %v1550, %v1645
  %v1647 = vpop.f32.mrb[0].mxu0
  %v1648 = vpop.f32.mrb[0].mxu0
  %v1649 = vadd.f32 %v1550, %v1648
  %v1650 = vpop.f32.mrb[0].mxu0
  %1651 = vmatprep.mubr.bf16.mxu0 0
  %1652 = vmatmul.mubr.bf16.gmra.mrb[0].mxu0 %v1567
  %v1653 = vpop.f32.mrb[0].mxu0
  %v1654 = vadd.f32 %v1550, %v1653
  %v1655 = vpop.f32.mrb[0].mxu0
  %v1656 = vpop.f32.mrb[0].mxu0
  %v1657 = vadd.f32 %v1550, %v1656
  %v1658 = vpop.f32.mrb[0].mxu0
  %1659 = vmatprep.mubr.bf16.mxu0 0
  %1660 = vmatmul.mubr.bf16.gmra.mrb[0].mxu0 %v1570
  %v1661 = vpop.f32.mrb[0].mxu0
  %v1662 = vadd.f32 %v1550, %v1661
  %v1663 = vpop.f32.mrb[0].mxu0
  %v1664 = vpop.f32.mrb[0].mxu0
  %v1665 = vadd.f32 %v1550, %v1664
  %v1666 = vpop.f32.mrb[0].mxu0
  %1667 = vmatprep.mubr.bf16.mxu0 0
  %1668 = vmatmul.mubr.bf16.gmra.mrb[0].mxu0 %v1573
  %v1669 = vpop.f32.mrb[0].mxu0
  %v1670 = vadd.f32 %v1550, %v1669
  %v1671 = vpop.f32.mrb[0].mxu0
  %v1672 = vpop.f32.mrb[0].mxu0
  %v1673 = vadd.f32 %v1550, %v1672
  %v1674 = vpop.f32.mrb[0].mxu0
  %1675 = vmatprep.mubr.bf16.mxu0 0
  %1676 = vmatmul.mubr.bf16.gmra.mrb[0].mxu0 %v1576
  %v1677 = vpop.f32.mrb[0].mxu0
  %v1678 = vadd.f32 %v1550, %v1677
  %v1679 = vpop.f32.mrb[0].mxu0
  %v1680 = vpop.f32.mrb[0].mxu0
  %v1681 = vadd.f32 %v1550, %v1680
  %v1682 = vpop.f32.mrb[0].mxu0
  %1683 = vmatprep.mubr.bf16.mxu0 0
  %1684 = vmatmul.mubr.bf16.gmra.mrb[0].mxu0 %v1579
  %v1685 = vpop.f32.mrb[0].mxu0
  %v1686 = vadd.f32 %v1550, %v1685
  %v1687 = vpop.f32.mrb[0].mxu0
  %v1688 = vpop.f32.mrb[0].mxu0
  %v1689 = vadd.f32 %v1550, %v1688
  %v1690 = vpop.f32.mrb[0].mxu0
  %1691 = vmatprep.mubr.bf16.mxu0 0
  %1692 = vmatmul.mubr.bf16.gmra.mrb[0].mxu0 %v1582
  %v1693 = vpop.f32.mrb[0].mxu0
  %v1694 = vadd.f32 %v1550, %v1693
  %v1695 = vpop.f32.mrb[0].mxu0
  %v1696 = vpop.f32.mrb[0].mxu0
  %v1697 = vadd.f32 %v1550, %v1696
  %v1698 = vpop.f32.mrb[0].mxu0
  %1699 = vmatprep.mubr.bf16.mxu0 0
  %1700 = vmatmul.mubr.bf16.gmra.mrb[0].mxu0 %v1585
  %v1701 = vpop.f32.mrb[0].mxu0
  %v1702 = vadd.f32 %v1550, %v1701
  %v1703 = vpop.f32.mrb[0].mxu0
  %v1704 = vpop.f32.mrb[0].mxu0
  %v1705 = vadd.f32 %v1550, %v1704
  %v1706 = vpop.f32.mrb[0].mxu0
  %1707 = vmatprep.mubr.bf16.mxu0 0
  %1708 = vmatmul.mubr.bf16.gmra.mrb[0].mxu0 %v1588
  %v1709 = vpop.f32.mrb[0].mxu0
  %v1710 = vadd.f32 %v1550, %v1709
  %v1711 = vpop.f32.mrb[0].mxu0
  %v1712 = vpop.f32.mrb[0].mxu0
  %v1713 = vadd.f32 %v1550, %v1712
  %v1714 = vpop.f32.mrb[0].mxu0
  %1715 = vmatprep.mubr.bf16.mxu0 0
  %1716 = vmatmul.mubr.bf16.gmra.mrb[0].mxu0 %v1591
  %v1717 = vpop.f32.mrb[0].mxu0
  %v1718 = vadd.f32 %v1550, %v1717
  %v1719 = vpop.f32.mrb[0].mxu0
  %v1720 = vpop.f32.mrb[0].mxu0
  %v1721 = vadd.f32 %v1550, %v1720
  %v1722 = vpop.f32.mrb[0].mxu0
  %1723 = vmatprep.mubr.bf16.mxu0 0
  %1724 = vmatmul.mubr.bf16.gmra.mrb[0].mxu0 %v1594
  %v1725 = vpop.f32.mrb[0].mxu0
  %v1726 = vadd.f32 %v1550, %v1725
  %v1727 = vpop.f32.mrb[0].mxu0
  %v1728 = vpop.f32.mrb[0].mxu0
  %v1729 = vadd.f32 %v1550, %v1728
  %v1730 = vpop.f32.mrb[0].mxu0
  %1731 = vmatprep.mubr.bf16.mxu0 0
  %1732 = vmatmul.mubr.bf16.gmra.mrb[0].mxu0 %v1597
  %v1733 = vpop.f32.mrb[0].mxu0
  %v1734 = vadd.f32 %v1550, %v1733
  %v1735 = vpop.f32.mrb[0].mxu0
  %v1736 = vpop.f32.mrb[0].mxu0
  %v1737 = vadd.f32 %v1550, %v1736
  %v1738 = vpop.f32.mrb[0].mxu0
  %1739 = vmatprep.mubr.bf16.mxu0 0
  %1740 = vmatmul.mubr.bf16.gmra.mrb[0].mxu0 %v1600
  %v1741 = vpop.f32.mrb[0].mxu0
  %v1742 = vadd.f32 %v1550, %v1741
  %v1743 = vpop.f32.mrb[0].mxu0
  %v1744 = vpop.f32.mrb[0].mxu0
  %v1745 = vadd.f32 %v1550, %v1744
  %v1746 = vpop.f32.mrb[0].mxu0
  %1747 = vmatprep.mubr.bf16.mxu0 0
  %1748 = vmatmul.mubr.bf16.gmra.mrb[0].mxu0 %v1603
  %v1749 = vpop.f32.mrb[0].mxu0
  %v1750 = vadd.f32 %v1550, %v1749
  %v1751 = vpop.f32.mrb[0].mxu0
  %v1752 = vpop.f32.mrb[0].mxu0
  %v1753 = vadd.f32 %v1550, %v1752
  %v1754 = vpop.f32.mrb[0].mxu0
  %1755 = vmatprep.mubr.bf16.mxu0 0
  %1756 = vmatmul.mubr.bf16.gmra.mrb[0].mxu0 %v1606
  %v1757 = vpop.f32.mrb[0].mxu0
  %v1758 = vadd.f32 %v1550, %v1757
  %v1759 = vpop.f32.mrb[0].mxu0
  %v1760 = vpop.f32.mrb[0].mxu0
  %v1761 = vadd.f32 %v1550, %v1760
  %v1762 = vpop.f32.mrb[0].mxu0
  %1763 = vmatprep.mubr.bf16.mxu0 0
  %1764 = vmatmul.mubr.bf16.gmra.mrb[0].mxu0 %v1609
  %v1765 = vpop.f32.mrb[0].mxu0
  %v1766 = vadd.f32 %v1550, %v1765
  %v1767 = vpop.f32.mrb[0].mxu0
  %v1768 = vpop.f32.mrb[0].mxu0
  %v1769 = vadd.f32 %v1550, %v1768
  %v1770 = vpop.f32.mrb[0].mxu0
  %1771 = vdwg.mxu0
  %v1772 = vmul.f32 %v1646, 0.01
  %v1773 = vmul.f32 %v1649, 0.01
  %v1774 = vmul.f32 %v1654, 0.01
  %v1775 = vmul.f32 %v1657, 0.01
  %v1776 = vmul.f32 %v1662, 0.01
  %v1777 = vmul.f32 %v1665, 0.01
  %v1778 = vmul.f32 %v1670, 0.01
  %v1779 = vmul.f32 %v1673, 0.01
  %v1780 = vmul.f32 %v1678, 0.01
  %v1781 = vmul.f32 %v1681, 0.01
  %v1782 = vmul.f32 %v1686, 0.01
  %v1783 = vmul.f32 %v1689, 0.01
  %v1784 = vmul.f32 %v1694, 0.01
  %v1785 = vmul.f32 %v1697, 0.01
  %v1786 = vmul.f32 %v1702, 0.01
  %v1787 = vmul.f32 %v1705, 0.01
  %v1788 = vmul.f32 %v1710, 0.01
  %v1789 = vmul.f32 %v1713, 0.01
  %v1790 = vmul.f32 %v1718, 0.01
  %v1791 = vmul.f32 %v1721, 0.01
  %v1792 = vmul.f32 %v1726, 0.01
  %v1793 = vmul.f32 %v1729, 0.01
  %v1794 = vmul.f32 %v1734, 0.01
  %v1795 = vmul.f32 %v1737, 0.01
  %v1796 = vmul.f32 %v1742, 0.01
  %v1797 = vmul.f32 %v1745, 0.01
  %v1798 = vmul.f32 %v1750, 0.01
  %v1799 = vmul.f32 %v1753, 0.01
  %v1800 = vmul.f32 %v1758, 0.01
  %v1801 = vmul.f32 %v1761, 0.01
  %v1802 = vmul.f32 %v1766, 0.01
  %v1803 = vmul.f32 %v1769, 0.01
  %v1804 = vmax.f32 %v1646, %v1772
  %v1805 = vmax.f32 %v1649, %v1773
  %v1806 = vmax.f32 %v1654, %v1774
  %v1807 = vmax.f32 %v1657, %v1775
  %v1808 = vmax.f32 %v1662, %v1776
  %v1809 = vmax.f32 %v1665, %v1777
  %v1810 = vmax.f32 %v1670, %v1778
  %v1811 = vmax.f32 %v1673, %v1779
  %v1812 = vmax.f32 %v1678, %v1780
  %v1813 = vmax.f32 %v1681, %v1781
  %v1814 = vmax.f32 %v1686, %v1782
  %v1815 = vmax.f32 %v1689, %v1783
  %v1816 = vmax.f32 %v1694, %v1784
  %v1817 = vmax.f32 %v1697, %v1785
  %v1818 = vmax.f32 %v1702, %v1786
  %v1819 = vmax.f32 %v1705, %v1787
  %v1820 = vmax.f32 %v1710, %v1788
  %v1821 = vmax.f32 %v1713, %v1789
  %v1822 = vmax.f32 %v1718, %v1790
  %v1823 = vmax.f32 %v1721, %v1791
  %v1824 = vmax.f32 %v1726, %v1792
  %v1825 = vmax.f32 %v1729, %v1793
  %v1826 = vmax.f32 %v1734, %v1794
  %v1827 = vmax.f32 %v1737, %v1795
  %v1828 = vmax.f32 %v1742, %v1796
  %v1829 = vmax.f32 %v1745, %v1797
  %v1830 = vmax.f32 %v1750, %v1798
  %v1831 = vmax.f32 %v1753, %v1799
  %v1832 = vmax.f32 %v1758, %v1800
  %v1833 = vmax.f32 %v1761, %v1801
  %v1834 = vmax.f32 %v1766, %v1802
  %v1835 = vmax.f32 %v1769, %v1803
  %v1836 = vpack.c.bf16 %v1805, %v1804
  %v1837 = vpack.c.bf16 %v1807, %v1806
  %v1838 = vpack.c.bf16 %v1809, %v1808
  %v1839 = vpack.c.bf16 %v1811, %v1810
  %v1840 = vpack.c.bf16 %v1813, %v1812
  %v1841 = vpack.c.bf16 %v1815, %v1814
  %v1842 = vpack.c.bf16 %v1817, %v1816
  %v1843 = vpack.c.bf16 %v1819, %v1818
  %v1844 = vpack.c.bf16 %v1821, %v1820
  %v1845 = vpack.c.bf16 %v1823, %v1822
  %v1846 = vpack.c.bf16 %v1825, %v1824
  %v1847 = vpack.c.bf16 %v1827, %v1826
  %v1848 = vpack.c.bf16 %v1829, %v1828
  %v1849 = vpack.c.bf16 %v1831, %v1830
  %v1850 = vpack.c.bf16 %v1833, %v1832
  %v1851 = vpack.c.bf16 %v1835, %v1834
  %s1852 = scalar_lea.vmem %s3, 16
  %v1853 = vld [vmem:[%s1852] sm:$0xf]
  %v1854 = vld [vmem:[%s1852 + $0x4] sm:$0xf]
  %v1855 = vld [vmem:[%s1852 + $0x8] sm:$0xf]
  %v1856 = vld [vmem:[%s1852 + $0xc] sm:$0xf]
  %v1857 = vlaneseq
  %v1858 = vshrl.u32 %v1857, 7
  %v1859 = vsub.s32 2, %v1858
  %v1860 = vrot.slane %v1215, %v1859
  %v1865 = vunpack.c.l.b16 %v1853
  %v1866 = vunpack.c.l.b16 %v1854
  %v1867 = vunpack.c.l.b16 %v1855
  %v1868 = vunpack.c.l.b16 %v1856
  %v1869 = vpack.c.b16 %v1866, %v1865
  %v1870 = vpack.c.b16 %v1868, %v1867
  %v1874 = vsel %vm407, %v1836, 0
  %v1877 = vsel %vm407, %v1837, 0
  %v1880 = vsel %vm407, %v1838, 0
  %v1883 = vsel %vm407, %v1839, 0
  %v1886 = vsel %vm407, %v1840, 0
  %v1889 = vsel %vm407, %v1841, 0
  %v1892 = vsel %vm407, %v1842, 0
  %v1895 = vsel %vm407, %v1843, 0
  %v1898 = vsel %vm407, %v1844, 0
  %v1901 = vsel %vm407, %v1845, 0
  %v1904 = vsel %vm407, %v1846, 0
  %v1907 = vsel %vm407, %v1847, 0
  %v1910 = vsel %vm407, %v1848, 0
  %v1913 = vsel %vm407, %v1849, 0
  %v1916 = vsel %vm407, %v1850, 0
  %v1919 = vsel %vm407, %v1851, 0
  %1921 = vmatprep.subr.bf16.mxu0 0
  %1922 = vmatpush1.bf16.msra.mxu0 %v1869
  %1923 = vmatprep.subr.bf16.mxu0 0
  %1924 = vmatpush1.bf16.msra.mxu0 %v1870
  %1925 = vmatprep.subr.bf16.mxu0 0
  %1926 = vmatpush1.bf16.msra.mxu0 0
  %1927 = vmatprep.subr.bf16.mxu0 0
  %1928 = vmatpush1.bf16.msra.mxu0 0
  %1929 = vmatprep.subr.bf16.mxu0 0
  %1930 = vmatpush1.bf16.msra.mxu0 0
  %1931 = vmatprep.subr.bf16.mxu0 0
  %1932 = vmatpush1.bf16.msra.mxu0 0
  %1933 = vmatprep.subr.bf16.mxu0 0
  %1934 = vmatpush1.bf16.msra.mxu0 0
  %1935 = vmatprep.subr.bf16.mxu0 0
  %1936 = vmatpush1.bf16.msra.mxu0 0
  %1937 = vmatprep.subr.bf16.mxu0 0
  %1938 = vmatpush1.bf16.msra.mxu0 0
  %1939 = vmatprep.subr.bf16.mxu0 0
  %1940 = vmatpush1.bf16.msra.mxu0 0
  %1941 = vmatprep.subr.bf16.mxu0 0
  %1942 = vmatpush1.bf16.msra.mxu0 0
  %1943 = vmatprep.subr.bf16.mxu0 0
  %1944 = vmatpush1.bf16.msra.mxu0 0
  %1945 = vmatprep.subr.bf16.mxu0 0
  %1946 = vmatpush1.bf16.msra.mxu0 0
  %1947 = vmatprep.subr.bf16.mxu0 0
  %1948 = vmatpush1.bf16.msra.mxu0 0
  %1949 = vmatprep.subr.bf16.mxu0 0
  %1950 = vmatpush1.bf16.msra.mxu0 0
  %1951 = vmatprep.subr.bf16.mxu0 0
  %1952 = vmatpush1.bf16.msra.mxu0 0
  %1953 = vmatprep.mubr.bf16.mxu0 0
  %1954 = vmatmul.mubr.bf16.gmra.mrb[0].mxu0 %v1874
  %v1955 = vpop.f32.mrb[0].mxu0
  %v1956 = vadd.f32 %v1860, %v1955
  %v1957 = vpop.f32.mrb[0].mxu0
  %v1958 = vpop.f32.mrb[0].mxu0
  %v1959 = vadd.f32 %v1860, %v1958
  %v1960 = vpop.f32.mrb[0].mxu0
  %1961 = vmatprep.mubr.bf16.mxu0 0
  %1962 = vmatmul.mubr.bf16.gmra.mrb[0].mxu0 %v1877
  %v1963 = vpop.f32.mrb[0].mxu0
  %v1964 = vadd.f32 %v1860, %v1963
  %v1965 = vpop.f32.mrb[0].mxu0
  %v1966 = vpop.f32.mrb[0].mxu0
  %v1967 = vadd.f32 %v1860, %v1966
  %v1968 = vpop.f32.mrb[0].mxu0
  %1969 = vmatprep.mubr.bf16.mxu0 0
  %1970 = vmatmul.mubr.bf16.gmra.mrb[0].mxu0 %v1880
  %v1971 = vpop.f32.mrb[0].mxu0
  %v1972 = vadd.f32 %v1860, %v1971
  %v1973 = vpop.f32.mrb[0].mxu0
  %v1974 = vpop.f32.mrb[0].mxu0
  %v1975 = vadd.f32 %v1860, %v1974
  %v1976 = vpop.f32.mrb[0].mxu0
  %1977 = vmatprep.mubr.bf16.mxu0 0
  %1978 = vmatmul.mubr.bf16.gmra.mrb[0].mxu0 %v1883
  %v1979 = vpop.f32.mrb[0].mxu0
  %v1980 = vadd.f32 %v1860, %v1979
  %v1981 = vpop.f32.mrb[0].mxu0
  %v1982 = vpop.f32.mrb[0].mxu0
  %v1983 = vadd.f32 %v1860, %v1982
  %v1984 = vpop.f32.mrb[0].mxu0
  %1985 = vmatprep.mubr.bf16.mxu0 0
  %1986 = vmatmul.mubr.bf16.gmra.mrb[0].mxu0 %v1886
  %v1987 = vpop.f32.mrb[0].mxu0
  %v1988 = vadd.f32 %v1860, %v1987
  %v1989 = vpop.f32.mrb[0].mxu0
  %v1990 = vpop.f32.mrb[0].mxu0
  %v1991 = vadd.f32 %v1860, %v1990
  %v1992 = vpop.f32.mrb[0].mxu0
  %1993 = vmatprep.mubr.bf16.mxu0 0
  %1994 = vmatmul.mubr.bf16.gmra.mrb[0].mxu0 %v1889
  %v1995 = vpop.f32.mrb[0].mxu0
  %v1996 = vadd.f32 %v1860, %v1995
  %v1997 = vpop.f32.mrb[0].mxu0
  %v1998 = vpop.f32.mrb[0].mxu0
  %v1999 = vadd.f32 %v1860, %v1998
  %v2000 = vpop.f32.mrb[0].mxu0
  %2001 = vmatprep.mubr.bf16.mxu0 0
  %2002 = vmatmul.mubr.bf16.gmra.mrb[0].mxu0 %v1892
  %v2003 = vpop.f32.mrb[0].mxu0
  %v2004 = vadd.f32 %v1860, %v2003
  %v2005 = vpop.f32.mrb[0].mxu0
  %v2006 = vpop.f32.mrb[0].mxu0
  %v2007 = vadd.f32 %v1860, %v2006
  %v2008 = vpop.f32.mrb[0].mxu0
  %2009 = vmatprep.mubr.bf16.mxu0 0
  %2010 = vmatmul.mubr.bf16.gmra.mrb[0].mxu0 %v1895
  %v2011 = vpop.f32.mrb[0].mxu0
  %v2012 = vadd.f32 %v1860, %v2011
  %v2013 = vpop.f32.mrb[0].mxu0
  %v2014 = vpop.f32.mrb[0].mxu0
  %v2015 = vadd.f32 %v1860, %v2014
  %v2016 = vpop.f32.mrb[0].mxu0
  %2017 = vmatprep.mubr.bf16.mxu0 0
  %2018 = vmatmul.mubr.bf16.gmra.mrb[0].mxu0 %v1898
  %v2019 = vpop.f32.mrb[0].mxu0
  %v2020 = vadd.f32 %v1860, %v2019
  %v2021 = vpop.f32.mrb[0].mxu0
  %v2022 = vpop.f32.mrb[0].mxu0
  %v2023 = vadd.f32 %v1860, %v2022
  %v2024 = vpop.f32.mrb[0].mxu0
  %2025 = vmatprep.mubr.bf16.mxu0 0
  %2026 = vmatmul.mubr.bf16.gmra.mrb[0].mxu0 %v1901
  %v2027 = vpop.f32.mrb[0].mxu0
  %v2028 = vadd.f32 %v1860, %v2027
  %v2029 = vpop.f32.mrb[0].mxu0
  %v2030 = vpop.f32.mrb[0].mxu0
  %v2031 = vadd.f32 %v1860, %v2030
  %v2032 = vpop.f32.mrb[0].mxu0
  %2033 = vmatprep.mubr.bf16.mxu0 0
  %2034 = vmatmul.mubr.bf16.gmra.mrb[0].mxu0 %v1904
  %v2035 = vpop.f32.mrb[0].mxu0
  %v2036 = vadd.f32 %v1860, %v2035
  %v2037 = vpop.f32.mrb[0].mxu0
  %v2038 = vpop.f32.mrb[0].mxu0
  %v2039 = vadd.f32 %v1860, %v2038
  %v2040 = vpop.f32.mrb[0].mxu0
  %2041 = vmatprep.mubr.bf16.mxu0 0
  %2042 = vmatmul.mubr.bf16.gmra.mrb[0].mxu0 %v1907
  %v2043 = vpop.f32.mrb[0].mxu0
  %v2044 = vadd.f32 %v1860, %v2043
  %v2045 = vpop.f32.mrb[0].mxu0
  %v2046 = vpop.f32.mrb[0].mxu0
  %v2047 = vadd.f32 %v1860, %v2046
  %v2048 = vpop.f32.mrb[0].mxu0
  %2049 = vmatprep.mubr.bf16.mxu0 0
  %2050 = vmatmul.mubr.bf16.gmra.mrb[0].mxu0 %v1910
  %v2051 = vpop.f32.mrb[0].mxu0
  %v2052 = vadd.f32 %v1860, %v2051
  %v2053 = vpop.f32.mrb[0].mxu0
  %v2054 = vpop.f32.mrb[0].mxu0
  %v2055 = vadd.f32 %v1860, %v2054
  %v2056 = vpop.f32.mrb[0].mxu0
  %2057 = vmatprep.mubr.bf16.mxu0 0
  %2058 = vmatmul.mubr.bf16.gmra.mrb[0].mxu0 %v1913
  %v2059 = vpop.f32.mrb[0].mxu0
  %v2060 = vadd.f32 %v1860, %v2059
  %v2061 = vpop.f32.mrb[0].mxu0
  %v2062 = vpop.f32.mrb[0].mxu0
  %v2063 = vadd.f32 %v1860, %v2062
  %v2064 = vpop.f32.mrb[0].mxu0
  %2065 = vmatprep.mubr.bf16.mxu0 0
  %2066 = vmatmul.mubr.bf16.gmra.mrb[0].mxu0 %v1916
  %v2067 = vpop.f32.mrb[0].mxu0
  %v2068 = vadd.f32 %v1860, %v2067
  %v2069 = vpop.f32.mrb[0].mxu0
  %v2070 = vpop.f32.mrb[0].mxu0
  %v2071 = vadd.f32 %v1860, %v2070
  %v2072 = vpop.f32.mrb[0].mxu0
  %2073 = vmatprep.mubr.bf16.mxu0 0
  %2074 = vmatmul.mubr.bf16.gmra.mrb[0].mxu0 %v1919
  %v2075 = vpop.f32.mrb[0].mxu0
  %v2076 = vadd.f32 %v1860, %v2075
  %v2077 = vpop.f32.mrb[0].mxu0
  %v2078 = vpop.f32.mrb[0].mxu0
  %v2079 = vadd.f32 %v1860, %v2078
  %v2080 = vpop.f32.mrb[0].mxu0
  %2081 = vdwg.mxu0
  %v2082 = vmul.f32 %v1956, %v25
  %v2083 = vmul.f32 %v1959, %v25
  %v2084 = vmul.f32 %v1964, %v25
  %v2085 = vmul.f32 %v1967, %v25
  %v2086 = vmul.f32 %v1972, %v25
  %v2087 = vmul.f32 %v1975, %v25
  %v2088 = vmul.f32 %v1980, %v25
  %v2089 = vmul.f32 %v1983, %v25
  %v2090 = vmul.f32 %v1988, %v25
  %v2091 = vmul.f32 %v1991, %v25
  %v2092 = vmul.f32 %v1996, %v25
  %v2093 = vmul.f32 %v1999, %v25
  %v2094 = vmul.f32 %v2004, %v25
  %v2095 = vmul.f32 %v2007, %v25
  %v2096 = vmul.f32 %v2012, %v25
  %v2097 = vmul.f32 %v2015, %v25
  %v2098 = vmul.f32 %v2020, %v25
  %v2099 = vmul.f32 %v2023, %v25
  %v2100 = vmul.f32 %v2028, %v25
  %v2101 = vmul.f32 %v2031, %v25
  %v2102 = vmul.f32 %v2036, %v25
  %v2103 = vmul.f32 %v2039, %v25
  %v2104 = vmul.f32 %v2044, %v25
  %v2105 = vmul.f32 %v2047, %v25
  %v2106 = vmul.f32 %v2052, %v25
  %v2107 = vmul.f32 %v2055, %v25
  %v2108 = vmul.f32 %v2060, %v25
  %v2109 = vmul.f32 %v2063, %v25
  %v2110 = vmul.f32 %v2068, %v25
  %v2111 = vmul.f32 %v2071, %v25
  %v2112 = vmul.f32 %v2076, %v25
  %v2113 = vmul.f32 %v2079, %v25
  %2114 = vrot.lane.b32.xlu0 %v1956, 120
  %v2115 = vpop.permute.xlu0 %2114
  %2116 = vrot.lane.b32.xlu0 %v1959, 120
  %v2117 = vpop.permute.xlu0 %2116
  %2118 = vrot.lane.b32.xlu0 %v1964, 120
  %v2119 = vpop.permute.xlu0 %2118
  %2120 = vrot.lane.b32.xlu0 %v1967, 120
  %v2121 = vpop.permute.xlu0 %2120
  %2122 = vrot.lane.b32.xlu0 %v1972, 120
  %v2123 = vpop.permute.xlu0 %2122
  %2124 = vrot.lane.b32.xlu0 %v1975, 120
  %v2125 = vpop.permute.xlu0 %2124
  %2126 = vrot.lane.b32.xlu0 %v1980, 120
  %v2127 = vpop.permute.xlu0 %2126
  %2128 = vrot.lane.b32.xlu0 %v1983, 120
  %v2129 = vpop.permute.xlu0 %2128
  %2130 = vrot.lane.b32.xlu0 %v1988, 120
  %v2131 = vpop.permute.xlu0 %2130
  %2132 = vrot.lane.b32.xlu0 %v1991, 120
  %v2133 = vpop.permute.xlu0 %2132
  %2134 = vrot.lane.b32.xlu0 %v1996, 120
  %v2135 = vpop.permute.xlu0 %2134
  %2136 = vrot.lane.b32.xlu0 %v1999, 120
  %v2137 = vpop.permute.xlu0 %2136
  %2138 = vrot.lane.b32.xlu0 %v2004, 120
  %v2139 = vpop.permute.xlu0 %2138
  %2140 = vrot.lane.b32.xlu0 %v2007, 120
  %v2141 = vpop.permute.xlu0 %2140
  %2142 = vrot.lane.b32.xlu0 %v2012, 120
  %v2143 = vpop.permute.xlu0 %2142
  %2144 = vrot.lane.b32.xlu0 %v2015, 120
  %v2145 = vpop.permute.xlu0 %2144
  %2146 = vrot.lane.b32.xlu0 %v2020, 120
  %v2147 = vpop.permute.xlu0 %2146
  %2148 = vrot.lane.b32.xlu0 %v2023, 120
  %v2149 = vpop.permute.xlu0 %2148
  %2150 = vrot.lane.b32.xlu0 %v2028, 120
  %v2151 = vpop.permute.xlu0 %2150
  %2152 = vrot.lane.b32.xlu0 %v2031, 120
  %v2153 = vpop.permute.xlu0 %2152
  %2154 = vrot.lane.b32.xlu0 %v2036, 120
  %v2155 = vpop.permute.xlu0 %2154
  %2156 = vrot.lane.b32.xlu0 %v2039, 120
  %v2157 = vpop.permute.xlu0 %2156
  %2158 = vrot.lane.b32.xlu0 %v2044, 120
  %v2159 = vpop.permute.xlu0 %2158
  %2160 = vrot.lane.b32.xlu0 %v2047, 120
  %v2161 = vpop.permute.xlu0 %2160
  %2162 = vrot.lane.b32.xlu0 %v2052, 120
  %v2163 = vpop.permute.xlu0 %2162
  %2164 = vrot.lane.b32.xlu0 %v2055, 120
  %v2165 = vpop.permute.xlu0 %2164
  %2166 = vrot.lane.b32.xlu0 %v2060, 120
  %v2167 = vpop.permute.xlu0 %2166
  %2168 = vrot.lane.b32.xlu0 %v2063, 120
  %v2169 = vpop.permute.xlu0 %2168
  %2170 = vrot.lane.b32.xlu0 %v2068, 120
  %v2171 = vpop.permute.xlu0 %2170
  %2172 = vrot.lane.b32.xlu0 %v2071, 120
  %v2173 = vpop.permute.xlu0 %2172
  %2174 = vrot.lane.b32.xlu0 %v2076, 120
  %v2175 = vpop.permute.xlu0 %2174
  %2176 = vrot.lane.b32.xlu0 %v2079, 120
  %v2177 = vpop.permute.xlu0 %2176
  %v2178 = vmul.f32 %v2115, %v25
  %v2179 = vmul.f32 %v2117, %v25
  %v2180 = vmul.f32 %v2119, %v25
  %v2181 = vmul.f32 %v2121, %v25
  %v2182 = vmul.f32 %v2123, %v25
  %v2183 = vmul.f32 %v2125, %v25
  %v2184 = vmul.f32 %v2127, %v25
  %v2185 = vmul.f32 %v2129, %v25
  %v2186 = vmul.f32 %v2131, %v25
  %v2187 = vmul.f32 %v2133, %v25
  %v2188 = vmul.f32 %v2135, %v25
  %v2189 = vmul.f32 %v2137, %v25
  %v2190 = vmul.f32 %v2139, %v25
  %v2191 = vmul.f32 %v2141, %v25
  %v2192 = vmul.f32 %v2143, %v25
  %v2193 = vmul.f32 %v2145, %v25
  %v2194 = vmul.f32 %v2147, %v25
  %v2195 = vmul.f32 %v2149, %v25
  %v2196 = vmul.f32 %v2151, %v25
  %v2197 = vmul.f32 %v2153, %v25
  %v2198 = vmul.f32 %v2155, %v25
  %v2199 = vmul.f32 %v2157, %v25
  %v2200 = vmul.f32 %v2159, %v25
  %v2201 = vmul.f32 %v2161, %v25
  %v2202 = vmul.f32 %v2163, %v25
  %v2203 = vmul.f32 %v2165, %v25
  %v2204 = vmul.f32 %v2167, %v25
  %v2205 = vmul.f32 %v2169, %v25
  %v2206 = vmul.f32 %v2171, %v25
  %v2207 = vmul.f32 %v2173, %v25
  %v2208 = vmul.f32 %v2175, %v25
  %v2209 = vmul.f32 %v2177, %v25
  %v2210 = vmul.f32 %v2082, 1.442695
  %v2211 = vpow.pop %v2210
  %v2212 = vmul.f32 %v2083, 1.442695
  %v2213 = vpow.pop %v2212
  %v2214 = vmul.f32 %v2084, 1.442695
  %v2215 = vpow.pop %v2214
  %v2216 = vmul.f32 %v2085, 1.442695
  %v2217 = vpow.pop %v2216
  %v2218 = vmul.f32 %v2086, 1.442695
  %v2219 = vpow.pop %v2218
  %v2220 = vmul.f32 %v2087, 1.442695
  %v2221 = vpow.pop %v2220
  %v2222 = vmul.f32 %v2088, 1.442695
  %v2223 = vpow.pop %v2222
  %v2224 = vmul.f32 %v2089, 1.442695
  %v2225 = vpow.pop %v2224
  %v2226 = vmul.f32 %v2090, 1.442695
  %v2227 = vpow.pop %v2226
  %v2228 = vmul.f32 %v2091, 1.442695
  %v2229 = vpow.pop %v2228
  %v2230 = vmul.f32 %v2092, 1.442695
  %v2231 = vpow.pop %v2230
  %v2232 = vmul.f32 %v2093, 1.442695
  %v2233 = vpow.pop %v2232
  %v2234 = vmul.f32 %v2094, 1.442695
  %v2235 = vpow.pop %v2234
  %v2236 = vmul.f32 %v2095, 1.442695
  %v2237 = vpow.pop %v2236
  %v2238 = vmul.f32 %v2096, 1.442695
  %v2239 = vpow.pop %v2238
  %v2240 = vmul.f32 %v2097, 1.442695
  %v2241 = vpow.pop %v2240
  %v2242 = vmul.f32 %v2098, 1.442695
  %v2243 = vpow.pop %v2242
  %v2244 = vmul.f32 %v2099, 1.442695
  %v2245 = vpow.pop %v2244
  %v2246 = vmul.f32 %v2100, 1.442695
  %v2247 = vpow.pop %v2246
  %v2248 = vmul.f32 %v2101, 1.442695
  %v2249 = vpow.pop %v2248
  %v2250 = vmul.f32 %v2102, 1.442695
  %v2251 = vpow.pop %v2250
  %v2252 = vmul.f32 %v2103, 1.442695
  %v2253 = vpow.pop %v2252
  %v2254 = vmul.f32 %v2104, 1.442695
  %v2255 = vpow.pop %v2254
  %v2256 = vmul.f32 %v2105, 1.442695
  %v2257 = vpow.pop %v2256
  %v2258 = vmul.f32 %v2106, 1.442695
  %v2259 = vpow.pop %v2258
  %v2260 = vmul.f32 %v2107, 1.442695
  %v2261 = vpow.pop %v2260
  %v2262 = vmul.f32 %v2108, 1.442695
  %v2263 = vpow.pop %v2262
  %v2264 = vmul.f32 %v2109, 1.442695
  %v2265 = vpow.pop %v2264
  %v2266 = vmul.f32 %v2110, 1.442695
  %v2267 = vpow.pop %v2266
  %v2268 = vmul.f32 %v2111, 1.442695
  %v2269 = vpow.pop %v2268
  %v2270 = vmul.f32 %v2112, 1.442695
  %v2271 = vpow.pop %v2270
  %v2272 = vmul.f32 %v2113, 1.442695
  %v2273 = vpow.pop %v2272
  %v2274 = vmul.f32 %v1150, %v2211
  %v2275 = vmul.f32 %v1151, %v2213
  %v2276 = vmul.f32 %v1152, %v2215
  %v2277 = vmul.f32 %v1153, %v2217
  %v2278 = vmul.f32 %v1154, %v2219
  %v2279 = vmul.f32 %v1155, %v2221
  %v2280 = vmul.f32 %v1156, %v2223
  %v2281 = vmul.f32 %v1157, %v2225
  %v2282 = vmul.f32 %v1158, %v2227
  %v2283 = vmul.f32 %v1159, %v2229
  %v2284 = vmul.f32 %v1160, %v2231
  %v2285 = vmul.f32 %v1161, %v2233
  %v2286 = vmul.f32 %v1162, %v2235
  %v2287 = vmul.f32 %v1163, %v2237
  %v2288 = vmul.f32 %v1164, %v2239
  %v2289 = vmul.f32 %v1165, %v2241
  %v2290 = vmul.f32 %v1166, %v2243
  %v2291 = vmul.f32 %v1167, %v2245
  %v2292 = vmul.f32 %v1168, %v2247
  %v2293 = vmul.f32 %v1169, %v2249
  %v2294 = vmul.f32 %v1170, %v2251
  %v2295 = vmul.f32 %v1171, %v2253
  %v2296 = vmul.f32 %v1172, %v2255
  %v2297 = vmul.f32 %v1173, %v2257
  %v2298 = vmul.f32 %v1174, %v2259
  %v2299 = vmul.f32 %v1175, %v2261
  %v2300 = vmul.f32 %v1176, %v2263
  %v2301 = vmul.f32 %v1177, %v2265
  %v2302 = vmul.f32 %v1178, %v2267
  %v2303 = vmul.f32 %v1179, %v2269
  %v2304 = vmul.f32 %v1180, %v2271
  %v2305 = vmul.f32 %v1181, %v2273
  %v2306 = vadd.f32 %v2274, %v2178
  %v2307 = vadd.f32 %v2275, %v2179
  %v2308 = vadd.f32 %v2276, %v2180
  %v2309 = vadd.f32 %v2277, %v2181
  %v2310 = vadd.f32 %v2278, %v2182
  %v2311 = vadd.f32 %v2279, %v2183
  %v2312 = vadd.f32 %v2280, %v2184
  %v2313 = vadd.f32 %v2281, %v2185
  %v2314 = vadd.f32 %v2282, %v2186
  %v2315 = vadd.f32 %v2283, %v2187
  %v2316 = vadd.f32 %v2284, %v2188
  %v2317 = vadd.f32 %v2285, %v2189
  %v2318 = vadd.f32 %v2286, %v2190
  %v2319 = vadd.f32 %v2287, %v2191
  %v2320 = vadd.f32 %v2288, %v2192
  %v2321 = vadd.f32 %v2289, %v2193
  %v2322 = vadd.f32 %v2290, %v2194
  %v2323 = vadd.f32 %v2291, %v2195
  %v2324 = vadd.f32 %v2292, %v2196
  %v2325 = vadd.f32 %v2293, %v2197
  %v2326 = vadd.f32 %v2294, %v2198
  %v2327 = vadd.f32 %v2295, %v2199
  %v2328 = vadd.f32 %v2296, %v2200
  %v2329 = vadd.f32 %v2297, %v2201
  %v2330 = vadd.f32 %v2298, %v2202
  %v2331 = vadd.f32 %v2299, %v2203
  %v2332 = vadd.f32 %v2300, %v2204
  %v2333 = vadd.f32 %v2301, %v2205
  %v2334 = vadd.f32 %v2302, %v2206
  %v2335 = vadd.f32 %v2303, %v2207
  %v2336 = vadd.f32 %v2304, %v2208
  %v2337 = vadd.f32 %v2305, %v2209
  %v2338 = vadd.f32 %v1182, %v2082
  %v2339 = vadd.f32 %v1183, %v2083
  %v2340 = vadd.f32 %v1184, %v2084
  %v2341 = vadd.f32 %v1185, %v2085
  %v2342 = vadd.f32 %v1186, %v2086
  %v2343 = vadd.f32 %v1187, %v2087
  %v2344 = vadd.f32 %v1188, %v2088
  %v2345 = vadd.f32 %v1189, %v2089
  %v2346 = vadd.f32 %v1190, %v2090
  %v2347 = vadd.f32 %v1191, %v2091
  %v2348 = vadd.f32 %v1192, %v2092
  %v2349 = vadd.f32 %v1193, %v2093
  %v2350 = vadd.f32 %v1194, %v2094
  %v2351 = vadd.f32 %v1195, %v2095
  %v2352 = vadd.f32 %v1196, %v2096
  %v2353 = vadd.f32 %v1197, %v2097
  %v2354 = vadd.f32 %v1198, %v2098
  %v2355 = vadd.f32 %v1199, %v2099
  %v2356 = vadd.f32 %v1200, %v2100
  %v2357 = vadd.f32 %v1201, %v2101
  %v2358 = vadd.f32 %v1202, %v2102
  %v2359 = vadd.f32 %v1203, %v2103
  %v2360 = vadd.f32 %v1204, %v2104
  %v2361 = vadd.f32 %v1205, %v2105
  %v2362 = vadd.f32 %v1206, %v2106
  %v2363 = vadd.f32 %v1207, %v2107
  %v2364 = vadd.f32 %v1208, %v2108
  %v2365 = vadd.f32 %v1209, %v2109
  %v2366 = vadd.f32 %v1210, %v2110
  %v2367 = vadd.f32 %v1211, %v2111
  %v2368 = vadd.f32 %v1212, %v2112
  %v2369 = vadd.f32 %v1213, %v2113
  %s2370 = scalar_lea.vmem %s4, 8
  %v2371 = vld [vmem:[%s2370] sm:$0x7]
  %v2372 = vpack.c.bf16 %v2307, %v2306
  %v2373 = vpack.c.bf16 %v2309, %v2308
  %v2374 = vpack.c.bf16 %v2311, %v2310
  %v2375 = vpack.c.bf16 %v2313, %v2312
  %v2376 = vpack.c.bf16 %v2315, %v2314
  %v2377 = vpack.c.bf16 %v2317, %v2316
  %v2378 = vpack.c.bf16 %v2319, %v2318
  %v2379 = vpack.c.bf16 %v2321, %v2320
  %v2380 = vpack.c.bf16 %v2323, %v2322
  %v2381 = vpack.c.bf16 %v2325, %v2324
  %v2382 = vpack.c.bf16 %v2327, %v2326
  %v2383 = vpack.c.bf16 %v2329, %v2328
  %v2384 = vpack.c.bf16 %v2331, %v2330
  %v2385 = vpack.c.bf16 %v2333, %v2332
  %v2386 = vpack.c.bf16 %v2335, %v2334
  %v2387 = vpack.c.bf16 %v2337, %v2336
  %s2388 = scalar_lea.vmem %s1, 128
  %v2389 = vld [vmem:[%s2388] sm:$0xf]
  %v2390 = vld [vmem:[%s2388 + $0x4] sm:$0xf]
  %v2391 = vld [vmem:[%s2388 + $0x8] sm:$0xf]
  %v2392 = vld [vmem:[%s2388 + $0xc] sm:$0xf]
  %v2393 = vld [vmem:[%s2388 + $0x10] sm:$0xf]
  %v2394 = vld [vmem:[%s2388 + $0x14] sm:$0xf]
  %v2395 = vld [vmem:[%s2388 + $0x18] sm:$0xf]
  %v2396 = vld [vmem:[%s2388 + $0x1c] sm:$0xf]
  %v2397 = vld [vmem:[%s2388 + $0x20] sm:$0xf]
  %v2398 = vld [vmem:[%s2388 + $0x24] sm:$0xf]
  %v2399 = vld [vmem:[%s2388 + $0x28] sm:$0xf]
  %v2400 = vld [vmem:[%s2388 + $0x2c] sm:$0xf]
  %v2401 = vld [vmem:[%s2388 + $0x30] sm:$0xf]
  %v2402 = vld [vmem:[%s2388 + $0x34] sm:$0xf]
  %v2403 = vld [vmem:[%s2388 + $0x38] sm:$0xf]
  %v2404 = vld [vmem:[%s2388 + $0x3c] sm:$0xf]
  %v2405 = vlaneseq
  %v2406 = vshrl.u32 %v2405, 7
  %v2407 = vsub.s32 0, %v2406
  %v2408 = vrot.slane %v2371, %v2407
  %v2425 = vunpack.c.l.b16 %v2389
  %v2426 = vunpack.c.l.b16 %v2390
  %v2427 = vunpack.c.l.b16 %v2391
  %v2428 = vunpack.c.l.b16 %v2392
  %v2429 = vunpack.c.l.b16 %v2393
  %v2430 = vunpack.c.l.b16 %v2394
  %v2431 = vunpack.c.l.b16 %v2395
  %v2432 = vunpack.c.l.b16 %v2396
  %v2433 = vunpack.c.l.b16 %v2397
  %v2434 = vunpack.c.l.b16 %v2398
  %v2435 = vunpack.c.l.b16 %v2399
  %v2436 = vunpack.c.l.b16 %v2400
  %v2437 = vunpack.c.l.b16 %v2401
  %v2438 = vunpack.c.l.b16 %v2402
  %v2439 = vunpack.c.l.b16 %v2403
  %v2440 = vunpack.c.l.b16 %v2404
  %v2441 = vpack.c.b16 %v2426, %v2425
  %v2442 = vpack.c.b16 %v2428, %v2427
  %v2443 = vpack.c.b16 %v2430, %v2429
  %v2444 = vpack.c.b16 %v2432, %v2431
  %v2445 = vpack.c.b16 %v2434, %v2433
  %v2446 = vpack.c.b16 %v2436, %v2435
  %v2447 = vpack.c.b16 %v2438, %v2437
  %v2448 = vpack.c.b16 %v2440, %v2439
  %2457 = vmatprep.subr.bf16.mxu0 0
  %2458 = vmatpush1.bf16.msra.mxu0 %v2441
  %2459 = vmatprep.subr.bf16.mxu0 0
  %2460 = vmatpush1.bf16.msra.mxu0 %v2442
  %2461 = vmatprep.subr.bf16.mxu0 0
  %2462 = vmatpush1.bf16.msra.mxu0 %v2443
  %2463 = vmatprep.subr.bf16.mxu0 0
  %2464 = vmatpush1.bf16.msra.mxu0 %v2444
  %2465 = vmatprep.subr.bf16.mxu0 0
  %2466 = vmatpush1.bf16.msra.mxu0 %v2445
  %2467 = vmatprep.subr.bf16.mxu0 0
  %2468 = vmatpush1.bf16.msra.mxu0 %v2446
  %2469 = vmatprep.subr.bf16.mxu0 0
  %2470 = vmatpush1.bf16.msra.mxu0 %v2447
  %2471 = vmatprep.subr.bf16.mxu0 0
  %2472 = vmatpush1.bf16.msra.mxu0 %v2448
  %2473 = vmatprep.subr.bf16.mxu0 0
  %2474 = vmatpush1.bf16.msra.mxu0 0
  %2475 = vmatprep.subr.bf16.mxu0 0
  %2476 = vmatpush1.bf16.msra.mxu0 0
  %2477 = vmatprep.subr.bf16.mxu0 0
  %2478 = vmatpush1.bf16.msra.mxu0 0
  %2479 = vmatprep.subr.bf16.mxu0 0
  %2480 = vmatpush1.bf16.msra.mxu0 0
  %2481 = vmatprep.subr.bf16.mxu0 0
  %2482 = vmatpush1.bf16.msra.mxu0 0
  %2483 = vmatprep.subr.bf16.mxu0 0
  %2484 = vmatpush1.bf16.msra.mxu0 0
  %2485 = vmatprep.subr.bf16.mxu0 0
  %2486 = vmatpush1.bf16.msra.mxu0 0
  %2487 = vmatprep.subr.bf16.mxu0 0
  %2488 = vmatpush1.bf16.msra.mxu0 0
  %2489 = vmatprep.mubr.bf16.mxu0 0
  %2490 = vmatmul.mubr.bf16.gmra.mrb[0].mxu0 %v2372
  %v2491 = vpop.f32.mrb[0].mxu0
  %v2492 = vadd.f32 %v2408, %v2491
  %v2493 = vpop.f32.mrb[0].mxu0
  %v2494 = vpop.f32.mrb[0].mxu0
  %v2495 = vadd.f32 %v2408, %v2494
  %v2496 = vpop.f32.mrb[0].mxu0
  %2497 = vmatprep.mubr.bf16.mxu0 0
  %2498 = vmatmul.mubr.bf16.gmra.mrb[0].mxu0 %v2373
  %v2499 = vpop.f32.mrb[0].mxu0
  %v2500 = vadd.f32 %v2408, %v2499
  %v2501 = vpop.f32.mrb[0].mxu0
  %v2502 = vpop.f32.mrb[0].mxu0
  %v2503 = vadd.f32 %v2408, %v2502
  %v2504 = vpop.f32.mrb[0].mxu0
  %2505 = vmatprep.mubr.bf16.mxu0 0
  %2506 = vmatmul.mubr.bf16.gmra.mrb[0].mxu0 %v2374
  %v2507 = vpop.f32.mrb[0].mxu0
  %v2508 = vadd.f32 %v2408, %v2507
  %v2509 = vpop.f32.mrb[0].mxu0
  %v2510 = vpop.f32.mrb[0].mxu0
  %v2511 = vadd.f32 %v2408, %v2510
  %v2512 = vpop.f32.mrb[0].mxu0
  %2513 = vmatprep.mubr.bf16.mxu0 0
  %2514 = vmatmul.mubr.bf16.gmra.mrb[0].mxu0 %v2375
  %v2515 = vpop.f32.mrb[0].mxu0
  %v2516 = vadd.f32 %v2408, %v2515
  %v2517 = vpop.f32.mrb[0].mxu0
  %v2518 = vpop.f32.mrb[0].mxu0
  %v2519 = vadd.f32 %v2408, %v2518
  %v2520 = vpop.f32.mrb[0].mxu0
  %2521 = vmatprep.mubr.bf16.mxu0 0
  %2522 = vmatmul.mubr.bf16.gmra.mrb[0].mxu0 %v2376
  %v2523 = vpop.f32.mrb[0].mxu0
  %v2524 = vadd.f32 %v2408, %v2523
  %v2525 = vpop.f32.mrb[0].mxu0
  %v2526 = vpop.f32.mrb[0].mxu0
  %v2527 = vadd.f32 %v2408, %v2526
  %v2528 = vpop.f32.mrb[0].mxu0
  %2529 = vmatprep.mubr.bf16.mxu0 0
  %2530 = vmatmul.mubr.bf16.gmra.mrb[0].mxu0 %v2377
  %v2531 = vpop.f32.mrb[0].mxu0
  %v2532 = vadd.f32 %v2408, %v2531
  %v2533 = vpop.f32.mrb[0].mxu0
  %v2534 = vpop.f32.mrb[0].mxu0
  %v2535 = vadd.f32 %v2408, %v2534
  %v2536 = vpop.f32.mrb[0].mxu0
  %2537 = vmatprep.mubr.bf16.mxu0 0
  %2538 = vmatmul.mubr.bf16.gmra.mrb[0].mxu0 %v2378
  %v2539 = vpop.f32.mrb[0].mxu0
  %v2540 = vadd.f32 %v2408, %v2539
  %v2541 = vpop.f32.mrb[0].mxu0
  %v2542 = vpop.f32.mrb[0].mxu0
  %v2543 = vadd.f32 %v2408, %v2542
  %v2544 = vpop.f32.mrb[0].mxu0
  %2545 = vmatprep.mubr.bf16.mxu0 0
  %2546 = vmatmul.mubr.bf16.gmra.mrb[0].mxu0 %v2379
  %v2547 = vpop.f32.mrb[0].mxu0
  %v2548 = vadd.f32 %v2408, %v2547
  %v2549 = vpop.f32.mrb[0].mxu0
  %v2550 = vpop.f32.mrb[0].mxu0
  %v2551 = vadd.f32 %v2408, %v2550
  %v2552 = vpop.f32.mrb[0].mxu0
  %2553 = vmatprep.mubr.bf16.mxu0 0
  %2554 = vmatmul.mubr.bf16.gmra.mrb[0].mxu0 %v2380
  %v2555 = vpop.f32.mrb[0].mxu0
  %v2556 = vadd.f32 %v2408, %v2555
  %v2557 = vpop.f32.mrb[0].mxu0
  %v2558 = vpop.f32.mrb[0].mxu0
  %v2559 = vadd.f32 %v2408, %v2558
  %v2560 = vpop.f32.mrb[0].mxu0
  %2561 = vmatprep.mubr.bf16.mxu0 0
  %2562 = vmatmul.mubr.bf16.gmra.mrb[0].mxu0 %v2381
  %v2563 = vpop.f32.mrb[0].mxu0
  %v2564 = vadd.f32 %v2408, %v2563
  %v2565 = vpop.f32.mrb[0].mxu0
  %v2566 = vpop.f32.mrb[0].mxu0
  %v2567 = vadd.f32 %v2408, %v2566
  %v2568 = vpop.f32.mrb[0].mxu0
  %2569 = vmatprep.mubr.bf16.mxu0 0
  %2570 = vmatmul.mubr.bf16.gmra.mrb[0].mxu0 %v2382
  %v2571 = vpop.f32.mrb[0].mxu0
  %v2572 = vadd.f32 %v2408, %v2571
  %v2573 = vpop.f32.mrb[0].mxu0
  %v2574 = vpop.f32.mrb[0].mxu0
  %v2575 = vadd.f32 %v2408, %v2574
  %v2576 = vpop.f32.mrb[0].mxu0
  %2577 = vmatprep.mubr.bf16.mxu0 0
  %2578 = vmatmul.mubr.bf16.gmra.mrb[0].mxu0 %v2383
  %v2579 = vpop.f32.mrb[0].mxu0
  %v2580 = vadd.f32 %v2408, %v2579
  %v2581 = vpop.f32.mrb[0].mxu0
  %v2582 = vpop.f32.mrb[0].mxu0
  %v2583 = vadd.f32 %v2408, %v2582
  %v2584 = vpop.f32.mrb[0].mxu0
  %2585 = vmatprep.mubr.bf16.mxu0 0
  %2586 = vmatmul.mubr.bf16.gmra.mrb[0].mxu0 %v2384
  %v2587 = vpop.f32.mrb[0].mxu0
  %v2588 = vadd.f32 %v2408, %v2587
  %v2589 = vpop.f32.mrb[0].mxu0
  %v2590 = vpop.f32.mrb[0].mxu0
  %v2591 = vadd.f32 %v2408, %v2590
  %v2592 = vpop.f32.mrb[0].mxu0
  %2593 = vmatprep.mubr.bf16.mxu0 0
  %2594 = vmatmul.mubr.bf16.gmra.mrb[0].mxu0 %v2385
  %v2595 = vpop.f32.mrb[0].mxu0
  %v2596 = vadd.f32 %v2408, %v2595
  %v2597 = vpop.f32.mrb[0].mxu0
  %v2598 = vpop.f32.mrb[0].mxu0
  %v2599 = vadd.f32 %v2408, %v2598
  %v2600 = vpop.f32.mrb[0].mxu0
  %2601 = vmatprep.mubr.bf16.mxu0 0
  %2602 = vmatmul.mubr.bf16.gmra.mrb[0].mxu0 %v2386
  %v2603 = vpop.f32.mrb[0].mxu0
  %v2604 = vadd.f32 %v2408, %v2603
  %v2605 = vpop.f32.mrb[0].mxu0
  %v2606 = vpop.f32.mrb[0].mxu0
  %v2607 = vadd.f32 %v2408, %v2606
  %v2608 = vpop.f32.mrb[0].mxu0
  %2609 = vmatprep.mubr.bf16.mxu0 0
  %2610 = vmatmul.mubr.bf16.gmra.mrb[0].mxu0 %v2387
  %v2611 = vpop.f32.mrb[0].mxu0
  %v2612 = vadd.f32 %v2408, %v2611
  %v2613 = vpop.f32.mrb[0].mxu0
  %v2614 = vpop.f32.mrb[0].mxu0
  %v2615 = vadd.f32 %v2408, %v2614
  %v2616 = vpop.f32.mrb[0].mxu0
  %2617 = vdwg.mxu0
  %v2618 = vmul.f32 %v2492, 0.01
  %v2619 = vmul.f32 %v2495, 0.01
  %v2620 = vmul.f32 %v2500, 0.01
  %v2621 = vmul.f32 %v2503, 0.01
  %v2622 = vmul.f32 %v2508, 0.01
  %v2623 = vmul.f32 %v2511, 0.01
  %v2624 = vmul.f32 %v2516, 0.01
  %v2625 = vmul.f32 %v2519, 0.01
  %v2626 = vmul.f32 %v2524, 0.01
  %v2627 = vmul.f32 %v2527, 0.01
  %v2628 = vmul.f32 %v2532, 0.01
  %v2629 = vmul.f32 %v2535, 0.01
  %v2630 = vmul.f32 %v2540, 0.01
  %v2631 = vmul.f32 %v2543, 0.01
  %v2632 = vmul.f32 %v2548, 0.01
  %v2633 = vmul.f32 %v2551, 0.01
  %v2634 = vmul.f32 %v2556, 0.01
  %v2635 = vmul.f32 %v2559, 0.01
  %v2636 = vmul.f32 %v2564, 0.01
  %v2637 = vmul.f32 %v2567, 0.01
  %v2638 = vmul.f32 %v2572, 0.01
  %v2639 = vmul.f32 %v2575, 0.01
  %v2640 = vmul.f32 %v2580, 0.01
  %v2641 = vmul.f32 %v2583, 0.01
  %v2642 = vmul.f32 %v2588, 0.01
  %v2643 = vmul.f32 %v2591, 0.01
  %v2644 = vmul.f32 %v2596, 0.01
  %v2645 = vmul.f32 %v2599, 0.01
  %v2646 = vmul.f32 %v2604, 0.01
  %v2647 = vmul.f32 %v2607, 0.01
  %v2648 = vmul.f32 %v2612, 0.01
  %v2649 = vmul.f32 %v2615, 0.01
  %v2650 = vmax.f32 %v2492, %v2618
  %v2651 = vmax.f32 %v2495, %v2619
  %v2652 = vmax.f32 %v2500, %v2620
  %v2653 = vmax.f32 %v2503, %v2621
  %v2654 = vmax.f32 %v2508, %v2622
  %v2655 = vmax.f32 %v2511, %v2623
  %v2656 = vmax.f32 %v2516, %v2624
  %v2657 = vmax.f32 %v2519, %v2625
  %v2658 = vmax.f32 %v2524, %v2626
  %v2659 = vmax.f32 %v2527, %v2627
  %v2660 = vmax.f32 %v2532, %v2628
  %v2661 = vmax.f32 %v2535, %v2629
  %v2662 = vmax.f32 %v2540, %v2630
  %v2663 = vmax.f32 %v2543, %v2631
  %v2664 = vmax.f32 %v2548, %v2632
  %v2665 = vmax.f32 %v2551, %v2633
  %v2666 = vmax.f32 %v2556, %v2634
  %v2667 = vmax.f32 %v2559, %v2635
  %v2668 = vmax.f32 %v2564, %v2636
  %v2669 = vmax.f32 %v2567, %v2637
  %v2670 = vmax.f32 %v2572, %v2638
  %v2671 = vmax.f32 %v2575, %v2639
  %v2672 = vmax.f32 %v2580, %v2640
  %v2673 = vmax.f32 %v2583, %v2641
  %v2674 = vmax.f32 %v2588, %v2642
  %v2675 = vmax.f32 %v2591, %v2643
  %v2676 = vmax.f32 %v2596, %v2644
  %v2677 = vmax.f32 %v2599, %v2645
  %v2678 = vmax.f32 %v2604, %v2646
  %v2679 = vmax.f32 %v2607, %v2647
  %v2680 = vmax.f32 %v2612, %v2648
  %v2681 = vmax.f32 %v2615, %v2649
  %v2682 = vpack.c.bf16 %v2651, %v2650
  %v2683 = vpack.c.bf16 %v2653, %v2652
  %v2684 = vpack.c.bf16 %v2655, %v2654
  %v2685 = vpack.c.bf16 %v2657, %v2656
  %v2686 = vpack.c.bf16 %v2659, %v2658
  %v2687 = vpack.c.bf16 %v2661, %v2660
  %v2688 = vpack.c.bf16 %v2663, %v2662
  %v2689 = vpack.c.bf16 %v2665, %v2664
  %v2690 = vpack.c.bf16 %v2667, %v2666
  %v2691 = vpack.c.bf16 %v2669, %v2668
  %v2692 = vpack.c.bf16 %v2671, %v2670
  %v2693 = vpack.c.bf16 %v2673, %v2672
  %v2694 = vpack.c.bf16 %v2675, %v2674
  %v2695 = vpack.c.bf16 %v2677, %v2676
  %v2696 = vpack.c.bf16 %v2679, %v2678
  %v2697 = vpack.c.bf16 %v2681, %v2680
  %s2698 = scalar_lea.vmem %s2, 32
  %v2699 = vld [vmem:[%s2698] sm:$0xf]
  %v2700 = vld [vmem:[%s2698 + $0x4] sm:$0xf]
  %v2701 = vld [vmem:[%s2698 + $0x8] sm:$0xf]
  %v2702 = vld [vmem:[%s2698 + $0xc] sm:$0xf]
  %v2703 = vlaneseq
  %v2704 = vshrl.u32 %v2703, 7
  %v2705 = vsub.s32 1, %v2704
  %v2706 = vrot.slane %v2371, %v2705
  %v2711 = vunpack.c.l.b16 %v2699
  %v2712 = vunpack.c.l.b16 %v2700
  %v2713 = vunpack.c.l.b16 %v2701
  %v2714 = vunpack.c.l.b16 %v2702
  %v2715 = vpack.c.b16 %v2712, %v2711
  %v2716 = vpack.c.b16 %v2714, %v2713
  %v2720 = vsel %vm407, %v2682, 0
  %v2723 = vsel %vm407, %v2683, 0
  %v2726 = vsel %vm407, %v2684, 0
  %v2729 = vsel %vm407, %v2685, 0
  %v2732 = vsel %vm407, %v2686, 0
  %v2735 = vsel %vm407, %v2687, 0
  %v2738 = vsel %vm407, %v2688, 0
  %v2741 = vsel %vm407, %v2689, 0
  %v2744 = vsel %vm407, %v2690, 0
  %v2747 = vsel %vm407, %v2691, 0
  %v2750 = vsel %vm407, %v2692, 0
  %v2753 = vsel %vm407, %v2693, 0
  %v2756 = vsel %vm407, %v2694, 0
  %v2759 = vsel %vm407, %v2695, 0
  %v2762 = vsel %vm407, %v2696, 0
  %v2765 = vsel %vm407, %v2697, 0
  %2767 = vmatprep.subr.bf16.mxu0 0
  %2768 = vmatpush1.bf16.msra.mxu0 %v2715
  %2769 = vmatprep.subr.bf16.mxu0 0
  %2770 = vmatpush1.bf16.msra.mxu0 %v2716
  %2771 = vmatprep.subr.bf16.mxu0 0
  %2772 = vmatpush1.bf16.msra.mxu0 0
  %2773 = vmatprep.subr.bf16.mxu0 0
  %2774 = vmatpush1.bf16.msra.mxu0 0
  %2775 = vmatprep.subr.bf16.mxu0 0
  %2776 = vmatpush1.bf16.msra.mxu0 0
  %2777 = vmatprep.subr.bf16.mxu0 0
  %2778 = vmatpush1.bf16.msra.mxu0 0
  %2779 = vmatprep.subr.bf16.mxu0 0
  %2780 = vmatpush1.bf16.msra.mxu0 0
  %2781 = vmatprep.subr.bf16.mxu0 0
  %2782 = vmatpush1.bf16.msra.mxu0 0
  %2783 = vmatprep.subr.bf16.mxu0 0
  %2784 = vmatpush1.bf16.msra.mxu0 0
  %2785 = vmatprep.subr.bf16.mxu0 0
  %2786 = vmatpush1.bf16.msra.mxu0 0
  %2787 = vmatprep.subr.bf16.mxu0 0
  %2788 = vmatpush1.bf16.msra.mxu0 0
  %2789 = vmatprep.subr.bf16.mxu0 0
  %2790 = vmatpush1.bf16.msra.mxu0 0
  %2791 = vmatprep.subr.bf16.mxu0 0
  %2792 = vmatpush1.bf16.msra.mxu0 0
  %2793 = vmatprep.subr.bf16.mxu0 0
  %2794 = vmatpush1.bf16.msra.mxu0 0
  %2795 = vmatprep.subr.bf16.mxu0 0
  %2796 = vmatpush1.bf16.msra.mxu0 0
  %2797 = vmatprep.subr.bf16.mxu0 0
  %2798 = vmatpush1.bf16.msra.mxu0 0
  %2799 = vmatprep.mubr.bf16.mxu0 0
  %2800 = vmatmul.mubr.bf16.gmra.mrb[0].mxu0 %v2720
  %v2801 = vpop.f32.mrb[0].mxu0
  %v2802 = vadd.f32 %v2706, %v2801
  %v2803 = vpop.f32.mrb[0].mxu0
  %v2804 = vpop.f32.mrb[0].mxu0
  %v2805 = vadd.f32 %v2706, %v2804
  %v2806 = vpop.f32.mrb[0].mxu0
  %2807 = vmatprep.mubr.bf16.mxu0 0
  %2808 = vmatmul.mubr.bf16.gmra.mrb[0].mxu0 %v2723
  %v2809 = vpop.f32.mrb[0].mxu0
  %v2810 = vadd.f32 %v2706, %v2809
  %v2811 = vpop.f32.mrb[0].mxu0
  %v2812 = vpop.f32.mrb[0].mxu0
  %v2813 = vadd.f32 %v2706, %v2812
  %v2814 = vpop.f32.mrb[0].mxu0
  %2815 = vmatprep.mubr.bf16.mxu0 0
  %2816 = vmatmul.mubr.bf16.gmra.mrb[0].mxu0 %v2726
  %v2817 = vpop.f32.mrb[0].mxu0
  %v2818 = vadd.f32 %v2706, %v2817
  %v2819 = vpop.f32.mrb[0].mxu0
  %v2820 = vpop.f32.mrb[0].mxu0
  %v2821 = vadd.f32 %v2706, %v2820
  %v2822 = vpop.f32.mrb[0].mxu0
  %2823 = vmatprep.mubr.bf16.mxu0 0
  %2824 = vmatmul.mubr.bf16.gmra.mrb[0].mxu0 %v2729
  %v2825 = vpop.f32.mrb[0].mxu0
  %v2826 = vadd.f32 %v2706, %v2825
  %v2827 = vpop.f32.mrb[0].mxu0
  %v2828 = vpop.f32.mrb[0].mxu0
  %v2829 = vadd.f32 %v2706, %v2828
  %v2830 = vpop.f32.mrb[0].mxu0
  %2831 = vmatprep.mubr.bf16.mxu0 0
  %2832 = vmatmul.mubr.bf16.gmra.mrb[0].mxu0 %v2732
  %v2833 = vpop.f32.mrb[0].mxu0
  %v2834 = vadd.f32 %v2706, %v2833
  %v2835 = vpop.f32.mrb[0].mxu0
  %v2836 = vpop.f32.mrb[0].mxu0
  %v2837 = vadd.f32 %v2706, %v2836
  %v2838 = vpop.f32.mrb[0].mxu0
  %2839 = vmatprep.mubr.bf16.mxu0 0
  %2840 = vmatmul.mubr.bf16.gmra.mrb[0].mxu0 %v2735
  %v2841 = vpop.f32.mrb[0].mxu0
  %v2842 = vadd.f32 %v2706, %v2841
  %v2843 = vpop.f32.mrb[0].mxu0
  %v2844 = vpop.f32.mrb[0].mxu0
  %v2845 = vadd.f32 %v2706, %v2844
  %v2846 = vpop.f32.mrb[0].mxu0
  %2847 = vmatprep.mubr.bf16.mxu0 0
  %2848 = vmatmul.mubr.bf16.gmra.mrb[0].mxu0 %v2738
  %v2849 = vpop.f32.mrb[0].mxu0
  %v2850 = vadd.f32 %v2706, %v2849
  %v2851 = vpop.f32.mrb[0].mxu0
  %v2852 = vpop.f32.mrb[0].mxu0
  %v2853 = vadd.f32 %v2706, %v2852
  %v2854 = vpop.f32.mrb[0].mxu0
  %2855 = vmatprep.mubr.bf16.mxu0 0
  %2856 = vmatmul.mubr.bf16.gmra.mrb[0].mxu0 %v2741
  %v2857 = vpop.f32.mrb[0].mxu0
  %v2858 = vadd.f32 %v2706, %v2857
  %v2859 = vpop.f32.mrb[0].mxu0
  %v2860 = vpop.f32.mrb[0].mxu0
  %v2861 = vadd.f32 %v2706, %v2860
  %v2862 = vpop.f32.mrb[0].mxu0
  %2863 = vmatprep.mubr.bf16.mxu0 0
  %2864 = vmatmul.mubr.bf16.gmra.mrb[0].mxu0 %v2744
  %v2865 = vpop.f32.mrb[0].mxu0
  %v2866 = vadd.f32 %v2706, %v2865
  %v2867 = vpop.f32.mrb[0].mxu0
  %v2868 = vpop.f32.mrb[0].mxu0
  %v2869 = vadd.f32 %v2706, %v2868
  %v2870 = vpop.f32.mrb[0].mxu0
  %2871 = vmatprep.mubr.bf16.mxu0 0
  %2872 = vmatmul.mubr.bf16.gmra.mrb[0].mxu0 %v2747
  %v2873 = vpop.f32.mrb[0].mxu0
  %v2874 = vadd.f32 %v2706, %v2873
  %v2875 = vpop.f32.mrb[0].mxu0
  %v2876 = vpop.f32.mrb[0].mxu0
  %v2877 = vadd.f32 %v2706, %v2876
  %v2878 = vpop.f32.mrb[0].mxu0
  %2879 = vmatprep.mubr.bf16.mxu0 0
  %2880 = vmatmul.mubr.bf16.gmra.mrb[0].mxu0 %v2750
  %v2881 = vpop.f32.mrb[0].mxu0
  %v2882 = vadd.f32 %v2706, %v2881
  %v2883 = vpop.f32.mrb[0].mxu0
  %v2884 = vpop.f32.mrb[0].mxu0
  %v2885 = vadd.f32 %v2706, %v2884
  %v2886 = vpop.f32.mrb[0].mxu0
  %2887 = vmatprep.mubr.bf16.mxu0 0
  %2888 = vmatmul.mubr.bf16.gmra.mrb[0].mxu0 %v2753
  %v2889 = vpop.f32.mrb[0].mxu0
  %v2890 = vadd.f32 %v2706, %v2889
  %v2891 = vpop.f32.mrb[0].mxu0
  %v2892 = vpop.f32.mrb[0].mxu0
  %v2893 = vadd.f32 %v2706, %v2892
  %v2894 = vpop.f32.mrb[0].mxu0
  %2895 = vmatprep.mubr.bf16.mxu0 0
  %2896 = vmatmul.mubr.bf16.gmra.mrb[0].mxu0 %v2756
  %v2897 = vpop.f32.mrb[0].mxu0
  %v2898 = vadd.f32 %v2706, %v2897
  %v2899 = vpop.f32.mrb[0].mxu0
  %v2900 = vpop.f32.mrb[0].mxu0
  %v2901 = vadd.f32 %v2706, %v2900
  %v2902 = vpop.f32.mrb[0].mxu0
  %2903 = vmatprep.mubr.bf16.mxu0 0
  %2904 = vmatmul.mubr.bf16.gmra.mrb[0].mxu0 %v2759
  %v2905 = vpop.f32.mrb[0].mxu0
  %v2906 = vadd.f32 %v2706, %v2905
  %v2907 = vpop.f32.mrb[0].mxu0
  %v2908 = vpop.f32.mrb[0].mxu0
  %v2909 = vadd.f32 %v2706, %v2908
  %v2910 = vpop.f32.mrb[0].mxu0
  %2911 = vmatprep.mubr.bf16.mxu0 0
  %2912 = vmatmul.mubr.bf16.gmra.mrb[0].mxu0 %v2762
  %v2913 = vpop.f32.mrb[0].mxu0
  %v2914 = vadd.f32 %v2706, %v2913
  %v2915 = vpop.f32.mrb[0].mxu0
  %v2916 = vpop.f32.mrb[0].mxu0
  %v2917 = vadd.f32 %v2706, %v2916
  %v2918 = vpop.f32.mrb[0].mxu0
  %2919 = vmatprep.mubr.bf16.mxu0 0
  %2920 = vmatmul.mubr.bf16.gmra.mrb[0].mxu0 %v2765
  %v2921 = vpop.f32.mrb[0].mxu0
  %v2922 = vadd.f32 %v2706, %v2921
  %v2923 = vpop.f32.mrb[0].mxu0
  %v2924 = vpop.f32.mrb[0].mxu0
  %v2925 = vadd.f32 %v2706, %v2924
  %v2926 = vpop.f32.mrb[0].mxu0
  %2927 = vdwg.mxu0
  %v2928 = vmul.f32 %v2802, 0.01
  %v2929 = vmul.f32 %v2805, 0.01
  %v2930 = vmul.f32 %v2810, 0.01
  %v2931 = vmul.f32 %v2813, 0.01
  %v2932 = vmul.f32 %v2818, 0.01
  %v2933 = vmul.f32 %v2821, 0.01
  %v2934 = vmul.f32 %v2826, 0.01
  %v2935 = vmul.f32 %v2829, 0.01
  %v2936 = vmul.f32 %v2834, 0.01
  %v2937 = vmul.f32 %v2837, 0.01
  %v2938 = vmul.f32 %v2842, 0.01
  %v2939 = vmul.f32 %v2845, 0.01
  %v2940 = vmul.f32 %v2850, 0.01
  %v2941 = vmul.f32 %v2853, 0.01
  %v2942 = vmul.f32 %v2858, 0.01
  %v2943 = vmul.f32 %v2861, 0.01
  %v2944 = vmul.f32 %v2866, 0.01
  %v2945 = vmul.f32 %v2869, 0.01
  %v2946 = vmul.f32 %v2874, 0.01
  %v2947 = vmul.f32 %v2877, 0.01
  %v2948 = vmul.f32 %v2882, 0.01
  %v2949 = vmul.f32 %v2885, 0.01
  %v2950 = vmul.f32 %v2890, 0.01
  %v2951 = vmul.f32 %v2893, 0.01
  %v2952 = vmul.f32 %v2898, 0.01
  %v2953 = vmul.f32 %v2901, 0.01
  %v2954 = vmul.f32 %v2906, 0.01
  %v2955 = vmul.f32 %v2909, 0.01
  %v2956 = vmul.f32 %v2914, 0.01
  %v2957 = vmul.f32 %v2917, 0.01
  %v2958 = vmul.f32 %v2922, 0.01
  %v2959 = vmul.f32 %v2925, 0.01
  %v2960 = vmax.f32 %v2802, %v2928
  %v2961 = vmax.f32 %v2805, %v2929
  %v2962 = vmax.f32 %v2810, %v2930
  %v2963 = vmax.f32 %v2813, %v2931
  %v2964 = vmax.f32 %v2818, %v2932
  %v2965 = vmax.f32 %v2821, %v2933
  %v2966 = vmax.f32 %v2826, %v2934
  %v2967 = vmax.f32 %v2829, %v2935
  %v2968 = vmax.f32 %v2834, %v2936
  %v2969 = vmax.f32 %v2837, %v2937
  %v2970 = vmax.f32 %v2842, %v2938
  %v2971 = vmax.f32 %v2845, %v2939
  %v2972 = vmax.f32 %v2850, %v2940
  %v2973 = vmax.f32 %v2853, %v2941
  %v2974 = vmax.f32 %v2858, %v2942
  %v2975 = vmax.f32 %v2861, %v2943
  %v2976 = vmax.f32 %v2866, %v2944
  %v2977 = vmax.f32 %v2869, %v2945
  %v2978 = vmax.f32 %v2874, %v2946
  %v2979 = vmax.f32 %v2877, %v2947
  %v2980 = vmax.f32 %v2882, %v2948
  %v2981 = vmax.f32 %v2885, %v2949
  %v2982 = vmax.f32 %v2890, %v2950
  %v2983 = vmax.f32 %v2893, %v2951
  %v2984 = vmax.f32 %v2898, %v2952
  %v2985 = vmax.f32 %v2901, %v2953
  %v2986 = vmax.f32 %v2906, %v2954
  %v2987 = vmax.f32 %v2909, %v2955
  %v2988 = vmax.f32 %v2914, %v2956
  %v2989 = vmax.f32 %v2917, %v2957
  %v2990 = vmax.f32 %v2922, %v2958
  %v2991 = vmax.f32 %v2925, %v2959
  %v2992 = vpack.c.bf16 %v2961, %v2960
  %v2993 = vpack.c.bf16 %v2963, %v2962
  %v2994 = vpack.c.bf16 %v2965, %v2964
  %v2995 = vpack.c.bf16 %v2967, %v2966
  %v2996 = vpack.c.bf16 %v2969, %v2968
  %v2997 = vpack.c.bf16 %v2971, %v2970
  %v2998 = vpack.c.bf16 %v2973, %v2972
  %v2999 = vpack.c.bf16 %v2975, %v2974
  %v3000 = vpack.c.bf16 %v2977, %v2976
  %v3001 = vpack.c.bf16 %v2979, %v2978
  %v3002 = vpack.c.bf16 %v2981, %v2980
  %v3003 = vpack.c.bf16 %v2983, %v2982
  %v3004 = vpack.c.bf16 %v2985, %v2984
  %v3005 = vpack.c.bf16 %v2987, %v2986
  %v3006 = vpack.c.bf16 %v2989, %v2988
  %v3007 = vpack.c.bf16 %v2991, %v2990
  %s3008 = scalar_lea.vmem %s3, 32
  %v3009 = vld [vmem:[%s3008] sm:$0xf]
  %v3010 = vld [vmem:[%s3008 + $0x4] sm:$0xf]
  %v3011 = vld [vmem:[%s3008 + $0x8] sm:$0xf]
  %v3012 = vld [vmem:[%s3008 + $0xc] sm:$0xf]
  %v3013 = vlaneseq
  %v3014 = vshrl.u32 %v3013, 7
  %v3015 = vsub.s32 2, %v3014
  %v3016 = vrot.slane %v2371, %v3015
  %v3021 = vunpack.c.l.b16 %v3009
  %v3022 = vunpack.c.l.b16 %v3010
  %v3023 = vunpack.c.l.b16 %v3011
  %v3024 = vunpack.c.l.b16 %v3012
  %v3025 = vpack.c.b16 %v3022, %v3021
  %v3026 = vpack.c.b16 %v3024, %v3023
  %v3030 = vsel %vm407, %v2992, 0
  %v3033 = vsel %vm407, %v2993, 0
  %v3036 = vsel %vm407, %v2994, 0
  %v3039 = vsel %vm407, %v2995, 0
  %v3042 = vsel %vm407, %v2996, 0
  %v3045 = vsel %vm407, %v2997, 0
  %v3048 = vsel %vm407, %v2998, 0
  %v3051 = vsel %vm407, %v2999, 0
  %v3054 = vsel %vm407, %v3000, 0
  %v3057 = vsel %vm407, %v3001, 0
  %v3060 = vsel %vm407, %v3002, 0
  %v3063 = vsel %vm407, %v3003, 0
  %v3066 = vsel %vm407, %v3004, 0
  %v3069 = vsel %vm407, %v3005, 0
  %v3072 = vsel %vm407, %v3006, 0
  %v3075 = vsel %vm407, %v3007, 0
  %3077 = vmatprep.subr.bf16.mxu0 0
  %3078 = vmatpush1.bf16.msra.mxu0 %v3025
  %3079 = vmatprep.subr.bf16.mxu0 0
  %3080 = vmatpush1.bf16.msra.mxu0 %v3026
  %3081 = vmatprep.subr.bf16.mxu0 0
  %3082 = vmatpush1.bf16.msra.mxu0 0
  %3083 = vmatprep.subr.bf16.mxu0 0
  %3084 = vmatpush1.bf16.msra.mxu0 0
  %3085 = vmatprep.subr.bf16.mxu0 0
  %3086 = vmatpush1.bf16.msra.mxu0 0
  %3087 = vmatprep.subr.bf16.mxu0 0
  %3088 = vmatpush1.bf16.msra.mxu0 0
  %3089 = vmatprep.subr.bf16.mxu0 0
  %3090 = vmatpush1.bf16.msra.mxu0 0
  %3091 = vmatprep.subr.bf16.mxu0 0
  %3092 = vmatpush1.bf16.msra.mxu0 0
  %3093 = vmatprep.subr.bf16.mxu0 0
  %3094 = vmatpush1.bf16.msra.mxu0 0
  %3095 = vmatprep.subr.bf16.mxu0 0
  %3096 = vmatpush1.bf16.msra.mxu0 0
  %3097 = vmatprep.subr.bf16.mxu0 0
  %3098 = vmatpush1.bf16.msra.mxu0 0
  %3099 = vmatprep.subr.bf16.mxu0 0
  %3100 = vmatpush1.bf16.msra.mxu0 0
  %3101 = vmatprep.subr.bf16.mxu0 0
  %3102 = vmatpush1.bf16.msra.mxu0 0
  %3103 = vmatprep.subr.bf16.mxu0 0
  %3104 = vmatpush1.bf16.msra.mxu0 0
  %3105 = vmatprep.subr.bf16.mxu0 0
  %3106 = vmatpush1.bf16.msra.mxu0 0
  %3107 = vmatprep.subr.bf16.mxu0 0
  %3108 = vmatpush1.bf16.msra.mxu0 0
  %3109 = vmatprep.mubr.bf16.mxu0 0
  %3110 = vmatmul.mubr.bf16.gmra.mrb[0].mxu0 %v3030
  %v3111 = vpop.f32.mrb[0].mxu0
  %v3112 = vadd.f32 %v3016, %v3111
  %v3113 = vpop.f32.mrb[0].mxu0
  %v3114 = vpop.f32.mrb[0].mxu0
  %v3115 = vadd.f32 %v3016, %v3114
  %v3116 = vpop.f32.mrb[0].mxu0
  %3117 = vmatprep.mubr.bf16.mxu0 0
  %3118 = vmatmul.mubr.bf16.gmra.mrb[0].mxu0 %v3033
  %v3119 = vpop.f32.mrb[0].mxu0
  %v3120 = vadd.f32 %v3016, %v3119
  %v3121 = vpop.f32.mrb[0].mxu0
  %v3122 = vpop.f32.mrb[0].mxu0
  %v3123 = vadd.f32 %v3016, %v3122
  %v3124 = vpop.f32.mrb[0].mxu0
  %3125 = vmatprep.mubr.bf16.mxu0 0
  %3126 = vmatmul.mubr.bf16.gmra.mrb[0].mxu0 %v3036
  %v3127 = vpop.f32.mrb[0].mxu0
  %v3128 = vadd.f32 %v3016, %v3127
  %v3129 = vpop.f32.mrb[0].mxu0
  %v3130 = vpop.f32.mrb[0].mxu0
  %v3131 = vadd.f32 %v3016, %v3130
  %v3132 = vpop.f32.mrb[0].mxu0
  %3133 = vmatprep.mubr.bf16.mxu0 0
  %3134 = vmatmul.mubr.bf16.gmra.mrb[0].mxu0 %v3039
  %v3135 = vpop.f32.mrb[0].mxu0
  %v3136 = vadd.f32 %v3016, %v3135
  %v3137 = vpop.f32.mrb[0].mxu0
  %v3138 = vpop.f32.mrb[0].mxu0
  %v3139 = vadd.f32 %v3016, %v3138
  %v3140 = vpop.f32.mrb[0].mxu0
  %3141 = vmatprep.mubr.bf16.mxu0 0
  %3142 = vmatmul.mubr.bf16.gmra.mrb[0].mxu0 %v3042
  %v3143 = vpop.f32.mrb[0].mxu0
  %v3144 = vadd.f32 %v3016, %v3143
  %v3145 = vpop.f32.mrb[0].mxu0
  %v3146 = vpop.f32.mrb[0].mxu0
  %v3147 = vadd.f32 %v3016, %v3146
  %v3148 = vpop.f32.mrb[0].mxu0
  %3149 = vmatprep.mubr.bf16.mxu0 0
  %3150 = vmatmul.mubr.bf16.gmra.mrb[0].mxu0 %v3045
  %v3151 = vpop.f32.mrb[0].mxu0
  %v3152 = vadd.f32 %v3016, %v3151
  %v3153 = vpop.f32.mrb[0].mxu0
  %v3154 = vpop.f32.mrb[0].mxu0
  %v3155 = vadd.f32 %v3016, %v3154
  %v3156 = vpop.f32.mrb[0].mxu0
  %3157 = vmatprep.mubr.bf16.mxu0 0
  %3158 = vmatmul.mubr.bf16.gmra.mrb[0].mxu0 %v3048
  %v3159 = vpop.f32.mrb[0].mxu0
  %v3160 = vadd.f32 %v3016, %v3159
  %v3161 = vpop.f32.mrb[0].mxu0
  %v3162 = vpop.f32.mrb[0].mxu0
  %v3163 = vadd.f32 %v3016, %v3162
  %v3164 = vpop.f32.mrb[0].mxu0
  %3165 = vmatprep.mubr.bf16.mxu0 0
  %3166 = vmatmul.mubr.bf16.gmra.mrb[0].mxu0 %v3051
  %v3167 = vpop.f32.mrb[0].mxu0
  %v3168 = vadd.f32 %v3016, %v3167
  %v3169 = vpop.f32.mrb[0].mxu0
  %v3170 = vpop.f32.mrb[0].mxu0
  %v3171 = vadd.f32 %v3016, %v3170
  %v3172 = vpop.f32.mrb[0].mxu0
  %3173 = vmatprep.mubr.bf16.mxu0 0
  %3174 = vmatmul.mubr.bf16.gmra.mrb[0].mxu0 %v3054
  %v3175 = vpop.f32.mrb[0].mxu0
  %v3176 = vadd.f32 %v3016, %v3175
  %v3177 = vpop.f32.mrb[0].mxu0
  %v3178 = vpop.f32.mrb[0].mxu0
  %v3179 = vadd.f32 %v3016, %v3178
  %v3180 = vpop.f32.mrb[0].mxu0
  %3181 = vmatprep.mubr.bf16.mxu0 0
  %3182 = vmatmul.mubr.bf16.gmra.mrb[0].mxu0 %v3057
  %v3183 = vpop.f32.mrb[0].mxu0
  %v3184 = vadd.f32 %v3016, %v3183
  %v3185 = vpop.f32.mrb[0].mxu0
  %v3186 = vpop.f32.mrb[0].mxu0
  %v3187 = vadd.f32 %v3016, %v3186
  %v3188 = vpop.f32.mrb[0].mxu0
  %3189 = vmatprep.mubr.bf16.mxu0 0
  %3190 = vmatmul.mubr.bf16.gmra.mrb[0].mxu0 %v3060
  %v3191 = vpop.f32.mrb[0].mxu0
  %v3192 = vadd.f32 %v3016, %v3191
  %v3193 = vpop.f32.mrb[0].mxu0
  %v3194 = vpop.f32.mrb[0].mxu0
  %v3195 = vadd.f32 %v3016, %v3194
  %v3196 = vpop.f32.mrb[0].mxu0
  %3197 = vmatprep.mubr.bf16.mxu0 0
  %3198 = vmatmul.mubr.bf16.gmra.mrb[0].mxu0 %v3063
  %v3199 = vpop.f32.mrb[0].mxu0
  %v3200 = vadd.f32 %v3016, %v3199
  %v3201 = vpop.f32.mrb[0].mxu0
  %v3202 = vpop.f32.mrb[0].mxu0
  %v3203 = vadd.f32 %v3016, %v3202
  %v3204 = vpop.f32.mrb[0].mxu0
  %3205 = vmatprep.mubr.bf16.mxu0 0
  %3206 = vmatmul.mubr.bf16.gmra.mrb[0].mxu0 %v3066
  %v3207 = vpop.f32.mrb[0].mxu0
  %v3208 = vadd.f32 %v3016, %v3207
  %v3209 = vpop.f32.mrb[0].mxu0
  %v3210 = vpop.f32.mrb[0].mxu0
  %v3211 = vadd.f32 %v3016, %v3210
  %v3212 = vpop.f32.mrb[0].mxu0
  %3213 = vmatprep.mubr.bf16.mxu0 0
  %3214 = vmatmul.mubr.bf16.gmra.mrb[0].mxu0 %v3069
  %v3215 = vpop.f32.mrb[0].mxu0
  %v3216 = vadd.f32 %v3016, %v3215
  %v3217 = vpop.f32.mrb[0].mxu0
  %v3218 = vpop.f32.mrb[0].mxu0
  %v3219 = vadd.f32 %v3016, %v3218
  %v3220 = vpop.f32.mrb[0].mxu0
  %3221 = vmatprep.mubr.bf16.mxu0 0
  %3222 = vmatmul.mubr.bf16.gmra.mrb[0].mxu0 %v3072
  %v3223 = vpop.f32.mrb[0].mxu0
  %v3224 = vadd.f32 %v3016, %v3223
  %v3225 = vpop.f32.mrb[0].mxu0
  %v3226 = vpop.f32.mrb[0].mxu0
  %v3227 = vadd.f32 %v3016, %v3226
  %v3228 = vpop.f32.mrb[0].mxu0
  %3229 = vmatprep.mubr.bf16.mxu0 0
  %3230 = vmatmul.mubr.bf16.gmra.mrb[0].mxu0 %v3075
  %v3231 = vpop.f32.mrb[0].mxu0
  %v3232 = vadd.f32 %v3016, %v3231
  %v3233 = vpop.f32.mrb[0].mxu0
  %v3234 = vpop.f32.mrb[0].mxu0
  %v3235 = vadd.f32 %v3016, %v3234
  %v3236 = vpop.f32.mrb[0].mxu0
  %3237 = vdwg.mxu0
  %v3238 = vmul.f32 %v3112, %v25
  %v3239 = vmul.f32 %v3115, %v25
  %v3240 = vmul.f32 %v3120, %v25
  %v3241 = vmul.f32 %v3123, %v25
  %v3242 = vmul.f32 %v3128, %v25
  %v3243 = vmul.f32 %v3131, %v25
  %v3244 = vmul.f32 %v3136, %v25
  %v3245 = vmul.f32 %v3139, %v25
  %v3246 = vmul.f32 %v3144, %v25
  %v3247 = vmul.f32 %v3147, %v25
  %v3248 = vmul.f32 %v3152, %v25
  %v3249 = vmul.f32 %v3155, %v25
  %v3250 = vmul.f32 %v3160, %v25
  %v3251 = vmul.f32 %v3163, %v25
  %v3252 = vmul.f32 %v3168, %v25
  %v3253 = vmul.f32 %v3171, %v25
  %v3254 = vmul.f32 %v3176, %v25
  %v3255 = vmul.f32 %v3179, %v25
  %v3256 = vmul.f32 %v3184, %v25
  %v3257 = vmul.f32 %v3187, %v25
  %v3258 = vmul.f32 %v3192, %v25
  %v3259 = vmul.f32 %v3195, %v25
  %v3260 = vmul.f32 %v3200, %v25
  %v3261 = vmul.f32 %v3203, %v25
  %v3262 = vmul.f32 %v3208, %v25
  %v3263 = vmul.f32 %v3211, %v25
  %v3264 = vmul.f32 %v3216, %v25
  %v3265 = vmul.f32 %v3219, %v25
  %v3266 = vmul.f32 %v3224, %v25
  %v3267 = vmul.f32 %v3227, %v25
  %v3268 = vmul.f32 %v3232, %v25
  %v3269 = vmul.f32 %v3235, %v25
  %3270 = vrot.lane.b32.xlu0 %v3112, 120
  %v3271 = vpop.permute.xlu0 %3270
  %3272 = vrot.lane.b32.xlu0 %v3115, 120
  %v3273 = vpop.permute.xlu0 %3272
  %3274 = vrot.lane.b32.xlu0 %v3120, 120
  %v3275 = vpop.permute.xlu0 %3274
  %3276 = vrot.lane.b32.xlu0 %v3123, 120
  %v3277 = vpop.permute.xlu0 %3276
  %3278 = vrot.lane.b32.xlu0 %v3128, 120
  %v3279 = vpop.permute.xlu0 %3278
  %3280 = vrot.lane.b32.xlu0 %v3131, 120
  %v3281 = vpop.permute.xlu0 %3280
  %3282 = vrot.lane.b32.xlu0 %v3136, 120
  %v3283 = vpop.permute.xlu0 %3282
  %3284 = vrot.lane.b32.xlu0 %v3139, 120
  %v3285 = vpop.permute.xlu0 %3284
  %3286 = vrot.lane.b32.xlu0 %v3144, 120
  %v3287 = vpop.permute.xlu0 %3286
  %3288 = vrot.lane.b32.xlu0 %v3147, 120
  %v3289 = vpop.permute.xlu0 %3288
  %3290 = vrot.lane.b32.xlu0 %v3152, 120
  %v3291 = vpop.permute.xlu0 %3290
  %3292 = vrot.lane.b32.xlu0 %v3155, 120
  %v3293 = vpop.permute.xlu0 %3292
  %3294 = vrot.lane.b32.xlu0 %v3160, 120
  %v3295 = vpop.permute.xlu0 %3294
  %3296 = vrot.lane.b32.xlu0 %v3163, 120
  %v3297 = vpop.permute.xlu0 %3296
  %3298 = vrot.lane.b32.xlu0 %v3168, 120
  %v3299 = vpop.permute.xlu0 %3298
  %3300 = vrot.lane.b32.xlu0 %v3171, 120
  %v3301 = vpop.permute.xlu0 %3300
  %3302 = vrot.lane.b32.xlu0 %v3176, 120
  %v3303 = vpop.permute.xlu0 %3302
  %3304 = vrot.lane.b32.xlu0 %v3179, 120
  %v3305 = vpop.permute.xlu0 %3304
  %3306 = vrot.lane.b32.xlu0 %v3184, 120
  %v3307 = vpop.permute.xlu0 %3306
  %3308 = vrot.lane.b32.xlu0 %v3187, 120
  %v3309 = vpop.permute.xlu0 %3308
  %3310 = vrot.lane.b32.xlu0 %v3192, 120
  %v3311 = vpop.permute.xlu0 %3310
  %3312 = vrot.lane.b32.xlu0 %v3195, 120
  %v3313 = vpop.permute.xlu0 %3312
  %3314 = vrot.lane.b32.xlu0 %v3200, 120
  %v3315 = vpop.permute.xlu0 %3314
  %3316 = vrot.lane.b32.xlu0 %v3203, 120
  %v3317 = vpop.permute.xlu0 %3316
  %3318 = vrot.lane.b32.xlu0 %v3208, 120
  %v3319 = vpop.permute.xlu0 %3318
  %3320 = vrot.lane.b32.xlu0 %v3211, 120
  %v3321 = vpop.permute.xlu0 %3320
  %3322 = vrot.lane.b32.xlu0 %v3216, 120
  %v3323 = vpop.permute.xlu0 %3322
  %3324 = vrot.lane.b32.xlu0 %v3219, 120
  %v3325 = vpop.permute.xlu0 %3324
  %3326 = vrot.lane.b32.xlu0 %v3224, 120
  %v3327 = vpop.permute.xlu0 %3326
  %3328 = vrot.lane.b32.xlu0 %v3227, 120
  %v3329 = vpop.permute.xlu0 %3328
  %3330 = vrot.lane.b32.xlu0 %v3232, 120
  %v3331 = vpop.permute.xlu0 %3330
  %3332 = vrot.lane.b32.xlu0 %v3235, 120
  %v3333 = vpop.permute.xlu0 %3332
  %v3334 = vmul.f32 %v3271, %v25
  %v3335 = vmul.f32 %v3273, %v25
  %v3336 = vmul.f32 %v3275, %v25
  %v3337 = vmul.f32 %v3277, %v25
  %v3338 = vmul.f32 %v3279, %v25
  %v3339 = vmul.f32 %v3281, %v25
  %v3340 = vmul.f32 %v3283, %v25
  %v3341 = vmul.f32 %v3285, %v25
  %v3342 = vmul.f32 %v3287, %v25
  %v3343 = vmul.f32 %v3289, %v25
  %v3344 = vmul.f32 %v3291, %v25
  %v3345 = vmul.f32 %v3293, %v25
  %v3346 = vmul.f32 %v3295, %v25
  %v3347 = vmul.f32 %v3297, %v25
  %v3348 = vmul.f32 %v3299, %v25
  %v3349 = vmul.f32 %v3301, %v25
  %v3350 = vmul.f32 %v3303, %v25
  %v3351 = vmul.f32 %v3305, %v25
  %v3352 = vmul.f32 %v3307, %v25
  %v3353 = vmul.f32 %v3309, %v25
  %v3354 = vmul.f32 %v3311, %v25
  %v3355 = vmul.f32 %v3313, %v25
  %v3356 = vmul.f32 %v3315, %v25
  %v3357 = vmul.f32 %v3317, %v25
  %v3358 = vmul.f32 %v3319, %v25
  %v3359 = vmul.f32 %v3321, %v25
  %v3360 = vmul.f32 %v3323, %v25
  %v3361 = vmul.f32 %v3325, %v25
  %v3362 = vmul.f32 %v3327, %v25
  %v3363 = vmul.f32 %v3329, %v25
  %v3364 = vmul.f32 %v3331, %v25
  %v3365 = vmul.f32 %v3333, %v25
  %v3366 = vmul.f32 %v3238, 1.442695
  %v3367 = vpow.pop %v3366
  %v3368 = vmul.f32 %v3239, 1.442695
  %v3369 = vpow.pop %v3368
  %v3370 = vmul.f32 %v3240, 1.442695
  %v3371 = vpow.pop %v3370
  %v3372 = vmul.f32 %v3241, 1.442695
  %v3373 = vpow.pop %v3372
  %v3374 = vmul.f32 %v3242, 1.442695
  %v3375 = vpow.pop %v3374
  %v3376 = vmul.f32 %v3243, 1.442695
  %v3377 = vpow.pop %v3376
  %v3378 = vmul.f32 %v3244, 1.442695
  %v3379 = vpow.pop %v3378
  %v3380 = vmul.f32 %v3245, 1.442695
  %v3381 = vpow.pop %v3380
  %v3382 = vmul.f32 %v3246, 1.442695
  %v3383 = vpow.pop %v3382
  %v3384 = vmul.f32 %v3247, 1.442695
  %v3385 = vpow.pop %v3384
  %v3386 = vmul.f32 %v3248, 1.442695
  %v3387 = vpow.pop %v3386
  %v3388 = vmul.f32 %v3249, 1.442695
  %v3389 = vpow.pop %v3388
  %v3390 = vmul.f32 %v3250, 1.442695
  %v3391 = vpow.pop %v3390
  %v3392 = vmul.f32 %v3251, 1.442695
  %v3393 = vpow.pop %v3392
  %v3394 = vmul.f32 %v3252, 1.442695
  %v3395 = vpow.pop %v3394
  %v3396 = vmul.f32 %v3253, 1.442695
  %v3397 = vpow.pop %v3396
  %v3398 = vmul.f32 %v3254, 1.442695
  %v3399 = vpow.pop %v3398
  %v3400 = vmul.f32 %v3255, 1.442695
  %v3401 = vpow.pop %v3400
  %v3402 = vmul.f32 %v3256, 1.442695
  %v3403 = vpow.pop %v3402
  %v3404 = vmul.f32 %v3257, 1.442695
  %v3405 = vpow.pop %v3404
  %v3406 = vmul.f32 %v3258, 1.442695
  %v3407 = vpow.pop %v3406
  %v3408 = vmul.f32 %v3259, 1.442695
  %v3409 = vpow.pop %v3408
  %v3410 = vmul.f32 %v3260, 1.442695
  %v3411 = vpow.pop %v3410
  %v3412 = vmul.f32 %v3261, 1.442695
  %v3413 = vpow.pop %v3412
  %v3414 = vmul.f32 %v3262, 1.442695
  %v3415 = vpow.pop %v3414
  %v3416 = vmul.f32 %v3263, 1.442695
  %v3417 = vpow.pop %v3416
  %v3418 = vmul.f32 %v3264, 1.442695
  %v3419 = vpow.pop %v3418
  %v3420 = vmul.f32 %v3265, 1.442695
  %v3421 = vpow.pop %v3420
  %v3422 = vmul.f32 %v3266, 1.442695
  %v3423 = vpow.pop %v3422
  %v3424 = vmul.f32 %v3267, 1.442695
  %v3425 = vpow.pop %v3424
  %v3426 = vmul.f32 %v3268, 1.442695
  %v3427 = vpow.pop %v3426
  %v3428 = vmul.f32 %v3269, 1.442695
  %v3429 = vpow.pop %v3428
  %v3430 = vmul.f32 %v2306, %v3367
  %v3431 = vmul.f32 %v2307, %v3369
  %v3432 = vmul.f32 %v2308, %v3371
  %v3433 = vmul.f32 %v2309, %v3373
  %v3434 = vmul.f32 %v2310, %v3375
  %v3435 = vmul.f32 %v2311, %v3377
  %v3436 = vmul.f32 %v2312, %v3379
  %v3437 = vmul.f32 %v2313, %v3381
  %v3438 = vmul.f32 %v2314, %v3383
  %v3439 = vmul.f32 %v2315, %v3385
  %v3440 = vmul.f32 %v2316, %v3387
  %v3441 = vmul.f32 %v2317, %v3389
  %v3442 = vmul.f32 %v2318, %v3391
  %v3443 = vmul.f32 %v2319, %v3393
  %v3444 = vmul.f32 %v2320, %v3395
  %v3445 = vmul.f32 %v2321, %v3397
  %v3446 = vmul.f32 %v2322, %v3399
  %v3447 = vmul.f32 %v2323, %v3401
  %v3448 = vmul.f32 %v2324, %v3403
  %v3449 = vmul.f32 %v2325, %v3405
  %v3450 = vmul.f32 %v2326, %v3407
  %v3451 = vmul.f32 %v2327, %v3409
  %v3452 = vmul.f32 %v2328, %v3411
  %v3453 = vmul.f32 %v2329, %v3413
  %v3454 = vmul.f32 %v2330, %v3415
  %v3455 = vmul.f32 %v2331, %v3417
  %v3456 = vmul.f32 %v2332, %v3419
  %v3457 = vmul.f32 %v2333, %v3421
  %v3458 = vmul.f32 %v2334, %v3423
  %v3459 = vmul.f32 %v2335, %v3425
  %v3460 = vmul.f32 %v2336, %v3427
  %v3461 = vmul.f32 %v2337, %v3429
  %v3462 = vadd.f32 %v3430, %v3334
  %v3463 = vadd.f32 %v3431, %v3335
  %v3464 = vadd.f32 %v3432, %v3336
  %v3465 = vadd.f32 %v3433, %v3337
  %v3466 = vadd.f32 %v3434, %v3338
  %v3467 = vadd.f32 %v3435, %v3339
  %v3468 = vadd.f32 %v3436, %v3340
  %v3469 = vadd.f32 %v3437, %v3341
  %v3470 = vadd.f32 %v3438, %v3342
  %v3471 = vadd.f32 %v3439, %v3343
  %v3472 = vadd.f32 %v3440, %v3344
  %v3473 = vadd.f32 %v3441, %v3345
  %v3474 = vadd.f32 %v3442, %v3346
  %v3475 = vadd.f32 %v3443, %v3347
  %v3476 = vadd.f32 %v3444, %v3348
  %v3477 = vadd.f32 %v3445, %v3349
  %v3478 = vadd.f32 %v3446, %v3350
  %v3479 = vadd.f32 %v3447, %v3351
  %v3480 = vadd.f32 %v3448, %v3352
  %v3481 = vadd.f32 %v3449, %v3353
  %v3482 = vadd.f32 %v3450, %v3354
  %v3483 = vadd.f32 %v3451, %v3355
  %v3484 = vadd.f32 %v3452, %v3356
  %v3485 = vadd.f32 %v3453, %v3357
  %v3486 = vadd.f32 %v3454, %v3358
  %v3487 = vadd.f32 %v3455, %v3359
  %v3488 = vadd.f32 %v3456, %v3360
  %v3489 = vadd.f32 %v3457, %v3361
  %v3490 = vadd.f32 %v3458, %v3362
  %v3491 = vadd.f32 %v3459, %v3363
  %v3492 = vadd.f32 %v3460, %v3364
  %v3493 = vadd.f32 %v3461, %v3365
  %v3494 = vadd.f32 %v2338, %v3238
  %v3495 = vadd.f32 %v2339, %v3239
  %v3496 = vadd.f32 %v2340, %v3240
  %v3497 = vadd.f32 %v2341, %v3241
  %v3498 = vadd.f32 %v2342, %v3242
  %v3499 = vadd.f32 %v2343, %v3243
  %v3500 = vadd.f32 %v2344, %v3244
  %v3501 = vadd.f32 %v2345, %v3245
  %v3502 = vadd.f32 %v2346, %v3246
  %v3503 = vadd.f32 %v2347, %v3247
  %v3504 = vadd.f32 %v2348, %v3248
  %v3505 = vadd.f32 %v2349, %v3249
  %v3506 = vadd.f32 %v2350, %v3250
  %v3507 = vadd.f32 %v2351, %v3251
  %v3508 = vadd.f32 %v2352, %v3252
  %v3509 = vadd.f32 %v2353, %v3253
  %v3510 = vadd.f32 %v2354, %v3254
  %v3511 = vadd.f32 %v2355, %v3255
  %v3512 = vadd.f32 %v2356, %v3256
  %v3513 = vadd.f32 %v2357, %v3257
  %v3514 = vadd.f32 %v2358, %v3258
  %v3515 = vadd.f32 %v2359, %v3259
  %v3516 = vadd.f32 %v2360, %v3260
  %v3517 = vadd.f32 %v2361, %v3261
  %v3518 = vadd.f32 %v2362, %v3262
  %v3519 = vadd.f32 %v2363, %v3263
  %v3520 = vadd.f32 %v2364, %v3264
  %v3521 = vadd.f32 %v2365, %v3265
  %v3522 = vadd.f32 %v2366, %v3266
  %v3523 = vadd.f32 %v2367, %v3267
  %v3524 = vadd.f32 %v2368, %v3268
  %v3525 = vadd.f32 %v2369, %v3269
  %s3526 = scalar_lea.vmem %s4, 12
  %v3527 = vld [vmem:[%s3526] sm:$0x7]
  %v3528 = vpack.c.bf16 %v3463, %v3462
  %v3529 = vpack.c.bf16 %v3465, %v3464
  %v3530 = vpack.c.bf16 %v3467, %v3466
  %v3531 = vpack.c.bf16 %v3469, %v3468
  %v3532 = vpack.c.bf16 %v3471, %v3470
  %v3533 = vpack.c.bf16 %v3473, %v3472
  %v3534 = vpack.c.bf16 %v3475, %v3474
  %v3535 = vpack.c.bf16 %v3477, %v3476
  %v3536 = vpack.c.bf16 %v3479, %v3478
  %v3537 = vpack.c.bf16 %v3481, %v3480
  %v3538 = vpack.c.bf16 %v3483, %v3482
  %v3539 = vpack.c.bf16 %v3485, %v3484
  %v3540 = vpack.c.bf16 %v3487, %v3486
  %v3541 = vpack.c.bf16 %v3489, %v3488
  %v3542 = vpack.c.bf16 %v3491, %v3490
  %v3543 = vpack.c.bf16 %v3493, %v3492
  %s3544 = scalar_lea.vmem %s1, 192
  %v3545 = vld [vmem:[%s3544] sm:$0xf]
  %v3546 = vld [vmem:[%s3544 + $0x4] sm:$0xf]
  %v3547 = vld [vmem:[%s3544 + $0x8] sm:$0xf]
  %v3548 = vld [vmem:[%s3544 + $0xc] sm:$0xf]
  %v3549 = vld [vmem:[%s3544 + $0x10] sm:$0xf]
  %v3550 = vld [vmem:[%s3544 + $0x14] sm:$0xf]
  %v3551 = vld [vmem:[%s3544 + $0x18] sm:$0xf]
  %v3552 = vld [vmem:[%s3544 + $0x1c] sm:$0xf]
  %v3553 = vld [vmem:[%s3544 + $0x20] sm:$0xf]
  %v3554 = vld [vmem:[%s3544 + $0x24] sm:$0xf]
  %v3555 = vld [vmem:[%s3544 + $0x28] sm:$0xf]
  %v3556 = vld [vmem:[%s3544 + $0x2c] sm:$0xf]
  %v3557 = vld [vmem:[%s3544 + $0x30] sm:$0xf]
  %v3558 = vld [vmem:[%s3544 + $0x34] sm:$0xf]
  %v3559 = vld [vmem:[%s3544 + $0x38] sm:$0xf]
  %v3560 = vld [vmem:[%s3544 + $0x3c] sm:$0xf]
  %v3561 = vlaneseq
  %v3562 = vshrl.u32 %v3561, 7
  %v3563 = vsub.s32 0, %v3562
  %v3564 = vrot.slane %v3527, %v3563
  %v3581 = vunpack.c.l.b16 %v3545
  %v3582 = vunpack.c.l.b16 %v3546
  %v3583 = vunpack.c.l.b16 %v3547
  %v3584 = vunpack.c.l.b16 %v3548
  %v3585 = vunpack.c.l.b16 %v3549
  %v3586 = vunpack.c.l.b16 %v3550
  %v3587 = vunpack.c.l.b16 %v3551
  %v3588 = vunpack.c.l.b16 %v3552
  %v3589 = vunpack.c.l.b16 %v3553
  %v3590 = vunpack.c.l.b16 %v3554
  %v3591 = vunpack.c.l.b16 %v3555
  %v3592 = vunpack.c.l.b16 %v3556
  %v3593 = vunpack.c.l.b16 %v3557
  %v3594 = vunpack.c.l.b16 %v3558
  %v3595 = vunpack.c.l.b16 %v3559
  %v3596 = vunpack.c.l.b16 %v3560
  %v3597 = vpack.c.b16 %v3582, %v3581
  %v3598 = vpack.c.b16 %v3584, %v3583
  %v3599 = vpack.c.b16 %v3586, %v3585
  %v3600 = vpack.c.b16 %v3588, %v3587
  %v3601 = vpack.c.b16 %v3590, %v3589
  %v3602 = vpack.c.b16 %v3592, %v3591
  %v3603 = vpack.c.b16 %v3594, %v3593
  %v3604 = vpack.c.b16 %v3596, %v3595
  %3613 = vmatprep.subr.bf16.mxu0 0
  %3614 = vmatpush1.bf16.msra.mxu0 %v3597
  %3615 = vmatprep.subr.bf16.mxu0 0
  %3616 = vmatpush1.bf16.msra.mxu0 %v3598
  %3617 = vmatprep.subr.bf16.mxu0 0
  %3618 = vmatpush1.bf16.msra.mxu0 %v3599
  %3619 = vmatprep.subr.bf16.mxu0 0
  %3620 = vmatpush1.bf16.msra.mxu0 %v3600
  %3621 = vmatprep.subr.bf16.mxu0 0
  %3622 = vmatpush1.bf16.msra.mxu0 %v3601
  %3623 = vmatprep.subr.bf16.mxu0 0
  %3624 = vmatpush1.bf16.msra.mxu0 %v3602
  %3625 = vmatprep.subr.bf16.mxu0 0
  %3626 = vmatpush1.bf16.msra.mxu0 %v3603
  %3627 = vmatprep.subr.bf16.mxu0 0
  %3628 = vmatpush1.bf16.msra.mxu0 %v3604
  %3629 = vmatprep.subr.bf16.mxu0 0
  %3630 = vmatpush1.bf16.msra.mxu0 0
  %3631 = vmatprep.subr.bf16.mxu0 0
  %3632 = vmatpush1.bf16.msra.mxu0 0
  %3633 = vmatprep.subr.bf16.mxu0 0
  %3634 = vmatpush1.bf16.msra.mxu0 0
  %3635 = vmatprep.subr.bf16.mxu0 0
  %3636 = vmatpush1.bf16.msra.mxu0 0
  %3637 = vmatprep.subr.bf16.mxu0 0
  %3638 = vmatpush1.bf16.msra.mxu0 0
  %3639 = vmatprep.subr.bf16.mxu0 0
  %3640 = vmatpush1.bf16.msra.mxu0 0
  %3641 = vmatprep.subr.bf16.mxu0 0
  %3642 = vmatpush1.bf16.msra.mxu0 0
  %3643 = vmatprep.subr.bf16.mxu0 0
  %3644 = vmatpush1.bf16.msra.mxu0 0
  %3645 = vmatprep.mubr.bf16.mxu0 0
  %3646 = vmatmul.mubr.bf16.gmra.mrb[0].mxu0 %v3528
  %v3647 = vpop.f32.mrb[0].mxu0
  %v3648 = vadd.f32 %v3564, %v3647
  %v3649 = vpop.f32.mrb[0].mxu0
  %v3650 = vpop.f32.mrb[0].mxu0
  %v3651 = vadd.f32 %v3564, %v3650
  %v3652 = vpop.f32.mrb[0].mxu0
  %3653 = vmatprep.mubr.bf16.mxu0 0
  %3654 = vmatmul.mubr.bf16.gmra.mrb[0].mxu0 %v3529
  %v3655 = vpop.f32.mrb[0].mxu0
  %v3656 = vadd.f32 %v3564, %v3655
  %v3657 = vpop.f32.mrb[0].mxu0
  %v3658 = vpop.f32.mrb[0].mxu0
  %v3659 = vadd.f32 %v3564, %v3658
  %v3660 = vpop.f32.mrb[0].mxu0
  %3661 = vmatprep.mubr.bf16.mxu0 0
  %3662 = vmatmul.mubr.bf16.gmra.mrb[0].mxu0 %v3530
  %v3663 = vpop.f32.mrb[0].mxu0
  %v3664 = vadd.f32 %v3564, %v3663
  %v3665 = vpop.f32.mrb[0].mxu0
  %v3666 = vpop.f32.mrb[0].mxu0
  %v3667 = vadd.f32 %v3564, %v3666
  %v3668 = vpop.f32.mrb[0].mxu0
  %3669 = vmatprep.mubr.bf16.mxu0 0
  %3670 = vmatmul.mubr.bf16.gmra.mrb[0].mxu0 %v3531
  %v3671 = vpop.f32.mrb[0].mxu0
  %v3672 = vadd.f32 %v3564, %v3671
  %v3673 = vpop.f32.mrb[0].mxu0
  %v3674 = vpop.f32.mrb[0].mxu0
  %v3675 = vadd.f32 %v3564, %v3674
  %v3676 = vpop.f32.mrb[0].mxu0
  %3677 = vmatprep.mubr.bf16.mxu0 0
  %3678 = vmatmul.mubr.bf16.gmra.mrb[0].mxu0 %v3532
  %v3679 = vpop.f32.mrb[0].mxu0
  %v3680 = vadd.f32 %v3564, %v3679
  %v3681 = vpop.f32.mrb[0].mxu0
  %v3682 = vpop.f32.mrb[0].mxu0
  %v3683 = vadd.f32 %v3564, %v3682
  %v3684 = vpop.f32.mrb[0].mxu0
  %3685 = vmatprep.mubr.bf16.mxu0 0
  %3686 = vmatmul.mubr.bf16.gmra.mrb[0].mxu0 %v3533
  %v3687 = vpop.f32.mrb[0].mxu0
  %v3688 = vadd.f32 %v3564, %v3687
  %v3689 = vpop.f32.mrb[0].mxu0
  %v3690 = vpop.f32.mrb[0].mxu0
  %v3691 = vadd.f32 %v3564, %v3690
  %v3692 = vpop.f32.mrb[0].mxu0
  %3693 = vmatprep.mubr.bf16.mxu0 0
  %3694 = vmatmul.mubr.bf16.gmra.mrb[0].mxu0 %v3534
  %v3695 = vpop.f32.mrb[0].mxu0
  %v3696 = vadd.f32 %v3564, %v3695
  %v3697 = vpop.f32.mrb[0].mxu0
  %v3698 = vpop.f32.mrb[0].mxu0
  %v3699 = vadd.f32 %v3564, %v3698
  %v3700 = vpop.f32.mrb[0].mxu0
  %3701 = vmatprep.mubr.bf16.mxu0 0
  %3702 = vmatmul.mubr.bf16.gmra.mrb[0].mxu0 %v3535
  %v3703 = vpop.f32.mrb[0].mxu0
  %v3704 = vadd.f32 %v3564, %v3703
  %v3705 = vpop.f32.mrb[0].mxu0
  %v3706 = vpop.f32.mrb[0].mxu0
  %v3707 = vadd.f32 %v3564, %v3706
  %v3708 = vpop.f32.mrb[0].mxu0
  %3709 = vmatprep.mubr.bf16.mxu0 0
  %3710 = vmatmul.mubr.bf16.gmra.mrb[0].mxu0 %v3536
  %v3711 = vpop.f32.mrb[0].mxu0
  %v3712 = vadd.f32 %v3564, %v3711
  %v3713 = vpop.f32.mrb[0].mxu0
  %v3714 = vpop.f32.mrb[0].mxu0
  %v3715 = vadd.f32 %v3564, %v3714
  %v3716 = vpop.f32.mrb[0].mxu0
  %3717 = vmatprep.mubr.bf16.mxu0 0
  %3718 = vmatmul.mubr.bf16.gmra.mrb[0].mxu0 %v3537
  %v3719 = vpop.f32.mrb[0].mxu0
  %v3720 = vadd.f32 %v3564, %v3719
  %v3721 = vpop.f32.mrb[0].mxu0
  %v3722 = vpop.f32.mrb[0].mxu0
  %v3723 = vadd.f32 %v3564, %v3722
  %v3724 = vpop.f32.mrb[0].mxu0
  %3725 = vmatprep.mubr.bf16.mxu0 0
  %3726 = vmatmul.mubr.bf16.gmra.mrb[0].mxu0 %v3538
  %v3727 = vpop.f32.mrb[0].mxu0
  %v3728 = vadd.f32 %v3564, %v3727
  %v3729 = vpop.f32.mrb[0].mxu0
  %v3730 = vpop.f32.mrb[0].mxu0
  %v3731 = vadd.f32 %v3564, %v3730
  %v3732 = vpop.f32.mrb[0].mxu0
  %3733 = vmatprep.mubr.bf16.mxu0 0
  %3734 = vmatmul.mubr.bf16.gmra.mrb[0].mxu0 %v3539
  %v3735 = vpop.f32.mrb[0].mxu0
  %v3736 = vadd.f32 %v3564, %v3735
  %v3737 = vpop.f32.mrb[0].mxu0
  %v3738 = vpop.f32.mrb[0].mxu0
  %v3739 = vadd.f32 %v3564, %v3738
  %v3740 = vpop.f32.mrb[0].mxu0
  %3741 = vmatprep.mubr.bf16.mxu0 0
  %3742 = vmatmul.mubr.bf16.gmra.mrb[0].mxu0 %v3540
  %v3743 = vpop.f32.mrb[0].mxu0
  %v3744 = vadd.f32 %v3564, %v3743
  %v3745 = vpop.f32.mrb[0].mxu0
  %v3746 = vpop.f32.mrb[0].mxu0
  %v3747 = vadd.f32 %v3564, %v3746
  %v3748 = vpop.f32.mrb[0].mxu0
  %3749 = vmatprep.mubr.bf16.mxu0 0
  %3750 = vmatmul.mubr.bf16.gmra.mrb[0].mxu0 %v3541
  %v3751 = vpop.f32.mrb[0].mxu0
  %v3752 = vadd.f32 %v3564, %v3751
  %v3753 = vpop.f32.mrb[0].mxu0
  %v3754 = vpop.f32.mrb[0].mxu0
  %v3755 = vadd.f32 %v3564, %v3754
  %v3756 = vpop.f32.mrb[0].mxu0
  %3757 = vmatprep.mubr.bf16.mxu0 0
  %3758 = vmatmul.mubr.bf16.gmra.mrb[0].mxu0 %v3542
  %v3759 = vpop.f32.mrb[0].mxu0
  %v3760 = vadd.f32 %v3564, %v3759
  %v3761 = vpop.f32.mrb[0].mxu0
  %v3762 = vpop.f32.mrb[0].mxu0
  %v3763 = vadd.f32 %v3564, %v3762
  %v3764 = vpop.f32.mrb[0].mxu0
  %3765 = vmatprep.mubr.bf16.mxu0 0
  %3766 = vmatmul.mubr.bf16.gmra.mrb[0].mxu0 %v3543
  %v3767 = vpop.f32.mrb[0].mxu0
  %v3768 = vadd.f32 %v3564, %v3767
  %v3769 = vpop.f32.mrb[0].mxu0
  %v3770 = vpop.f32.mrb[0].mxu0
  %v3771 = vadd.f32 %v3564, %v3770
  %v3772 = vpop.f32.mrb[0].mxu0
  %3773 = vdwg.mxu0
  %v3774 = vmul.f32 %v3648, 0.01
  %v3775 = vmul.f32 %v3651, 0.01
  %v3776 = vmul.f32 %v3656, 0.01
  %v3777 = vmul.f32 %v3659, 0.01
  %v3778 = vmul.f32 %v3664, 0.01
  %v3779 = vmul.f32 %v3667, 0.01
  %v3780 = vmul.f32 %v3672, 0.01
  %v3781 = vmul.f32 %v3675, 0.01
  %v3782 = vmul.f32 %v3680, 0.01
  %v3783 = vmul.f32 %v3683, 0.01
  %v3784 = vmul.f32 %v3688, 0.01
  %v3785 = vmul.f32 %v3691, 0.01
  %v3786 = vmul.f32 %v3696, 0.01
  %v3787 = vmul.f32 %v3699, 0.01
  %v3788 = vmul.f32 %v3704, 0.01
  %v3789 = vmul.f32 %v3707, 0.01
  %v3790 = vmul.f32 %v3712, 0.01
  %v3791 = vmul.f32 %v3715, 0.01
  %v3792 = vmul.f32 %v3720, 0.01
  %v3793 = vmul.f32 %v3723, 0.01
  %v3794 = vmul.f32 %v3728, 0.01
  %v3795 = vmul.f32 %v3731, 0.01
  %v3796 = vmul.f32 %v3736, 0.01
  %v3797 = vmul.f32 %v3739, 0.01
  %v3798 = vmul.f32 %v3744, 0.01
  %v3799 = vmul.f32 %v3747, 0.01
  %v3800 = vmul.f32 %v3752, 0.01
  %v3801 = vmul.f32 %v3755, 0.01
  %v3802 = vmul.f32 %v3760, 0.01
  %v3803 = vmul.f32 %v3763, 0.01
  %v3804 = vmul.f32 %v3768, 0.01
  %v3805 = vmul.f32 %v3771, 0.01
  %v3806 = vmax.f32 %v3648, %v3774
  %v3807 = vmax.f32 %v3651, %v3775
  %v3808 = vmax.f32 %v3656, %v3776
  %v3809 = vmax.f32 %v3659, %v3777
  %v3810 = vmax.f32 %v3664, %v3778
  %v3811 = vmax.f32 %v3667, %v3779
  %v3812 = vmax.f32 %v3672, %v3780
  %v3813 = vmax.f32 %v3675, %v3781
  %v3814 = vmax.f32 %v3680, %v3782
  %v3815 = vmax.f32 %v3683, %v3783
  %v3816 = vmax.f32 %v3688, %v3784
  %v3817 = vmax.f32 %v3691, %v3785
  %v3818 = vmax.f32 %v3696, %v3786
  %v3819 = vmax.f32 %v3699, %v3787
  %v3820 = vmax.f32 %v3704, %v3788
  %v3821 = vmax.f32 %v3707, %v3789
  %v3822 = vmax.f32 %v3712, %v3790
  %v3823 = vmax.f32 %v3715, %v3791
  %v3824 = vmax.f32 %v3720, %v3792
  %v3825 = vmax.f32 %v3723, %v3793
  %v3826 = vmax.f32 %v3728, %v3794
  %v3827 = vmax.f32 %v3731, %v3795
  %v3828 = vmax.f32 %v3736, %v3796
  %v3829 = vmax.f32 %v3739, %v3797
  %v3830 = vmax.f32 %v3744, %v3798
  %v3831 = vmax.f32 %v3747, %v3799
  %v3832 = vmax.f32 %v3752, %v3800
  %v3833 = vmax.f32 %v3755, %v3801
  %v3834 = vmax.f32 %v3760, %v3802
  %v3835 = vmax.f32 %v3763, %v3803
  %v3836 = vmax.f32 %v3768, %v3804
  %v3837 = vmax.f32 %v3771, %v3805
  %v3838 = vpack.c.bf16 %v3807, %v3806
  %v3839 = vpack.c.bf16 %v3809, %v3808
  %v3840 = vpack.c.bf16 %v3811, %v3810
  %v3841 = vpack.c.bf16 %v3813, %v3812
  %v3842 = vpack.c.bf16 %v3815, %v3814
  %v3843 = vpack.c.bf16 %v3817, %v3816
  %v3844 = vpack.c.bf16 %v3819, %v3818
  %v3845 = vpack.c.bf16 %v3821, %v3820
  %v3846 = vpack.c.bf16 %v3823, %v3822
  %v3847 = vpack.c.bf16 %v3825, %v3824
  %v3848 = vpack.c.bf16 %v3827, %v3826
  %v3849 = vpack.c.bf16 %v3829, %v3828
  %v3850 = vpack.c.bf16 %v3831, %v3830
  %v3851 = vpack.c.bf16 %v3833, %v3832
  %v3852 = vpack.c.bf16 %v3835, %v3834
  %v3853 = vpack.c.bf16 %v3837, %v3836
  %s3854 = scalar_lea.vmem %s2, 48
  %v3855 = vld [vmem:[%s3854] sm:$0xf]
  %v3856 = vld [vmem:[%s3854 + $0x4] sm:$0xf]
  %v3857 = vld [vmem:[%s3854 + $0x8] sm:$0xf]
  %v3858 = vld [vmem:[%s3854 + $0xc] sm:$0xf]
  %v3859 = vlaneseq
  %v3860 = vshrl.u32 %v3859, 7
  %v3861 = vsub.s32 1, %v3860
  %v3862 = vrot.slane %v3527, %v3861
  %v3867 = vunpack.c.l.b16 %v3855
  %v3868 = vunpack.c.l.b16 %v3856
  %v3869 = vunpack.c.l.b16 %v3857
  %v3870 = vunpack.c.l.b16 %v3858
  %v3871 = vpack.c.b16 %v3868, %v3867
  %v3872 = vpack.c.b16 %v3870, %v3869
  %v3876 = vsel %vm407, %v3838, 0
  %v3879 = vsel %vm407, %v3839, 0
  %v3882 = vsel %vm407, %v3840, 0
  %v3885 = vsel %vm407, %v3841, 0
  %v3888 = vsel %vm407, %v3842, 0
  %v3891 = vsel %vm407, %v3843, 0
  %v3894 = vsel %vm407, %v3844, 0
  %v3897 = vsel %vm407, %v3845, 0
  %v3900 = vsel %vm407, %v3846, 0
  %v3903 = vsel %vm407, %v3847, 0
  %v3906 = vsel %vm407, %v3848, 0
  %v3909 = vsel %vm407, %v3849, 0
  %v3912 = vsel %vm407, %v3850, 0
  %v3915 = vsel %vm407, %v3851, 0
  %v3918 = vsel %vm407, %v3852, 0
  %v3921 = vsel %vm407, %v3853, 0
  %3923 = vmatprep.subr.bf16.mxu0 0
  %3924 = vmatpush1.bf16.msra.mxu0 %v3871
  %3925 = vmatprep.subr.bf16.mxu0 0
  %3926 = vmatpush1.bf16.msra.mxu0 %v3872
  %3927 = vmatprep.subr.bf16.mxu0 0
  %3928 = vmatpush1.bf16.msra.mxu0 0
  %3929 = vmatprep.subr.bf16.mxu0 0
  %3930 = vmatpush1.bf16.msra.mxu0 0
  %3931 = vmatprep.subr.bf16.mxu0 0
  %3932 = vmatpush1.bf16.msra.mxu0 0
  %3933 = vmatprep.subr.bf16.mxu0 0
  %3934 = vmatpush1.bf16.msra.mxu0 0
  %3935 = vmatprep.subr.bf16.mxu0 0
  %3936 = vmatpush1.bf16.msra.mxu0 0
  %3937 = vmatprep.subr.bf16.mxu0 0
  %3938 = vmatpush1.bf16.msra.mxu0 0
  %3939 = vmatprep.subr.bf16.mxu0 0
  %3940 = vmatpush1.bf16.msra.mxu0 0
  %3941 = vmatprep.subr.bf16.mxu0 0
  %3942 = vmatpush1.bf16.msra.mxu0 0
  %3943 = vmatprep.subr.bf16.mxu0 0
  %3944 = vmatpush1.bf16.msra.mxu0 0
  %3945 = vmatprep.subr.bf16.mxu0 0
  %3946 = vmatpush1.bf16.msra.mxu0 0
  %3947 = vmatprep.subr.bf16.mxu0 0
  %3948 = vmatpush1.bf16.msra.mxu0 0
  %3949 = vmatprep.subr.bf16.mxu0 0
  %3950 = vmatpush1.bf16.msra.mxu0 0
  %3951 = vmatprep.subr.bf16.mxu0 0
  %3952 = vmatpush1.bf16.msra.mxu0 0
  %3953 = vmatprep.subr.bf16.mxu0 0
  %3954 = vmatpush1.bf16.msra.mxu0 0
  %3955 = vmatprep.mubr.bf16.mxu0 0
  %3956 = vmatmul.mubr.bf16.gmra.mrb[0].mxu0 %v3876
  %v3957 = vpop.f32.mrb[0].mxu0
  %v3958 = vadd.f32 %v3862, %v3957
  %v3959 = vpop.f32.mrb[0].mxu0
  %v3960 = vpop.f32.mrb[0].mxu0
  %v3961 = vadd.f32 %v3862, %v3960
  %v3962 = vpop.f32.mrb[0].mxu0
  %3963 = vmatprep.mubr.bf16.mxu0 0
  %3964 = vmatmul.mubr.bf16.gmra.mrb[0].mxu0 %v3879
  %v3965 = vpop.f32.mrb[0].mxu0
  %v3966 = vadd.f32 %v3862, %v3965
  %v3967 = vpop.f32.mrb[0].mxu0
  %v3968 = vpop.f32.mrb[0].mxu0
  %v3969 = vadd.f32 %v3862, %v3968
  %v3970 = vpop.f32.mrb[0].mxu0
  %3971 = vmatprep.mubr.bf16.mxu0 0
  %3972 = vmatmul.mubr.bf16.gmra.mrb[0].mxu0 %v3882
  %v3973 = vpop.f32.mrb[0].mxu0
  %v3974 = vadd.f32 %v3862, %v3973
  %v3975 = vpop.f32.mrb[0].mxu0
  %v3976 = vpop.f32.mrb[0].mxu0
  %v3977 = vadd.f32 %v3862, %v3976
  %v3978 = vpop.f32.mrb[0].mxu0
  %3979 = vmatprep.mubr.bf16.mxu0 0
  %3980 = vmatmul.mubr.bf16.gmra.mrb[0].mxu0 %v3885
  %v3981 = vpop.f32.mrb[0].mxu0
  %v3982 = vadd.f32 %v3862, %v3981
  %v3983 = vpop.f32.mrb[0].mxu0
  %v3984 = vpop.f32.mrb[0].mxu0
  %v3985 = vadd.f32 %v3862, %v3984
  %v3986 = vpop.f32.mrb[0].mxu0
  %3987 = vmatprep.mubr.bf16.mxu0 0
  %3988 = vmatmul.mubr.bf16.gmra.mrb[0].mxu0 %v3888
  %v3989 = vpop.f32.mrb[0].mxu0
  %v3990 = vadd.f32 %v3862, %v3989
  %v3991 = vpop.f32.mrb[0].mxu0
  %v3992 = vpop.f32.mrb[0].mxu0
  %v3993 = vadd.f32 %v3862, %v3992
  %v3994 = vpop.f32.mrb[0].mxu0
  %3995 = vmatprep.mubr.bf16.mxu0 0
  %3996 = vmatmul.mubr.bf16.gmra.mrb[0].mxu0 %v3891
  %v3997 = vpop.f32.mrb[0].mxu0
  %v3998 = vadd.f32 %v3862, %v3997
  %v3999 = vpop.f32.mrb[0].mxu0
  %v4000 = vpop.f32.mrb[0].mxu0
  %v4001 = vadd.f32 %v3862, %v4000
  %v4002 = vpop.f32.mrb[0].mxu0
  %4003 = vmatprep.mubr.bf16.mxu0 0
  %4004 = vmatmul.mubr.bf16.gmra.mrb[0].mxu0 %v3894
  %v4005 = vpop.f32.mrb[0].mxu0
  %v4006 = vadd.f32 %v3862, %v4005
  %v4007 = vpop.f32.mrb[0].mxu0
  %v4008 = vpop.f32.mrb[0].mxu0
  %v4009 = vadd.f32 %v3862, %v4008
  %v4010 = vpop.f32.mrb[0].mxu0
  %4011 = vmatprep.mubr.bf16.mxu0 0
  %4012 = vmatmul.mubr.bf16.gmra.mrb[0].mxu0 %v3897
  %v4013 = vpop.f32.mrb[0].mxu0
  %v4014 = vadd.f32 %v3862, %v4013
  %v4015 = vpop.f32.mrb[0].mxu0
  %v4016 = vpop.f32.mrb[0].mxu0
  %v4017 = vadd.f32 %v3862, %v4016
  %v4018 = vpop.f32.mrb[0].mxu0
  %4019 = vmatprep.mubr.bf16.mxu0 0
  %4020 = vmatmul.mubr.bf16.gmra.mrb[0].mxu0 %v3900
  %v4021 = vpop.f32.mrb[0].mxu0
  %v4022 = vadd.f32 %v3862, %v4021
  %v4023 = vpop.f32.mrb[0].mxu0
  %v4024 = vpop.f32.mrb[0].mxu0
  %v4025 = vadd.f32 %v3862, %v4024
  %v4026 = vpop.f32.mrb[0].mxu0
  %4027 = vmatprep.mubr.bf16.mxu0 0
  %4028 = vmatmul.mubr.bf16.gmra.mrb[0].mxu0 %v3903
  %v4029 = vpop.f32.mrb[0].mxu0
  %v4030 = vadd.f32 %v3862, %v4029
  %v4031 = vpop.f32.mrb[0].mxu0
  %v4032 = vpop.f32.mrb[0].mxu0
  %v4033 = vadd.f32 %v3862, %v4032
  %v4034 = vpop.f32.mrb[0].mxu0
  %4035 = vmatprep.mubr.bf16.mxu0 0
  %4036 = vmatmul.mubr.bf16.gmra.mrb[0].mxu0 %v3906
  %v4037 = vpop.f32.mrb[0].mxu0
  %v4038 = vadd.f32 %v3862, %v4037
  %v4039 = vpop.f32.mrb[0].mxu0
  %v4040 = vpop.f32.mrb[0].mxu0
  %v4041 = vadd.f32 %v3862, %v4040
  %v4042 = vpop.f32.mrb[0].mxu0
  %4043 = vmatprep.mubr.bf16.mxu0 0
  %4044 = vmatmul.mubr.bf16.gmra.mrb[0].mxu0 %v3909
  %v4045 = vpop.f32.mrb[0].mxu0
  %v4046 = vadd.f32 %v3862, %v4045
  %v4047 = vpop.f32.mrb[0].mxu0
  %v4048 = vpop.f32.mrb[0].mxu0
  %v4049 = vadd.f32 %v3862, %v4048
  %v4050 = vpop.f32.mrb[0].mxu0
  %4051 = vmatprep.mubr.bf16.mxu0 0
  %4052 = vmatmul.mubr.bf16.gmra.mrb[0].mxu0 %v3912
  %v4053 = vpop.f32.mrb[0].mxu0
  %v4054 = vadd.f32 %v3862, %v4053
  %v4055 = vpop.f32.mrb[0].mxu0
  %v4056 = vpop.f32.mrb[0].mxu0
  %v4057 = vadd.f32 %v3862, %v4056
  %v4058 = vpop.f32.mrb[0].mxu0
  %4059 = vmatprep.mubr.bf16.mxu0 0
  %4060 = vmatmul.mubr.bf16.gmra.mrb[0].mxu0 %v3915
  %v4061 = vpop.f32.mrb[0].mxu0
  %v4062 = vadd.f32 %v3862, %v4061
  %v4063 = vpop.f32.mrb[0].mxu0
  %v4064 = vpop.f32.mrb[0].mxu0
  %v4065 = vadd.f32 %v3862, %v4064
  %v4066 = vpop.f32.mrb[0].mxu0
  %4067 = vmatprep.mubr.bf16.mxu0 0
  %4068 = vmatmul.mubr.bf16.gmra.mrb[0].mxu0 %v3918
  %v4069 = vpop.f32.mrb[0].mxu0
  %v4070 = vadd.f32 %v3862, %v4069
  %v4071 = vpop.f32.mrb[0].mxu0
  %v4072 = vpop.f32.mrb[0].mxu0
  %v4073 = vadd.f32 %v3862, %v4072
  %v4074 = vpop.f32.mrb[0].mxu0
  %4075 = vmatprep.mubr.bf16.mxu0 0
  %4076 = vmatmul.mubr.bf16.gmra.mrb[0].mxu0 %v3921
  %v4077 = vpop.f32.mrb[0].mxu0
  %v4078 = vadd.f32 %v3862, %v4077
  %v4079 = vpop.f32.mrb[0].mxu0
  %v4080 = vpop.f32.mrb[0].mxu0
  %v4081 = vadd.f32 %v3862, %v4080
  %v4082 = vpop.f32.mrb[0].mxu0
  %4083 = vdwg.mxu0
  %v4084 = vmul.f32 %v3958, 0.01
  %v4085 = vmul.f32 %v3961, 0.01
  %v4086 = vmul.f32 %v3966, 0.01
  %v4087 = vmul.f32 %v3969, 0.01
  %v4088 = vmul.f32 %v3974, 0.01
  %v4089 = vmul.f32 %v3977, 0.01
  %v4090 = vmul.f32 %v3982, 0.01
  %v4091 = vmul.f32 %v3985, 0.01
  %v4092 = vmul.f32 %v3990, 0.01
  %v4093 = vmul.f32 %v3993, 0.01
  %v4094 = vmul.f32 %v3998, 0.01
  %v4095 = vmul.f32 %v4001, 0.01
  %v4096 = vmul.f32 %v4006, 0.01
  %v4097 = vmul.f32 %v4009, 0.01
  %v4098 = vmul.f32 %v4014, 0.01
  %v4099 = vmul.f32 %v4017, 0.01
  %v4100 = vmul.f32 %v4022, 0.01
  %v4101 = vmul.f32 %v4025, 0.01
  %v4102 = vmul.f32 %v4030, 0.01
  %v4103 = vmul.f32 %v4033, 0.01
  %v4104 = vmul.f32 %v4038, 0.01
  %v4105 = vmul.f32 %v4041, 0.01
  %v4106 = vmul.f32 %v4046, 0.01
  %v4107 = vmul.f32 %v4049, 0.01
  %v4108 = vmul.f32 %v4054, 0.01
  %v4109 = vmul.f32 %v4057, 0.01
  %v4110 = vmul.f32 %v4062, 0.01
  %v4111 = vmul.f32 %v4065, 0.01
  %v4112 = vmul.f32 %v4070, 0.01
  %v4113 = vmul.f32 %v4073, 0.01
  %v4114 = vmul.f32 %v4078, 0.01
  %v4115 = vmul.f32 %v4081, 0.01
  %v4116 = vmax.f32 %v3958, %v4084
  %v4117 = vmax.f32 %v3961, %v4085
  %v4118 = vmax.f32 %v3966, %v4086
  %v4119 = vmax.f32 %v3969, %v4087
  %v4120 = vmax.f32 %v3974, %v4088
  %v4121 = vmax.f32 %v3977, %v4089
  %v4122 = vmax.f32 %v3982, %v4090
  %v4123 = vmax.f32 %v3985, %v4091
  %v4124 = vmax.f32 %v3990, %v4092
  %v4125 = vmax.f32 %v3993, %v4093
  %v4126 = vmax.f32 %v3998, %v4094
  %v4127 = vmax.f32 %v4001, %v4095
  %v4128 = vmax.f32 %v4006, %v4096
  %v4129 = vmax.f32 %v4009, %v4097
  %v4130 = vmax.f32 %v4014, %v4098
  %v4131 = vmax.f32 %v4017, %v4099
  %v4132 = vmax.f32 %v4022, %v4100
  %v4133 = vmax.f32 %v4025, %v4101
  %v4134 = vmax.f32 %v4030, %v4102
  %v4135 = vmax.f32 %v4033, %v4103
  %v4136 = vmax.f32 %v4038, %v4104
  %v4137 = vmax.f32 %v4041, %v4105
  %v4138 = vmax.f32 %v4046, %v4106
  %v4139 = vmax.f32 %v4049, %v4107
  %v4140 = vmax.f32 %v4054, %v4108
  %v4141 = vmax.f32 %v4057, %v4109
  %v4142 = vmax.f32 %v4062, %v4110
  %v4143 = vmax.f32 %v4065, %v4111
  %v4144 = vmax.f32 %v4070, %v4112
  %v4145 = vmax.f32 %v4073, %v4113
  %v4146 = vmax.f32 %v4078, %v4114
  %v4147 = vmax.f32 %v4081, %v4115
  %v4148 = vpack.c.bf16 %v4117, %v4116
  %v4149 = vpack.c.bf16 %v4119, %v4118
  %v4150 = vpack.c.bf16 %v4121, %v4120
  %v4151 = vpack.c.bf16 %v4123, %v4122
  %v4152 = vpack.c.bf16 %v4125, %v4124
  %v4153 = vpack.c.bf16 %v4127, %v4126
  %v4154 = vpack.c.bf16 %v4129, %v4128
  %v4155 = vpack.c.bf16 %v4131, %v4130
  %v4156 = vpack.c.bf16 %v4133, %v4132
  %v4157 = vpack.c.bf16 %v4135, %v4134
  %v4158 = vpack.c.bf16 %v4137, %v4136
  %v4159 = vpack.c.bf16 %v4139, %v4138
  %v4160 = vpack.c.bf16 %v4141, %v4140
  %v4161 = vpack.c.bf16 %v4143, %v4142
  %v4162 = vpack.c.bf16 %v4145, %v4144
  %v4163 = vpack.c.bf16 %v4147, %v4146
  %s4164 = scalar_lea.vmem %s3, 48
  %v4165 = vld [vmem:[%s4164] sm:$0xf]
  %v4166 = vld [vmem:[%s4164 + $0x4] sm:$0xf]
  %v4167 = vld [vmem:[%s4164 + $0x8] sm:$0xf]
  %v4168 = vld [vmem:[%s4164 + $0xc] sm:$0xf]
  %v4169 = vlaneseq
  %v4170 = vshrl.u32 %v4169, 7
  %v4171 = vsub.s32 2, %v4170
  %v4172 = vrot.slane %v3527, %v4171
  %v4177 = vunpack.c.l.b16 %v4165
  %v4178 = vunpack.c.l.b16 %v4166
  %v4179 = vunpack.c.l.b16 %v4167
  %v4180 = vunpack.c.l.b16 %v4168
  %v4181 = vpack.c.b16 %v4178, %v4177
  %v4182 = vpack.c.b16 %v4180, %v4179
  %v4186 = vsel %vm407, %v4148, 0
  %v4189 = vsel %vm407, %v4149, 0
  %v4192 = vsel %vm407, %v4150, 0
  %v4195 = vsel %vm407, %v4151, 0
  %v4198 = vsel %vm407, %v4152, 0
  %v4201 = vsel %vm407, %v4153, 0
  %v4204 = vsel %vm407, %v4154, 0
  %v4207 = vsel %vm407, %v4155, 0
  %v4210 = vsel %vm407, %v4156, 0
  %v4213 = vsel %vm407, %v4157, 0
  %v4216 = vsel %vm407, %v4158, 0
  %v4219 = vsel %vm407, %v4159, 0
  %v4222 = vsel %vm407, %v4160, 0
  %v4225 = vsel %vm407, %v4161, 0
  %v4228 = vsel %vm407, %v4162, 0
  %v4231 = vsel %vm407, %v4163, 0
  %4233 = vmatprep.subr.bf16.mxu0 0
  %4234 = vmatpush1.bf16.msra.mxu0 %v4181
  %4235 = vmatprep.subr.bf16.mxu0 0
  %4236 = vmatpush1.bf16.msra.mxu0 %v4182
  %4237 = vmatprep.subr.bf16.mxu0 0
  %4238 = vmatpush1.bf16.msra.mxu0 0
  %4239 = vmatprep.subr.bf16.mxu0 0
  %4240 = vmatpush1.bf16.msra.mxu0 0
  %4241 = vmatprep.subr.bf16.mxu0 0
  %4242 = vmatpush1.bf16.msra.mxu0 0
  %4243 = vmatprep.subr.bf16.mxu0 0
  %4244 = vmatpush1.bf16.msra.mxu0 0
  %4245 = vmatprep.subr.bf16.mxu0 0
  %4246 = vmatpush1.bf16.msra.mxu0 0
  %4247 = vmatprep.subr.bf16.mxu0 0
  %4248 = vmatpush1.bf16.msra.mxu0 0
  %4249 = vmatprep.subr.bf16.mxu0 0
  %4250 = vmatpush1.bf16.msra.mxu0 0
  %4251 = vmatprep.subr.bf16.mxu0 0
  %4252 = vmatpush1.bf16.msra.mxu0 0
  %4253 = vmatprep.subr.bf16.mxu0 0
  %4254 = vmatpush1.bf16.msra.mxu0 0
  %4255 = vmatprep.subr.bf16.mxu0 0
  %4256 = vmatpush1.bf16.msra.mxu0 0
  %4257 = vmatprep.subr.bf16.mxu0 0
  %4258 = vmatpush1.bf16.msra.mxu0 0
  %4259 = vmatprep.subr.bf16.mxu0 0
  %4260 = vmatpush1.bf16.msra.mxu0 0
  %4261 = vmatprep.subr.bf16.mxu0 0
  %4262 = vmatpush1.bf16.msra.mxu0 0
  %4263 = vmatprep.subr.bf16.mxu0 0
  %4264 = vmatpush1.bf16.msra.mxu0 0
  %4265 = vmatprep.mubr.bf16.mxu0 0
  %4266 = vmatmul.mubr.bf16.gmra.mrb[0].mxu0 %v4186
  %v4267 = vpop.f32.mrb[0].mxu0
  %v4268 = vadd.f32 %v4172, %v4267
  %v4269 = vpop.f32.mrb[0].mxu0
  %v4270 = vpop.f32.mrb[0].mxu0
  %v4271 = vadd.f32 %v4172, %v4270
  %v4272 = vpop.f32.mrb[0].mxu0
  %4273 = vmatprep.mubr.bf16.mxu0 0
  %4274 = vmatmul.mubr.bf16.gmra.mrb[0].mxu0 %v4189
  %v4275 = vpop.f32.mrb[0].mxu0
  %v4276 = vadd.f32 %v4172, %v4275
  %v4277 = vpop.f32.mrb[0].mxu0
  %v4278 = vpop.f32.mrb[0].mxu0
  %v4279 = vadd.f32 %v4172, %v4278
  %v4280 = vpop.f32.mrb[0].mxu0
  %4281 = vmatprep.mubr.bf16.mxu0 0
  %4282 = vmatmul.mubr.bf16.gmra.mrb[0].mxu0 %v4192
  %v4283 = vpop.f32.mrb[0].mxu0
  %v4284 = vadd.f32 %v4172, %v4283
  %v4285 = vpop.f32.mrb[0].mxu0
  %v4286 = vpop.f32.mrb[0].mxu0
  %v4287 = vadd.f32 %v4172, %v4286
  %v4288 = vpop.f32.mrb[0].mxu0
  %4289 = vmatprep.mubr.bf16.mxu0 0
  %4290 = vmatmul.mubr.bf16.gmra.mrb[0].mxu0 %v4195
  %v4291 = vpop.f32.mrb[0].mxu0
  %v4292 = vadd.f32 %v4172, %v4291
  %v4293 = vpop.f32.mrb[0].mxu0
  %v4294 = vpop.f32.mrb[0].mxu0
  %v4295 = vadd.f32 %v4172, %v4294
  %v4296 = vpop.f32.mrb[0].mxu0
  %4297 = vmatprep.mubr.bf16.mxu0 0
  %4298 = vmatmul.mubr.bf16.gmra.mrb[0].mxu0 %v4198
  %v4299 = vpop.f32.mrb[0].mxu0
  %v4300 = vadd.f32 %v4172, %v4299
  %v4301 = vpop.f32.mrb[0].mxu0
  %v4302 = vpop.f32.mrb[0].mxu0
  %v4303 = vadd.f32 %v4172, %v4302
  %v4304 = vpop.f32.mrb[0].mxu0
  %4305 = vmatprep.mubr.bf16.mxu0 0
  %4306 = vmatmul.mubr.bf16.gmra.mrb[0].mxu0 %v4201
  %v4307 = vpop.f32.mrb[0].mxu0
  %v4308 = vadd.f32 %v4172, %v4307
  %v4309 = vpop.f32.mrb[0].mxu0
  %v4310 = vpop.f32.mrb[0].mxu0
  %v4311 = vadd.f32 %v4172, %v4310
  %v4312 = vpop.f32.mrb[0].mxu0
  %4313 = vmatprep.mubr.bf16.mxu0 0
  %4314 = vmatmul.mubr.bf16.gmra.mrb[0].mxu0 %v4204
  %v4315 = vpop.f32.mrb[0].mxu0
  %v4316 = vadd.f32 %v4172, %v4315
  %v4317 = vpop.f32.mrb[0].mxu0
  %v4318 = vpop.f32.mrb[0].mxu0
  %v4319 = vadd.f32 %v4172, %v4318
  %v4320 = vpop.f32.mrb[0].mxu0
  %4321 = vmatprep.mubr.bf16.mxu0 0
  %4322 = vmatmul.mubr.bf16.gmra.mrb[0].mxu0 %v4207
  %v4323 = vpop.f32.mrb[0].mxu0
  %v4324 = vadd.f32 %v4172, %v4323
  %v4325 = vpop.f32.mrb[0].mxu0
  %v4326 = vpop.f32.mrb[0].mxu0
  %v4327 = vadd.f32 %v4172, %v4326
  %v4328 = vpop.f32.mrb[0].mxu0
  %4329 = vmatprep.mubr.bf16.mxu0 0
  %4330 = vmatmul.mubr.bf16.gmra.mrb[0].mxu0 %v4210
  %v4331 = vpop.f32.mrb[0].mxu0
  %v4332 = vadd.f32 %v4172, %v4331
  %v4333 = vpop.f32.mrb[0].mxu0
  %v4334 = vpop.f32.mrb[0].mxu0
  %v4335 = vadd.f32 %v4172, %v4334
  %v4336 = vpop.f32.mrb[0].mxu0
  %4337 = vmatprep.mubr.bf16.mxu0 0
  %4338 = vmatmul.mubr.bf16.gmra.mrb[0].mxu0 %v4213
  %v4339 = vpop.f32.mrb[0].mxu0
  %v4340 = vadd.f32 %v4172, %v4339
  %v4341 = vpop.f32.mrb[0].mxu0
  %v4342 = vpop.f32.mrb[0].mxu0
  %v4343 = vadd.f32 %v4172, %v4342
  %v4344 = vpop.f32.mrb[0].mxu0
  %4345 = vmatprep.mubr.bf16.mxu0 0
  %4346 = vmatmul.mubr.bf16.gmra.mrb[0].mxu0 %v4216
  %v4347 = vpop.f32.mrb[0].mxu0
  %v4348 = vadd.f32 %v4172, %v4347
  %v4349 = vpop.f32.mrb[0].mxu0
  %v4350 = vpop.f32.mrb[0].mxu0
  %v4351 = vadd.f32 %v4172, %v4350
  %v4352 = vpop.f32.mrb[0].mxu0
  %4353 = vmatprep.mubr.bf16.mxu0 0
  %4354 = vmatmul.mubr.bf16.gmra.mrb[0].mxu0 %v4219
  %v4355 = vpop.f32.mrb[0].mxu0
  %v4356 = vadd.f32 %v4172, %v4355
  %v4357 = vpop.f32.mrb[0].mxu0
  %v4358 = vpop.f32.mrb[0].mxu0
  %v4359 = vadd.f32 %v4172, %v4358
  %v4360 = vpop.f32.mrb[0].mxu0
  %4361 = vmatprep.mubr.bf16.mxu0 0
  %4362 = vmatmul.mubr.bf16.gmra.mrb[0].mxu0 %v4222
  %v4363 = vpop.f32.mrb[0].mxu0
  %v4364 = vadd.f32 %v4172, %v4363
  %v4365 = vpop.f32.mrb[0].mxu0
  %v4366 = vpop.f32.mrb[0].mxu0
  %v4367 = vadd.f32 %v4172, %v4366
  %v4368 = vpop.f32.mrb[0].mxu0
  %4369 = vmatprep.mubr.bf16.mxu0 0
  %4370 = vmatmul.mubr.bf16.gmra.mrb[0].mxu0 %v4225
  %v4371 = vpop.f32.mrb[0].mxu0
  %v4372 = vadd.f32 %v4172, %v4371
  %v4373 = vpop.f32.mrb[0].mxu0
  %v4374 = vpop.f32.mrb[0].mxu0
  %v4375 = vadd.f32 %v4172, %v4374
  %v4376 = vpop.f32.mrb[0].mxu0
  %4377 = vmatprep.mubr.bf16.mxu0 0
  %4378 = vmatmul.mubr.bf16.gmra.mrb[0].mxu0 %v4228
  %v4379 = vpop.f32.mrb[0].mxu0
  %v4380 = vadd.f32 %v4172, %v4379
  %v4381 = vpop.f32.mrb[0].mxu0
  %v4382 = vpop.f32.mrb[0].mxu0
  %v4383 = vadd.f32 %v4172, %v4382
  %v4384 = vpop.f32.mrb[0].mxu0
  %4385 = vmatprep.mubr.bf16.mxu0 0
  %4386 = vmatmul.mubr.bf16.gmra.mrb[0].mxu0 %v4231
  %v4387 = vpop.f32.mrb[0].mxu0
  %v4388 = vadd.f32 %v4172, %v4387
  %v4389 = vpop.f32.mrb[0].mxu0
  %v4390 = vpop.f32.mrb[0].mxu0
  %v4391 = vadd.f32 %v4172, %v4390
  %v4392 = vpop.f32.mrb[0].mxu0
  %4393 = vdwg.mxu0
  %v4394 = vmul.f32 %v4268, %v25
  %v4395 = vmul.f32 %v4271, %v25
  %v4396 = vmul.f32 %v4276, %v25
  %v4397 = vmul.f32 %v4279, %v25
  %v4398 = vmul.f32 %v4284, %v25
  %v4399 = vmul.f32 %v4287, %v25
  %v4400 = vmul.f32 %v4292, %v25
  %v4401 = vmul.f32 %v4295, %v25
  %v4402 = vmul.f32 %v4300, %v25
  %v4403 = vmul.f32 %v4303, %v25
  %v4404 = vmul.f32 %v4308, %v25
  %v4405 = vmul.f32 %v4311, %v25
  %v4406 = vmul.f32 %v4316, %v25
  %v4407 = vmul.f32 %v4319, %v25
  %v4408 = vmul.f32 %v4324, %v25
  %v4409 = vmul.f32 %v4327, %v25
  %v4410 = vmul.f32 %v4332, %v25
  %v4411 = vmul.f32 %v4335, %v25
  %v4412 = vmul.f32 %v4340, %v25
  %v4413 = vmul.f32 %v4343, %v25
  %v4414 = vmul.f32 %v4348, %v25
  %v4415 = vmul.f32 %v4351, %v25
  %v4416 = vmul.f32 %v4356, %v25
  %v4417 = vmul.f32 %v4359, %v25
  %v4418 = vmul.f32 %v4364, %v25
  %v4419 = vmul.f32 %v4367, %v25
  %v4420 = vmul.f32 %v4372, %v25
  %v4421 = vmul.f32 %v4375, %v25
  %v4422 = vmul.f32 %v4380, %v25
  %v4423 = vmul.f32 %v4383, %v25
  %v4424 = vmul.f32 %v4388, %v25
  %v4425 = vmul.f32 %v4391, %v25
  %4426 = vrot.lane.b32.xlu0 %v4268, 120
  %v4427 = vpop.permute.xlu0 %4426
  %4428 = vrot.lane.b32.xlu0 %v4271, 120
  %v4429 = vpop.permute.xlu0 %4428
  %4430 = vrot.lane.b32.xlu0 %v4276, 120
  %v4431 = vpop.permute.xlu0 %4430
  %4432 = vrot.lane.b32.xlu0 %v4279, 120
  %v4433 = vpop.permute.xlu0 %4432
  %4434 = vrot.lane.b32.xlu0 %v4284, 120
  %v4435 = vpop.permute.xlu0 %4434
  %4436 = vrot.lane.b32.xlu0 %v4287, 120
  %v4437 = vpop.permute.xlu0 %4436
  %4438 = vrot.lane.b32.xlu0 %v4292, 120
  %v4439 = vpop.permute.xlu0 %4438
  %4440 = vrot.lane.b32.xlu0 %v4295, 120
  %v4441 = vpop.permute.xlu0 %4440
  %4442 = vrot.lane.b32.xlu0 %v4300, 120
  %v4443 = vpop.permute.xlu0 %4442
  %4444 = vrot.lane.b32.xlu0 %v4303, 120
  %v4445 = vpop.permute.xlu0 %4444
  %4446 = vrot.lane.b32.xlu0 %v4308, 120
  %v4447 = vpop.permute.xlu0 %4446
  %4448 = vrot.lane.b32.xlu0 %v4311, 120
  %v4449 = vpop.permute.xlu0 %4448
  %4450 = vrot.lane.b32.xlu0 %v4316, 120
  %v4451 = vpop.permute.xlu0 %4450
  %4452 = vrot.lane.b32.xlu0 %v4319, 120
  %v4453 = vpop.permute.xlu0 %4452
  %4454 = vrot.lane.b32.xlu0 %v4324, 120
  %v4455 = vpop.permute.xlu0 %4454
  %4456 = vrot.lane.b32.xlu0 %v4327, 120
  %v4457 = vpop.permute.xlu0 %4456
  %4458 = vrot.lane.b32.xlu0 %v4332, 120
  %v4459 = vpop.permute.xlu0 %4458
  %4460 = vrot.lane.b32.xlu0 %v4335, 120
  %v4461 = vpop.permute.xlu0 %4460
  %4462 = vrot.lane.b32.xlu0 %v4340, 120
  %v4463 = vpop.permute.xlu0 %4462
  %4464 = vrot.lane.b32.xlu0 %v4343, 120
  %v4465 = vpop.permute.xlu0 %4464
  %4466 = vrot.lane.b32.xlu0 %v4348, 120
  %v4467 = vpop.permute.xlu0 %4466
  %4468 = vrot.lane.b32.xlu0 %v4351, 120
  %v4469 = vpop.permute.xlu0 %4468
  %4470 = vrot.lane.b32.xlu0 %v4356, 120
  %v4471 = vpop.permute.xlu0 %4470
  %4472 = vrot.lane.b32.xlu0 %v4359, 120
  %v4473 = vpop.permute.xlu0 %4472
  %4474 = vrot.lane.b32.xlu0 %v4364, 120
  %v4475 = vpop.permute.xlu0 %4474
  %4476 = vrot.lane.b32.xlu0 %v4367, 120
  %v4477 = vpop.permute.xlu0 %4476
  %4478 = vrot.lane.b32.xlu0 %v4372, 120
  %v4479 = vpop.permute.xlu0 %4478
  %4480 = vrot.lane.b32.xlu0 %v4375, 120
  %v4481 = vpop.permute.xlu0 %4480
  %4482 = vrot.lane.b32.xlu0 %v4380, 120
  %v4483 = vpop.permute.xlu0 %4482
  %4484 = vrot.lane.b32.xlu0 %v4383, 120
  %v4485 = vpop.permute.xlu0 %4484
  %4486 = vrot.lane.b32.xlu0 %v4388, 120
  %v4487 = vpop.permute.xlu0 %4486
  %4488 = vrot.lane.b32.xlu0 %v4391, 120
  %v4489 = vpop.permute.xlu0 %4488
  %v4490 = vmul.f32 %v4427, %v25
  %v4491 = vmul.f32 %v4429, %v25
  %v4492 = vmul.f32 %v4431, %v25
  %v4493 = vmul.f32 %v4433, %v25
  %v4494 = vmul.f32 %v4435, %v25
  %v4495 = vmul.f32 %v4437, %v25
  %v4496 = vmul.f32 %v4439, %v25
  %v4497 = vmul.f32 %v4441, %v25
  %v4498 = vmul.f32 %v4443, %v25
  %v4499 = vmul.f32 %v4445, %v25
  %v4500 = vmul.f32 %v4447, %v25
  %v4501 = vmul.f32 %v4449, %v25
  %v4502 = vmul.f32 %v4451, %v25
  %v4503 = vmul.f32 %v4453, %v25
  %v4504 = vmul.f32 %v4455, %v25
  %v4505 = vmul.f32 %v4457, %v25
  %v4506 = vmul.f32 %v4459, %v25
  %v4507 = vmul.f32 %v4461, %v25
  %v4508 = vmul.f32 %v4463, %v25
  %v4509 = vmul.f32 %v4465, %v25
  %v4510 = vmul.f32 %v4467, %v25
  %v4511 = vmul.f32 %v4469, %v25
  %v4512 = vmul.f32 %v4471, %v25
  %v4513 = vmul.f32 %v4473, %v25
  %v4514 = vmul.f32 %v4475, %v25
  %v4515 = vmul.f32 %v4477, %v25
  %v4516 = vmul.f32 %v4479, %v25
  %v4517 = vmul.f32 %v4481, %v25
  %v4518 = vmul.f32 %v4483, %v25
  %v4519 = vmul.f32 %v4485, %v25
  %v4520 = vmul.f32 %v4487, %v25
  %v4521 = vmul.f32 %v4489, %v25
  %v4522 = vmul.f32 %v4394, 1.442695
  %v4523 = vpow.pop %v4522
  %v4524 = vmul.f32 %v4395, 1.442695
  %v4525 = vpow.pop %v4524
  %v4526 = vmul.f32 %v4396, 1.442695
  %v4527 = vpow.pop %v4526
  %v4528 = vmul.f32 %v4397, 1.442695
  %v4529 = vpow.pop %v4528
  %v4530 = vmul.f32 %v4398, 1.442695
  %v4531 = vpow.pop %v4530
  %v4532 = vmul.f32 %v4399, 1.442695
  %v4533 = vpow.pop %v4532
  %v4534 = vmul.f32 %v4400, 1.442695
  %v4535 = vpow.pop %v4534
  %v4536 = vmul.f32 %v4401, 1.442695
  %v4537 = vpow.pop %v4536
  %v4538 = vmul.f32 %v4402, 1.442695
  %v4539 = vpow.pop %v4538
  %v4540 = vmul.f32 %v4403, 1.442695
  %v4541 = vpow.pop %v4540
  %v4542 = vmul.f32 %v4404, 1.442695
  %v4543 = vpow.pop %v4542
  %v4544 = vmul.f32 %v4405, 1.442695
  %v4545 = vpow.pop %v4544
  %v4546 = vmul.f32 %v4406, 1.442695
  %v4547 = vpow.pop %v4546
  %v4548 = vmul.f32 %v4407, 1.442695
  %v4549 = vpow.pop %v4548
  %v4550 = vmul.f32 %v4408, 1.442695
  %v4551 = vpow.pop %v4550
  %v4552 = vmul.f32 %v4409, 1.442695
  %v4553 = vpow.pop %v4552
  %v4554 = vmul.f32 %v4410, 1.442695
  %v4555 = vpow.pop %v4554
  %v4556 = vmul.f32 %v4411, 1.442695
  %v4557 = vpow.pop %v4556
  %v4558 = vmul.f32 %v4412, 1.442695
  %v4559 = vpow.pop %v4558
  %v4560 = vmul.f32 %v4413, 1.442695
  %v4561 = vpow.pop %v4560
  %v4562 = vmul.f32 %v4414, 1.442695
  %v4563 = vpow.pop %v4562
  %v4564 = vmul.f32 %v4415, 1.442695
  %v4565 = vpow.pop %v4564
  %v4566 = vmul.f32 %v4416, 1.442695
  %v4567 = vpow.pop %v4566
  %v4568 = vmul.f32 %v4417, 1.442695
  %v4569 = vpow.pop %v4568
  %v4570 = vmul.f32 %v4418, 1.442695
  %v4571 = vpow.pop %v4570
  %v4572 = vmul.f32 %v4419, 1.442695
  %v4573 = vpow.pop %v4572
  %v4574 = vmul.f32 %v4420, 1.442695
  %v4575 = vpow.pop %v4574
  %v4576 = vmul.f32 %v4421, 1.442695
  %v4577 = vpow.pop %v4576
  %v4578 = vmul.f32 %v4422, 1.442695
  %v4579 = vpow.pop %v4578
  %v4580 = vmul.f32 %v4423, 1.442695
  %v4581 = vpow.pop %v4580
  %v4582 = vmul.f32 %v4424, 1.442695
  %v4583 = vpow.pop %v4582
  %v4584 = vmul.f32 %v4425, 1.442695
  %v4585 = vpow.pop %v4584
  %v4586 = vmul.f32 %v3462, %v4523
  %v4587 = vmul.f32 %v3463, %v4525
  %v4588 = vmul.f32 %v3464, %v4527
  %v4589 = vmul.f32 %v3465, %v4529
  %v4590 = vmul.f32 %v3466, %v4531
  %v4591 = vmul.f32 %v3467, %v4533
  %v4592 = vmul.f32 %v3468, %v4535
  %v4593 = vmul.f32 %v3469, %v4537
  %v4594 = vmul.f32 %v3470, %v4539
  %v4595 = vmul.f32 %v3471, %v4541
  %v4596 = vmul.f32 %v3472, %v4543
  %v4597 = vmul.f32 %v3473, %v4545
  %v4598 = vmul.f32 %v3474, %v4547
  %v4599 = vmul.f32 %v3475, %v4549
  %v4600 = vmul.f32 %v3476, %v4551
  %v4601 = vmul.f32 %v3477, %v4553
  %v4602 = vmul.f32 %v3478, %v4555
  %v4603 = vmul.f32 %v3479, %v4557
  %v4604 = vmul.f32 %v3480, %v4559
  %v4605 = vmul.f32 %v3481, %v4561
  %v4606 = vmul.f32 %v3482, %v4563
  %v4607 = vmul.f32 %v3483, %v4565
  %v4608 = vmul.f32 %v3484, %v4567
  %v4609 = vmul.f32 %v3485, %v4569
  %v4610 = vmul.f32 %v3486, %v4571
  %v4611 = vmul.f32 %v3487, %v4573
  %v4612 = vmul.f32 %v3488, %v4575
  %v4613 = vmul.f32 %v3489, %v4577
  %v4614 = vmul.f32 %v3490, %v4579
  %v4615 = vmul.f32 %v3491, %v4581
  %v4616 = vmul.f32 %v3492, %v4583
  %v4617 = vmul.f32 %v3493, %v4585
  %v4618 = vadd.f32 %v4586, %v4490
  %v4619 = vadd.f32 %v4587, %v4491
  %v4620 = vadd.f32 %v4588, %v4492
  %v4621 = vadd.f32 %v4589, %v4493
  %v4622 = vadd.f32 %v4590, %v4494
  %v4623 = vadd.f32 %v4591, %v4495
  %v4624 = vadd.f32 %v4592, %v4496
  %v4625 = vadd.f32 %v4593, %v4497
  %v4626 = vadd.f32 %v4594, %v4498
  %v4627 = vadd.f32 %v4595, %v4499
  %v4628 = vadd.f32 %v4596, %v4500
  %v4629 = vadd.f32 %v4597, %v4501
  %v4630 = vadd.f32 %v4598, %v4502
  %v4631 = vadd.f32 %v4599, %v4503
  %v4632 = vadd.f32 %v4600, %v4504
  %v4633 = vadd.f32 %v4601, %v4505
  %v4634 = vadd.f32 %v4602, %v4506
  %v4635 = vadd.f32 %v4603, %v4507
  %v4636 = vadd.f32 %v4604, %v4508
  %v4637 = vadd.f32 %v4605, %v4509
  %v4638 = vadd.f32 %v4606, %v4510
  %v4639 = vadd.f32 %v4607, %v4511
  %v4640 = vadd.f32 %v4608, %v4512
  %v4641 = vadd.f32 %v4609, %v4513
  %v4642 = vadd.f32 %v4610, %v4514
  %v4643 = vadd.f32 %v4611, %v4515
  %v4644 = vadd.f32 %v4612, %v4516
  %v4645 = vadd.f32 %v4613, %v4517
  %v4646 = vadd.f32 %v4614, %v4518
  %v4647 = vadd.f32 %v4615, %v4519
  %v4648 = vadd.f32 %v4616, %v4520
  %v4649 = vadd.f32 %v4617, %v4521
  %v4650 = vadd.f32 %v3494, %v4394
  %v4651 = vadd.f32 %v3495, %v4395
  %v4652 = vadd.f32 %v3496, %v4396
  %v4653 = vadd.f32 %v3497, %v4397
  %v4654 = vadd.f32 %v3498, %v4398
  %v4655 = vadd.f32 %v3499, %v4399
  %v4656 = vadd.f32 %v3500, %v4400
  %v4657 = vadd.f32 %v3501, %v4401
  %v4658 = vadd.f32 %v3502, %v4402
  %v4659 = vadd.f32 %v3503, %v4403
  %v4660 = vadd.f32 %v3504, %v4404
  %v4661 = vadd.f32 %v3505, %v4405
  %v4662 = vadd.f32 %v3506, %v4406
  %v4663 = vadd.f32 %v3507, %v4407
  %v4664 = vadd.f32 %v3508, %v4408
  %v4665 = vadd.f32 %v3509, %v4409
  %v4666 = vadd.f32 %v3510, %v4410
  %v4667 = vadd.f32 %v3511, %v4411
  %v4668 = vadd.f32 %v3512, %v4412
  %v4669 = vadd.f32 %v3513, %v4413
  %v4670 = vadd.f32 %v3514, %v4414
  %v4671 = vadd.f32 %v3515, %v4415
  %v4672 = vadd.f32 %v3516, %v4416
  %v4673 = vadd.f32 %v3517, %v4417
  %v4674 = vadd.f32 %v3518, %v4418
  %v4675 = vadd.f32 %v3519, %v4419
  %v4676 = vadd.f32 %v3520, %v4420
  %v4677 = vadd.f32 %v3521, %v4421
  %v4678 = vadd.f32 %v3522, %v4422
  %v4679 = vadd.f32 %v3523, %v4423
  %v4680 = vadd.f32 %v3524, %v4424
  %v4681 = vadd.f32 %v3525, %v4425
  %4682 = vadd.xlane.f32.xlu0 %v4650
  %v4683 = vpop.xlane.xlu0 %4682
  %4684 = vadd.xlane.f32.xlu0 %v4651
  %v4685 = vpop.xlane.xlu0 %4684
  %4686 = vadd.xlane.f32.xlu0 %v4652
  %v4687 = vpop.xlane.xlu0 %4686
  %4688 = vadd.xlane.f32.xlu0 %v4653
  %v4689 = vpop.xlane.xlu0 %4688
  %4690 = vadd.xlane.f32.xlu0 %v4654
  %v4691 = vpop.xlane.xlu0 %4690
  %4692 = vadd.xlane.f32.xlu0 %v4655
  %v4693 = vpop.xlane.xlu0 %4692
  %4694 = vadd.xlane.f32.xlu0 %v4656
  %v4695 = vpop.xlane.xlu0 %4694
  %4696 = vadd.xlane.f32.xlu0 %v4657
  %v4697 = vpop.xlane.xlu0 %4696
  %4698 = vadd.xlane.f32.xlu0 %v4658
  %v4699 = vpop.xlane.xlu0 %4698
  %4700 = vadd.xlane.f32.xlu0 %v4659
  %v4701 = vpop.xlane.xlu0 %4700
  %4702 = vadd.xlane.f32.xlu0 %v4660
  %v4703 = vpop.xlane.xlu0 %4702
  %4704 = vadd.xlane.f32.xlu0 %v4661
  %v4705 = vpop.xlane.xlu0 %4704
  %4706 = vadd.xlane.f32.xlu0 %v4662
  %v4707 = vpop.xlane.xlu0 %4706
  %4708 = vadd.xlane.f32.xlu0 %v4663
  %v4709 = vpop.xlane.xlu0 %4708
  %4710 = vadd.xlane.f32.xlu0 %v4664
  %v4711 = vpop.xlane.xlu0 %4710
  %4712 = vadd.xlane.f32.xlu0 %v4665
  %v4713 = vpop.xlane.xlu0 %4712
  %4714 = vadd.xlane.f32.xlu0 %v4666
  %v4715 = vpop.xlane.xlu0 %4714
  %4716 = vadd.xlane.f32.xlu0 %v4667
  %v4717 = vpop.xlane.xlu0 %4716
  %4718 = vadd.xlane.f32.xlu0 %v4668
  %v4719 = vpop.xlane.xlu0 %4718
  %4720 = vadd.xlane.f32.xlu0 %v4669
  %v4721 = vpop.xlane.xlu0 %4720
  %4722 = vadd.xlane.f32.xlu0 %v4670
  %v4723 = vpop.xlane.xlu0 %4722
  %4724 = vadd.xlane.f32.xlu0 %v4671
  %v4725 = vpop.xlane.xlu0 %4724
  %4726 = vadd.xlane.f32.xlu0 %v4672
  %v4727 = vpop.xlane.xlu0 %4726
  %4728 = vadd.xlane.f32.xlu0 %v4673
  %v4729 = vpop.xlane.xlu0 %4728
  %4730 = vadd.xlane.f32.xlu0 %v4674
  %v4731 = vpop.xlane.xlu0 %4730
  %4732 = vadd.xlane.f32.xlu0 %v4675
  %v4733 = vpop.xlane.xlu0 %4732
  %4734 = vadd.xlane.f32.xlu0 %v4676
  %v4735 = vpop.xlane.xlu0 %4734
  %4736 = vadd.xlane.f32.xlu0 %v4677
  %v4737 = vpop.xlane.xlu0 %4736
  %4738 = vadd.xlane.f32.xlu0 %v4678
  %v4739 = vpop.xlane.xlu0 %4738
  %4740 = vadd.xlane.f32.xlu0 %v4679
  %v4741 = vpop.xlane.xlu0 %4740
  %4742 = vadd.xlane.f32.xlu0 %v4680
  %v4743 = vpop.xlane.xlu0 %4742
  %4744 = vadd.xlane.f32.xlu0 %v4681
  %v4745 = vpop.xlane.xlu0 %4744
  %v4746 = vmul.f32 %v4683, %v28
  %v4747 = vmul.f32 %v4685, %v28
  %v4748 = vmul.f32 %v4687, %v28
  %v4749 = vmul.f32 %v4689, %v28
  %v4750 = vmul.f32 %v4691, %v28
  %v4751 = vmul.f32 %v4693, %v28
  %v4752 = vmul.f32 %v4695, %v28
  %v4753 = vmul.f32 %v4697, %v28
  %v4754 = vmul.f32 %v4699, %v28
  %v4755 = vmul.f32 %v4701, %v28
  %v4756 = vmul.f32 %v4703, %v28
  %v4757 = vmul.f32 %v4705, %v28
  %v4758 = vmul.f32 %v4707, %v28
  %v4759 = vmul.f32 %v4709, %v28
  %v4760 = vmul.f32 %v4711, %v28
  %v4761 = vmul.f32 %v4713, %v28
  %v4762 = vmul.f32 %v4715, %v28
  %v4763 = vmul.f32 %v4717, %v28
  %v4764 = vmul.f32 %v4719, %v28
  %v4765 = vmul.f32 %v4721, %v28
  %v4766 = vmul.f32 %v4723, %v28
  %v4767 = vmul.f32 %v4725, %v28
  %v4768 = vmul.f32 %v4727, %v28
  %v4769 = vmul.f32 %v4729, %v28
  %v4770 = vmul.f32 %v4731, %v28
  %v4771 = vmul.f32 %v4733, %v28
  %v4772 = vmul.f32 %v4735, %v28
  %v4773 = vmul.f32 %v4737, %v28
  %v4774 = vmul.f32 %v4739, %v28
  %v4775 = vmul.f32 %v4741, %v28
  %v4776 = vmul.f32 %v4743, %v28
  %v4777 = vmul.f32 %v4745, %v28
  %v4778 = vadd.f32 %v4618, %v4746
  %v4779 = vadd.f32 %v4619, %v4747
  %v4780 = vadd.f32 %v4620, %v4748
  %v4781 = vadd.f32 %v4621, %v4749
  %v4782 = vadd.f32 %v4622, %v4750
  %v4783 = vadd.f32 %v4623, %v4751
  %v4784 = vadd.f32 %v4624, %v4752
  %v4785 = vadd.f32 %v4625, %v4753
  %v4786 = vadd.f32 %v4626, %v4754
  %v4787 = vadd.f32 %v4627, %v4755
  %v4788 = vadd.f32 %v4628, %v4756
  %v4789 = vadd.f32 %v4629, %v4757
  %v4790 = vadd.f32 %v4630, %v4758
  %v4791 = vadd.f32 %v4631, %v4759
  %v4792 = vadd.f32 %v4632, %v4760
  %v4793 = vadd.f32 %v4633, %v4761
  %v4794 = vadd.f32 %v4634, %v4762
  %v4795 = vadd.f32 %v4635, %v4763
  %v4796 = vadd.f32 %v4636, %v4764
  %v4797 = vadd.f32 %v4637, %v4765
  %v4798 = vadd.f32 %v4638, %v4766
  %v4799 = vadd.f32 %v4639, %v4767
  %v4800 = vadd.f32 %v4640, %v4768
  %v4801 = vadd.f32 %v4641, %v4769
  %v4802 = vadd.f32 %v4642, %v4770
  %v4803 = vadd.f32 %v4643, %v4771
  %v4804 = vadd.f32 %v4644, %v4772
  %v4805 = vadd.f32 %v4645, %v4773
  %v4806 = vadd.f32 %v4646, %v4774
  %v4807 = vadd.f32 %v4647, %v4775
  %v4808 = vadd.f32 %v4648, %v4776
  %v4809 = vadd.f32 %v4649, %v4777
  %4810 = vst [vmem:[%s5] sm:$0xff] %v4778
  %4811 = vst [vmem:[%s5 + $0x8] sm:$0xff] %v4779
  %4812 = vst [vmem:[%s5 + $0x10] sm:$0xff] %v4780
  %4813 = vst [vmem:[%s5 + $0x18] sm:$0xff] %v4781
  %4814 = vst [vmem:[%s5 + $0x20] sm:$0xff] %v4782
  %4815 = vst [vmem:[%s5 + $0x28] sm:$0xff] %v4783
  %4816 = vst [vmem:[%s5 + $0x30] sm:$0xff] %v4784
  %4817 = vst [vmem:[%s5 + $0x38] sm:$0xff] %v4785
  %4818 = vst [vmem:[%s5 + $0x40] sm:$0xff] %v4786
  %4819 = vst [vmem:[%s5 + $0x48] sm:$0xff] %v4787
  %4820 = vst [vmem:[%s5 + $0x50] sm:$0xff] %v4788
  %4821 = vst [vmem:[%s5 + $0x58] sm:$0xff] %v4789
  %4822 = vst [vmem:[%s5 + $0x60] sm:$0xff] %v4790
  %4823 = vst [vmem:[%s5 + $0x68] sm:$0xff] %v4791
  %4824 = vst [vmem:[%s5 + $0x70] sm:$0xff] %v4792
  %4825 = vst [vmem:[%s5 + $0x78] sm:$0xff] %v4793
  %4826 = vst [vmem:[%s5 + $0x80] sm:$0xff] %v4794
  %4827 = vst [vmem:[%s5 + $0x88] sm:$0xff] %v4795
  %4828 = vst [vmem:[%s5 + $0x90] sm:$0xff] %v4796
  %4829 = vst [vmem:[%s5 + $0x98] sm:$0xff] %v4797
  %4830 = vst [vmem:[%s5 + $0xa0] sm:$0xff] %v4798
  %4831 = vst [vmem:[%s5 + $0xa8] sm:$0xff] %v4799
  %4832 = vst [vmem:[%s5 + $0xb0] sm:$0xff] %v4800
  %4833 = vst [vmem:[%s5 + $0xb8] sm:$0xff] %v4801
  %4834 = vst [vmem:[%s5 + $0xc0] sm:$0xff] %v4802
  %4835 = vst [vmem:[%s5 + $0xc8] sm:$0xff] %v4803
  %4836 = vst [vmem:[%s5 + $0xd0] sm:$0xff] %v4804
  %4837 = vst [vmem:[%s5 + $0xd8] sm:$0xff] %v4805
  %4838 = vst [vmem:[%s5 + $0xe0] sm:$0xff] %v4806
  %4839 = vst [vmem:[%s5 + $0xe8] sm:$0xff] %v4807
  %4840 = vst [vmem:[%s5 + $0xf0] sm:$0xff] %v4808
  %4841 = vst [vmem:[%s5 + $0xf8] sm:$0xff] %v4809
  // Predicated region
  $region22: #{conditional_realnvp_forward.1} parent=0 // pred_check
    _
  $region23: #{conditional_realnvp_forward.1} parent=0 // pred_check_branch
    %4843 = sbr.rel (0) target = $region25
  $region24: #{conditional_realnvp_forward.1} parent=0 // pred_region
    _
  $region25: #{conditional_realnvp_forward.1} parent=0 // pred_fallthru
    _
  // Predicated region
  $region26: #{conditional_realnvp_forward.1} parent=0 // pred_check
    _
  $region27: #{conditional_realnvp_forward.1} parent=0 // pred_check_branch
    %4845 = sbr.rel (0) target = $region29
  $region28: #{conditional_realnvp_forward.1} parent=0 // pred_region
    _
  $region29: #{conditional_realnvp_forward.1} parent=0 // pred_fallthru
    _

</llo_original>
